<compile_context>
chip_gen: v6e
topology: v6e:2x2x1
jax: 0.10.0
libtpu: 0.0.40
codegen_flags: <defaults>
</compile_context>

<pallas_src>
import numpy as np
import jax
import jax.numpy as jnp
from jax import lax
from jax.experimental import pallas as pl
from jax.experimental.pallas import tpu as pltpu


_HIGHEST = lax.Precision.HIGHEST
_N_COUPLING = 2            # RealNVPBlock(n_layers=2)
_PARAMS_PER_LAYER = 8      # w1, b1, w2, b2, w3_s, b3_s, w3_t, b3_t


def _realnvp_block_kernel(*refs):
    """One batch-tile of a full RealNVPBlock (2 coupling layers, 3-layer MLP each)."""
    n_in = 2 + _N_COUPLING * _PARAMS_PER_LAYER
    x0_ref, x1_ref = refs[0], refs[1]
    param_refs = refs[2:n_in]
    y0_ref, y1_ref = refs[n_in], refs[n_in + 1]

    y0 = x0_ref[...].astype(jnp.float32)   # (TB, H)
    y1 = x1_ref[...].astype(jnp.float32)   # (TB, H)

    for layer in range(_N_COUPLING):
        w1, b1, w2, b2, w3s, b3s, w3t, b3t = (
            r[...]
            for r in param_refs[layer * _PARAMS_PER_LAYER:(layer + 1) * _PARAMS_PER_LAYER]
        )
        # 3-layer MLP on the first half (all matmuls land on the MXU, f32 acc).
        h = jnp.maximum(
            jnp.dot(y0, w1, preferred_element_type=jnp.float32, precision=_HIGHEST) + b1,
            0.0)
        h = jnp.maximum(
            jnp.dot(h, w2, preferred_element_type=jnp.float32, precision=_HIGHEST) + b2,
            0.0)
        # Final Linear split column-wise into the s / t halves (== chunk(st, 2)).
        s = 0.1 * jnp.tanh(
            jnp.dot(h, w3s, preferred_element_type=jnp.float32, precision=_HIGHEST) + b3s)
        t = jnp.dot(h, w3t, preferred_element_type=jnp.float32, precision=_HIGHEST) + b3t
        transformed = y1 * jnp.exp(s) + t
        # y = concat([transformed, y0]) -> next layer's halves are (transformed, y0).
        y0, y1 = transformed, y0

    y0_ref[...] = y0.astype(y0_ref.dtype)
    y1_ref[...] = y1.astype(y1_ref.dtype)


def _pick_row_tile(batch: int) -> int:
    """Batch-tile size: full batch when small, otherwise a large multiple of 8."""
    if batch <= 1024:
        return batch  # block == full dim, always layout-legal
    for tb in (1024, 512, 256, 128):
        if batch % tb == 0:
            return tb
    return 1024  # partial last tile is fine: rows are fully independent


def prepare_realnvp_params(params):
    """Hoisted (call-once) parameter prep.

    `params` is a list of _N_COUPLING tuples (w1, b1, w2, b2, w3, b3) with
    w1, w2: (H, H); b1, b2: (H,); w3: (H, C); b3: (C,)   [y = x @ w + b layout]
    Returns a flat list of 2D arrays:
      per layer: w1, b1(1,H), w2, b2(1,H), w3_s(H,H), b3_s(1,H), w3_t(H,H), b3_t(1,H)
    """
    flat = []
    for (w1, b1, w2, b2, w3, b3) in params:
        H = w1.shape[0]
        flat += [
            w1, b1.reshape(1, H),
            w2, b2.reshape(1, H),
            w3[:, :H], b3[:H].reshape(1, H),
            w3[:, H:], b3[H:].reshape(1, H),
        ]
    return flat


def realnvp_block_forward(x: jax.Array, flat_params) -> jax.Array:
    """RealNVPBlock forward via a single fused Pallas TPU kernel."""
    B, C = x.shape
    assert C % 2 == 0, "RealNVP needs an even channel count"
    H = C // 2
    assert len(flat_params) == _N_COUPLING * _PARAMS_PER_LAYER

    # Static split into halves (== torch.chunk(x, 2, dim=-1)); keeps the kernel
    # free of lane-unaligned slicing.
    x0 = x[:, :H]
    x1 = x[:, H:]

    tb = _pick_row_tile(B)
    grid = (pl.cdiv(B, tb),)

    half_spec = pl.BlockSpec((tb, H), lambda i: (i, 0))
    param_specs = [pl.BlockSpec(p.shape, lambda i: (0, 0)) for p in flat_params]

    itemsize = np.dtype(x.dtype).itemsize
    param_elems = sum(int(np.prod(p.shape)) for p in flat_params)
    cost = pl.CostEstimate(
        flops=_N_COUPLING * 8 * B * H * H,           # 4 (H x H) matmuls per layer
        transcendentals=_N_COUPLING * 2 * B * H,     # tanh + exp per layer
        bytes_accessed=itemsize * (2 * B * C + param_elems),
    )

    y0, y1 = pl.pallas_call(
        _realnvp_block_kernel,
        out_shape=(
            jax.ShapeDtypeStruct((B, H), x.dtype),
            jax.ShapeDtypeStruct((B, H), x.dtype),
        ),
        grid_spec=pltpu.PrefetchScalarGridSpec(
            num_scalar_prefetch=0,
            grid=grid,
            in_specs=[half_spec, half_spec] + param_specs,
            out_specs=(
                pl.BlockSpec((tb, H), lambda i: (i, 0)),
                pl.BlockSpec((tb, H), lambda i: (i, 0)),
            ),
        ),
        compiler_params=pltpu.CompilerParams(
            dimension_semantics=("parallel",),
        ),
        cost_estimate=cost,
    )(x0, x1, *flat_params)

    return jnp.concatenate([y0, y1], axis=-1)


def realnvp_block_ref(x: jax.Array, params) -> jax.Array:
    """Pure-JAX reference matching the PyTorch RealNVPBlock forward."""
    y = x.astype(jnp.float32)
    for (w1, b1, w2, b2, w3, b3) in params:
        half = y.shape[-1] // 2
        x0, x1 = y[:, :half], y[:, half:]
        h = jnp.maximum(jnp.dot(x0, w1, precision=_HIGHEST) + b1, 0.0)
        h = jnp.maximum(jnp.dot(h, w2, precision=_HIGHEST) + b2, 0.0)
        st = jnp.dot(h, w3, precision=_HIGHEST) + b3
        s = 0.1 * jnp.tanh(st[:, :half])
        t = st[:, half:]
        y = jnp.concatenate([x1 * jnp.exp(s) + t, x0], axis=-1)
    return y.astype(x.dtype)


def init_params(key, in_channels: int):
    """Deterministic RealNVPBlock parameters (n_layers = _N_COUPLING)."""
    H = in_channels // 2
    params = []
    for layer_key in jax.random.split(key, _N_COUPLING):
        k = jax.random.split(layer_key, 6)
        w1 = jax.random.normal(k[0], (H, H), jnp.float32) / np.sqrt(H)
        b1 = 0.01 * jax.random.normal(k[1], (H,), jnp.float32)
        w2 = jax.random.normal(k[2], (H, H), jnp.float32) / np.sqrt(H)
        b2 = 0.01 * jax.random.normal(k[3], (H,), jnp.float32)
        w3 = jax.random.normal(k[4], (H, in_channels), jnp.float32) / np.sqrt(H)
        b3 = 0.01 * jax.random.normal(k[5], (in_channels,), jnp.float32)
        params.append((w1, b1, w2, b2, w3, b3))
    return params


if __name__ == "__main__":
    key = jax.random.PRNGKey(0)
    kx, kp = jax.random.split(key)

    B, C = 8, 32  # small shapes: batch=8, in_channels=32 (H = 16)

    x = jax.random.normal(kx, (B, C), dtype=jnp.float32)
    params = init_params(kp, C)

    # Parameter prep is hoisted out of the forward path (done once).
    flat_params = prepare_realnvp_params(params)

    out = realnvp_block_forward(x, flat_params)
    out = jax.block_until_ready(out)

    ref = realnvp_block_ref(x, params)
    np.testing.assert_allclose(np.asarray(out), np.asarray(ref), rtol=1e-4, atol=1e-4)

    print("KERNEL_OK")
</pallas_src>

<mosaic_0001>
module attributes {stable_mosaic.version = 11 : i64} {
  func.func @_realnvp_block_kernel(%arg0: i32, %arg1: memref<8x16xf32, #tpu.memory_space<vmem>>, %arg2: memref<8x16xf32, #tpu.memory_space<vmem>>, %arg3: memref<16x16xf32, #tpu.memory_space<vmem>>, %arg4: memref<1x16xf32, #tpu.memory_space<vmem>>, %arg5: memref<16x16xf32, #tpu.memory_space<vmem>>, %arg6: memref<1x16xf32, #tpu.memory_space<vmem>>, %arg7: memref<16x16xf32, #tpu.memory_space<vmem>>, %arg8: memref<1x16xf32, #tpu.memory_space<vmem>>, %arg9: memref<16x16xf32, #tpu.memory_space<vmem>>, %arg10: memref<1x16xf32, #tpu.memory_space<vmem>>, %arg11: memref<16x16xf32, #tpu.memory_space<vmem>>, %arg12: memref<1x16xf32, #tpu.memory_space<vmem>>, %arg13: memref<16x16xf32, #tpu.memory_space<vmem>>, %arg14: memref<1x16xf32, #tpu.memory_space<vmem>>, %arg15: memref<16x16xf32, #tpu.memory_space<vmem>>, %arg16: memref<1x16xf32, #tpu.memory_space<vmem>>, %arg17: memref<16x16xf32, #tpu.memory_space<vmem>>, %arg18: memref<1x16xf32, #tpu.memory_space<vmem>>, %arg19: memref<8x16xf32, #tpu.memory_space<vmem>>, %arg20: memref<8x16xf32, #tpu.memory_space<vmem>>) attributes {dimension_semantics = [#tpu.dimension_semantics<parallel>], iteration_bounds = array<i64: 1>, scalar_prefetch = 0 : i64, scratch_operands = 0 : i64, tpu.core_type = #tpu.core_type<tc>, window_params = [{transform_indices = @transform_0, window_bounds = array<i64: 8, 16>}, {transform_indices = @transform_1, window_bounds = array<i64: 8, 16>}, {pipeline_mode = #tpu.pipeline_mode<synchronous>, transform_indices = @transform_2, window_bounds = array<i64: 16, 16>}, {pipeline_mode = #tpu.pipeline_mode<synchronous>, transform_indices = @transform_3, window_bounds = array<i64: 1, 16>}, {pipeline_mode = #tpu.pipeline_mode<synchronous>, transform_indices = @transform_4, window_bounds = array<i64: 16, 16>}, {pipeline_mode = #tpu.pipeline_mode<synchronous>, transform_indices = @transform_5, window_bounds = array<i64: 1, 16>}, {pipeline_mode = #tpu.pipeline_mode<synchronous>, transform_indices = @transform_6, window_bounds = array<i64: 16, 16>}, {pipeline_mode = #tpu.pipeline_mode<synchronous>, transform_indices = @transform_7, window_bounds = array<i64: 1, 16>}, {pipeline_mode = #tpu.pipeline_mode<synchronous>, transform_indices = @transform_8, window_bounds = array<i64: 16, 16>}, {pipeline_mode = #tpu.pipeline_mode<synchronous>, transform_indices = @transform_9, window_bounds = array<i64: 1, 16>}, {pipeline_mode = #tpu.pipeline_mode<synchronous>, transform_indices = @transform_10, window_bounds = array<i64: 16, 16>}, {pipeline_mode = #tpu.pipeline_mode<synchronous>, transform_indices = @transform_11, window_bounds = array<i64: 1, 16>}, {pipeline_mode = #tpu.pipeline_mode<synchronous>, transform_indices = @transform_12, window_bounds = array<i64: 16, 16>}, {pipeline_mode = #tpu.pipeline_mode<synchronous>, transform_indices = @transform_13, window_bounds = array<i64: 1, 16>}, {pipeline_mode = #tpu.pipeline_mode<synchronous>, transform_indices = @transform_14, window_bounds = array<i64: 16, 16>}, {pipeline_mode = #tpu.pipeline_mode<synchronous>, transform_indices = @transform_15, window_bounds = array<i64: 1, 16>}, {pipeline_mode = #tpu.pipeline_mode<synchronous>, transform_indices = @transform_16, window_bounds = array<i64: 16, 16>}, {pipeline_mode = #tpu.pipeline_mode<synchronous>, transform_indices = @transform_17, window_bounds = array<i64: 1, 16>}, {transform_indices = @transform_18, window_bounds = array<i64: 8, 16>}, {transform_indices = @transform_19, window_bounds = array<i64: 8, 16>}]} {
    %c0 = arith.constant 0 : index
    %c0_0 = arith.constant 0 : index
    %0 = vector.load %arg1[%c0, %c0_0] : memref<8x16xf32, #tpu.memory_space<vmem>>, vector<8x16xf32>
    %c0_1 = arith.constant 0 : index
    %c0_2 = arith.constant 0 : index
    %1 = vector.load %arg2[%c0_1, %c0_2] : memref<8x16xf32, #tpu.memory_space<vmem>>, vector<8x16xf32>
    %c0_3 = arith.constant 0 : index
    %c0_4 = arith.constant 0 : index
    %2 = vector.load %arg3[%c0_3, %c0_4] : memref<16x16xf32, #tpu.memory_space<vmem>>, vector<16x16xf32>
    %c0_5 = arith.constant 0 : index
    %c0_6 = arith.constant 0 : index
    %3 = vector.load %arg4[%c0_5, %c0_6] : memref<1x16xf32, #tpu.memory_space<vmem>>, vector<1x16xf32>
    %c0_7 = arith.constant 0 : index
    %c0_8 = arith.constant 0 : index
    %4 = vector.load %arg5[%c0_7, %c0_8] : memref<16x16xf32, #tpu.memory_space<vmem>>, vector<16x16xf32>
    %c0_9 = arith.constant 0 : index
    %c0_10 = arith.constant 0 : index
    %5 = vector.load %arg6[%c0_9, %c0_10] : memref<1x16xf32, #tpu.memory_space<vmem>>, vector<1x16xf32>
    %c0_11 = arith.constant 0 : index
    %c0_12 = arith.constant 0 : index
    %6 = vector.load %arg7[%c0_11, %c0_12] : memref<16x16xf32, #tpu.memory_space<vmem>>, vector<16x16xf32>
    %c0_13 = arith.constant 0 : index
    %c0_14 = arith.constant 0 : index
    %7 = vector.load %arg8[%c0_13, %c0_14] : memref<1x16xf32, #tpu.memory_space<vmem>>, vector<1x16xf32>
    %c0_15 = arith.constant 0 : index
    %c0_16 = arith.constant 0 : index
    %8 = vector.load %arg9[%c0_15, %c0_16] : memref<16x16xf32, #tpu.memory_space<vmem>>, vector<16x16xf32>
    %c0_17 = arith.constant 0 : index
    %c0_18 = arith.constant 0 : index
    %9 = vector.load %arg10[%c0_17, %c0_18] : memref<1x16xf32, #tpu.memory_space<vmem>>, vector<1x16xf32>
    %cst = arith.constant dense<0.000000e+00> : vector<8x16xf32>
    %10 = tpu.matmul %0, %2, %cst {dimension_numbers = #tpu.dot_dimension_numbers<[1], [0], [0], [1], [0, 0, 1, 1], [], []>, precision = #tpu.contract_precision<fp32>} : vector<8x16xf32>, vector<16x16xf32>, vector<8x16xf32> -> vector<8x16xf32>
    %11 = vector.broadcast %3 : vector<1x16xf32> to vector<8x16xf32>
    %12 = arith.addf %10, %11 : vector<8x16xf32>
    %cst_19 = arith.constant 0.000000e+00 : f32
    %13 = vector.broadcast %cst_19 : f32 to vector<8x16xf32>
    %14 = arith.maximumf %12, %13 : vector<8x16xf32>
    %cst_20 = arith.constant dense<0.000000e+00> : vector<8x16xf32>
    %15 = tpu.matmul %14, %4, %cst_20 {dimension_numbers = #tpu.dot_dimension_numbers<[1], [0], [0], [1], [0, 0, 1, 1], [], []>, precision = #tpu.contract_precision<fp32>} : vector<8x16xf32>, vector<16x16xf32>, vector<8x16xf32> -> vector<8x16xf32>
    %16 = vector.broadcast %5 : vector<1x16xf32> to vector<8x16xf32>
    %17 = arith.addf %15, %16 : vector<8x16xf32>
    %cst_21 = arith.constant 0.000000e+00 : f32
    %18 = vector.broadcast %cst_21 : f32 to vector<8x16xf32>
    %19 = arith.maximumf %17, %18 : vector<8x16xf32>
    %cst_22 = arith.constant dense<0.000000e+00> : vector<8x16xf32>
    %20 = tpu.matmul %19, %6, %cst_22 {dimension_numbers = #tpu.dot_dimension_numbers<[1], [0], [0], [1], [0, 0, 1, 1], [], []>, precision = #tpu.contract_precision<fp32>} : vector<8x16xf32>, vector<16x16xf32>, vector<8x16xf32> -> vector<8x16xf32>
    %21 = vector.broadcast %7 : vector<1x16xf32> to vector<8x16xf32>
    %22 = arith.addf %20, %21 : vector<8x16xf32>
    %23 = math.tanh %22 : vector<8x16xf32>
    %cst_23 = arith.constant 1.000000e-01 : f32
    %24 = vector.broadcast %cst_23 : f32 to vector<8x16xf32>
    %25 = arith.mulf %24, %23 : vector<8x16xf32>
    %cst_24 = arith.constant dense<0.000000e+00> : vector<8x16xf32>
    %26 = tpu.matmul %19, %8, %cst_24 {dimension_numbers = #tpu.dot_dimension_numbers<[1], [0], [0], [1], [0, 0, 1, 1], [], []>, precision = #tpu.contract_precision<fp32>} : vector<8x16xf32>, vector<16x16xf32>, vector<8x16xf32> -> vector<8x16xf32>
    %27 = vector.broadcast %9 : vector<1x16xf32> to vector<8x16xf32>
    %28 = arith.addf %26, %27 : vector<8x16xf32>
    %29 = math.exp %25 : vector<8x16xf32>
    %30 = arith.mulf %1, %29 : vector<8x16xf32>
    %31 = arith.addf %30, %28 : vector<8x16xf32>
    %c0_25 = arith.constant 0 : index
    %c0_26 = arith.constant 0 : index
    %32 = vector.load %arg11[%c0_25, %c0_26] : memref<16x16xf32, #tpu.memory_space<vmem>>, vector<16x16xf32>
    %c0_27 = arith.constant 0 : index
    %c0_28 = arith.constant 0 : index
    %33 = vector.load %arg12[%c0_27, %c0_28] : memref<1x16xf32, #tpu.memory_space<vmem>>, vector<1x16xf32>
    %c0_29 = arith.constant 0 : index
    %c0_30 = arith.constant 0 : index
    %34 = vector.load %arg13[%c0_29, %c0_30] : memref<16x16xf32, #tpu.memory_space<vmem>>, vector<16x16xf32>
    %c0_31 = arith.constant 0 : index
    %c0_32 = arith.constant 0 : index
    %35 = vector.load %arg14[%c0_31, %c0_32] : memref<1x16xf32, #tpu.memory_space<vmem>>, vector<1x16xf32>
    %c0_33 = arith.constant 0 : index
    %c0_34 = arith.constant 0 : index
    %36 = vector.load %arg15[%c0_33, %c0_34] : memref<16x16xf32, #tpu.memory_space<vmem>>, vector<16x16xf32>
    %c0_35 = arith.constant 0 : index
    %c0_36 = arith.constant 0 : index
    %37 = vector.load %arg16[%c0_35, %c0_36] : memref<1x16xf32, #tpu.memory_space<vmem>>, vector<1x16xf32>
    %c0_37 = arith.constant 0 : index
    %c0_38 = arith.constant 0 : index
    %38 = vector.load %arg17[%c0_37, %c0_38] : memref<16x16xf32, #tpu.memory_space<vmem>>, vector<16x16xf32>
    %c0_39 = arith.constant 0 : index
    %c0_40 = arith.constant 0 : index
    %39 = vector.load %arg18[%c0_39, %c0_40] : memref<1x16xf32, #tpu.memory_space<vmem>>, vector<1x16xf32>
    %cst_41 = arith.constant dense<0.000000e+00> : vector<8x16xf32>
    %40 = tpu.matmul %31, %32, %cst_41 {dimension_numbers = #tpu.dot_dimension_numbers<[1], [0], [0], [1], [0, 0, 1, 1], [], []>, precision = #tpu.contract_precision<fp32>} : vector<8x16xf32>, vector<16x16xf32>, vector<8x16xf32> -> vector<8x16xf32>
    %41 = vector.broadcast %33 : vector<1x16xf32> to vector<8x16xf32>
    %42 = arith.addf %40, %41 : vector<8x16xf32>
    %cst_42 = arith.constant 0.000000e+00 : f32
    %43 = vector.broadcast %cst_42 : f32 to vector<8x16xf32>
    %44 = arith.maximumf %42, %43 : vector<8x16xf32>
    %cst_43 = arith.constant dense<0.000000e+00> : vector<8x16xf32>
    %45 = tpu.matmul %44, %34, %cst_43 {dimension_numbers = #tpu.dot_dimension_numbers<[1], [0], [0], [1], [0, 0, 1, 1], [], []>, precision = #tpu.contract_precision<fp32>} : vector<8x16xf32>, vector<16x16xf32>, vector<8x16xf32> -> vector<8x16xf32>
    %46 = vector.broadcast %35 : vector<1x16xf32> to vector<8x16xf32>
    %47 = arith.addf %45, %46 : vector<8x16xf32>
    %cst_44 = arith.constant 0.000000e+00 : f32
    %48 = vector.broadcast %cst_44 : f32 to vector<8x16xf32>
    %49 = arith.maximumf %47, %48 : vector<8x16xf32>
    %cst_45 = arith.constant dense<0.000000e+00> : vector<8x16xf32>
    %50 = tpu.matmul %49, %36, %cst_45 {dimension_numbers = #tpu.dot_dimension_numbers<[1], [0], [0], [1], [0, 0, 1, 1], [], []>, precision = #tpu.contract_precision<fp32>} : vector<8x16xf32>, vector<16x16xf32>, vector<8x16xf32> -> vector<8x16xf32>
    %51 = vector.broadcast %37 : vector<1x16xf32> to vector<8x16xf32>
    %52 = arith.addf %50, %51 : vector<8x16xf32>
    %53 = math.tanh %52 : vector<8x16xf32>
    %cst_46 = arith.constant 1.000000e-01 : f32
    %54 = vector.broadcast %cst_46 : f32 to vector<8x16xf32>
    %55 = arith.mulf %54, %53 : vector<8x16xf32>
    %cst_47 = arith.constant dense<0.000000e+00> : vector<8x16xf32>
    %56 = tpu.matmul %49, %38, %cst_47 {dimension_numbers = #tpu.dot_dimension_numbers<[1], [0], [0], [1], [0, 0, 1, 1], [], []>, precision = #tpu.contract_precision<fp32>} : vector<8x16xf32>, vector<16x16xf32>, vector<8x16xf32> -> vector<8x16xf32>
    %57 = vector.broadcast %39 : vector<1x16xf32> to vector<8x16xf32>
    %58 = arith.addf %56, %57 : vector<8x16xf32>
    %59 = math.exp %55 : vector<8x16xf32>
    %60 = arith.mulf %0, %59 : vector<8x16xf32>
    %61 = arith.addf %60, %58 : vector<8x16xf32>
    %c0_48 = arith.constant 0 : index
    %c0_49 = arith.constant 0 : index
    %62 = vector.load %arg19[%c0_48, %c0_49] : memref<8x16xf32, #tpu.memory_space<vmem>>, vector<8x16xf32>
    tpu.vector_store %arg19[%c0_48, %c0_49], %61 {strides = array<i32>} : memref<8x16xf32, #tpu.memory_space<vmem>>, vector<8x16xf32>,
    %c0_50 = arith.constant 0 : index
    %c0_51 = arith.constant 0 : index
    %63 = vector.load %arg20[%c0_50, %c0_51] : memref<8x16xf32, #tpu.memory_space<vmem>>, vector<8x16xf32>
    tpu.vector_store %arg20[%c0_50, %c0_51], %31 {strides = array<i32>} : memref<8x16xf32, #tpu.memory_space<vmem>>, vector<8x16xf32>,
    return
  }
  func.func @transform_0(%arg0: i32) -> (i32, i32) {
    %c0_i32 = arith.constant 0 : i32
    %c0_i32_0 = arith.constant 0 : i32
    return %arg0, %c0_i32 : i32, i32
  }
  func.func @transform_1(%arg0: i32) -> (i32, i32) {
    %c0_i32 = arith.constant 0 : i32
    %c0_i32_0 = arith.constant 0 : i32
    return %arg0, %c0_i32 : i32, i32
  }
  func.func @transform_2(%arg0: i32) -> (i32, i32) {
    %c0_i32 = arith.constant 0 : i32
    %c0_i32_0 = arith.constant 0 : i32
    %c0_i32_1 = arith.constant 0 : i32
    return %c0_i32, %c0_i32_0 : i32, i32
  }
  func.func @transform_3(%arg0: i32) -> (i32, i32) {
    %c0_i32 = arith.constant 0 : i32
    %c0_i32_0 = arith.constant 0 : i32
    %c0_i32_1 = arith.constant 0 : i32
    return %c0_i32, %c0_i32_0 : i32, i32
  }
  func.func @transform_4(%arg0: i32) -> (i32, i32) {
    %c0_i32 = arith.constant 0 : i32
    %c0_i32_0 = arith.constant 0 : i32
    %c0_i32_1 = arith.constant 0 : i32
    return %c0_i32, %c0_i32_0 : i32, i32
  }
  func.func @transform_5(%arg0: i32) -> (i32, i32) {
    %c0_i32 = arith.constant 0 : i32
    %c0_i32_0 = arith.constant 0 : i32
    %c0_i32_1 = arith.constant 0 : i32
    return %c0_i32, %c0_i32_0 : i32, i32
  }
  func.func @transform_6(%arg0: i32) -> (i32, i32) {
    %c0_i32 = arith.constant 0 : i32
    %c0_i32_0 = arith.constant 0 : i32
    %c0_i32_1 = arith.constant 0 : i32
    return %c0_i32, %c0_i32_0 : i32, i32
  }
  func.func @transform_7(%arg0: i32) -> (i32, i32) {
    %c0_i32 = arith.constant 0 : i32
    %c0_i32_0 = arith.constant 0 : i32
    %c0_i32_1 = arith.constant 0 : i32
    return %c0_i32, %c0_i32_0 : i32, i32
  }
  func.func @transform_8(%arg0: i32) -> (i32, i32) {
    %c0_i32 = arith.constant 0 : i32
    %c0_i32_0 = arith.constant 0 : i32
    %c0_i32_1 = arith.constant 0 : i32
    return %c0_i32, %c0_i32_0 : i32, i32
  }
  func.func @transform_9(%arg0: i32) -> (i32, i32) {
    %c0_i32 = arith.constant 0 : i32
    %c0_i32_0 = arith.constant 0 : i32
    %c0_i32_1 = arith.constant 0 : i32
    return %c0_i32, %c0_i32_0 : i32, i32
  }
  func.func @transform_10(%arg0: i32) -> (i32, i32) {
    %c0_i32 = arith.constant 0 : i32
    %c0_i32_0 = arith.constant 0 : i32
    %c0_i32_1 = arith.constant 0 : i32
    return %c0_i32, %c0_i32_0 : i32, i32
  }
  func.func @transform_11(%arg0: i32) -> (i32, i32) {
    %c0_i32 = arith.constant 0 : i32
    %c0_i32_0 = arith.constant 0 : i32
    %c0_i32_1 = arith.constant 0 : i32
    return %c0_i32, %c0_i32_0 : i32, i32
  }
  func.func @transform_12(%arg0: i32) -> (i32, i32) {
    %c0_i32 = arith.constant 0 : i32
    %c0_i32_0 = arith.constant 0 : i32
    %c0_i32_1 = arith.constant 0 : i32
    return %c0_i32, %c0_i32_0 : i32, i32
  }
  func.func @transform_13(%arg0: i32) -> (i32, i32) {
    %c0_i32 = arith.constant 0 : i32
    %c0_i32_0 = arith.constant 0 : i32
    %c0_i32_1 = arith.constant 0 : i32
    return %c0_i32, %c0_i32_0 : i32, i32
  }
  func.func @transform_14(%arg0: i32) -> (i32, i32) {
    %c0_i32 = arith.constant 0 : i32
    %c0_i32_0 = arith.constant 0 : i32
    %c0_i32_1 = arith.constant 0 : i32
    return %c0_i32, %c0_i32_0 : i32, i32
  }
  func.func @transform_15(%arg0: i32) -> (i32, i32) {
    %c0_i32 = arith.constant 0 : i32
    %c0_i32_0 = arith.constant 0 : i32
    %c0_i32_1 = arith.constant 0 : i32
    return %c0_i32, %c0_i32_0 : i32, i32
  }
  func.func @transform_16(%arg0: i32) -> (i32, i32) {
    %c0_i32 = arith.constant 0 : i32
    %c0_i32_0 = arith.constant 0 : i32
    %c0_i32_1 = arith.constant 0 : i32
    return %c0_i32, %c0_i32_0 : i32, i32
  }
  func.func @transform_17(%arg0: i32) -> (i32, i32) {
    %c0_i32 = arith.constant 0 : i32
    %c0_i32_0 = arith.constant 0 : i32
    %c0_i32_1 = arith.constant 0 : i32
    return %c0_i32, %c0_i32_0 : i32, i32
  }
  func.func @transform_18(%arg0: i32) -> (i32, i32) {
    %c0_i32 = arith.constant 0 : i32
    %c0_i32_0 = arith.constant 0 : i32
    return %arg0, %c0_i32 : i32, i32
  }
  func.func @transform_19(%arg0: i32) -> (i32, i32) {
    %c0_i32 = arith.constant 0 : i32
    %c0_i32_0 = arith.constant 0 : i32
    return %arg0, %c0_i32 : i32, i32
  }
}

</mosaic_0001>

<llo_original>
// kernel: tpu_custom_call.1
$region0: #{tpu_custom_call.1}
  #allocation0 [shape = 'u32[]', space=smem, size = 0x4, offset = 0x4, fixed_abs, tag = 'smem constant byte address 0x4 - core index']
  #allocation1 [shape = 'u32[144,128]{1,0:T(1,128)}', space=vmem, size = 0x12000, scoped, tag = 'internal scratch']
  %s0 = inlined_call_operand.hbm [shape: f32[8,16], index: 0, kind: input, shape index: {}]
  %s1 = inlined_call_operand.hbm [shape: f32[8,16], index: 1, kind: input, shape index: {}]
  %s2 = inlined_call_operand.hbm [shape: f32[16,16], index: 2, kind: input, shape index: {}]
  %s3 = inlined_call_operand.vmem [shape: f32[1,16], index: 3, kind: input, shape index: {}]
  %s4 = inlined_call_operand.hbm [shape: f32[16,16], index: 4, kind: input, shape index: {}]
  %s5 = inlined_call_operand.vmem [shape: f32[1,16], index: 5, kind: input, shape index: {}]
  %s6 = inlined_call_operand.hbm [shape: f32[16,16], index: 6, kind: input, shape index: {}]
  %s7 = inlined_call_operand.hbm [shape: f32[1,16], index: 7, kind: input, shape index: {}]
  %s8 = inlined_call_operand.hbm [shape: f32[16,16], index: 8, kind: input, shape index: {}]
  %s9 = inlined_call_operand.hbm [shape: f32[1,16], index: 9, kind: input, shape index: {}]
  %s10 = inlined_call_operand.vmem [shape: f32[16,16], index: 10, kind: input, shape index: {}]
  %s11 = inlined_call_operand.vmem [shape: f32[1,16], index: 11, kind: input, shape index: {}]
  %s12 = inlined_call_operand.hbm [shape: f32[16,16], index: 12, kind: input, shape index: {}]
  %s13 = inlined_call_operand.vmem [shape: f32[1,16], index: 13, kind: input, shape index: {}]
  %s14 = inlined_call_operand.hbm [shape: f32[16,16], index: 14, kind: input, shape index: {}]
  %s15 = inlined_call_operand.vmem [shape: f32[1,16], index: 15, kind: input, shape index: {}]
  %s16 = inlined_call_operand.hbm [shape: f32[16,16], index: 16, kind: input, shape index: {}]
  %s17 = inlined_call_operand.vmem [shape: f32[1,16], index: 17, kind: input, shape index: {}]
  %s18 = inlined_call_operand.hbm [shape: f32[8,16], index: 18, kind: output, shape index: {0}]
  %s19 = inlined_call_operand.hbm [shape: f32[8,16], index: 19, kind: output, shape index: {1}]
  %20 = xla_tuple %s18, %s19
  %s21 = sld [smem:[#allocation0]]
  $region134: #{tpu_custom_call.1} parent=0
    _
  %s23 = ssub.s32 1, %s21
  %s24 = scalar_select 0, %s23, %s21
  $region1: #{tpu_custom_call.1} parent=0
    #allocation2 [shape = 'u8[4096]{0}', space=vmem, size = 0x1000, scoped, tag = 'input window, operand 0, single buffered']
    #allocation3 [shape = 's32[1]{0}', space=sflag, size = 0x4, scoped, tag = 'scoped memory for tpu_custom_call.1']
    #allocation4 [shape = 's32[1]{0}', space=sflag, size = 0x4, scoped, tag = 'scoped memory for tpu_custom_call.1']
    #allocation5 [shape = 'u8[4096]{0}', space=vmem, size = 0x1000, scoped, tag = 'input window, operand 1, single buffered']
    #allocation6 [shape = 's32[1]{0}', space=sflag, size = 0x4, scoped, tag = 'scoped memory for tpu_custom_call.1']
    #allocation7 [shape = 'u8[8192]{0}', space=vmem, size = 0x2000, scoped, tag = 'input window, operand 2, single buffered']
    #allocation8 [shape = 'u8[8192]{0}', space=vmem, size = 0x2000, scoped, tag = 'input window, operand 4, single buffered']
    #allocation9 [shape = 's32[1]{0}', space=sflag, size = 0x4, scoped, tag = 'scoped memory for tpu_custom_call.1']
    #allocation10 [shape = 'u8[8192]{0}', space=vmem, size = 0x2000, scoped, tag = 'input window, operand 6, single buffered']
    #allocation11 [shape = 'u8[512]{0}', space=vmem, size = 0x400, scoped, tag = 'input window, operand 7, single buffered']
    #allocation12 [shape = 's32[1]{0}', space=sflag, size = 0x4, scoped, tag = 'scoped memory for tpu_custom_call.1']
    #allocation13 [shape = 'u8[8192]{0}', space=vmem, size = 0x2000, scoped, tag = 'input window, operand 8, single buffered']
    #allocation14 [shape = 'u8[512]{0}', space=vmem, size = 0x400, scoped, tag = 'input window, operand 9, single buffered']
    #allocation15 [shape = 's32[1]{0}', space=sflag, size = 0x4, scoped, tag = 'scoped memory for tpu_custom_call.1']
    #allocation16 [shape = 'u8[8192]{0}', space=vmem, size = 0x2000, scoped, tag = 'input window, operand 12, single buffered']
    #allocation17 [shape = 'u8[8192]{0}', space=vmem, size = 0x2000, scoped, tag = 'input window, operand 14, single buffered']
    #allocation18 [shape = 's32[1]{0}', space=sflag, size = 0x4, scoped, tag = 'scoped memory for tpu_custom_call.1']
    #allocation19 [shape = 'u8[8192]{0}', space=vmem, size = 0x2000, scoped, tag = 'input window, operand 16, single buffered']
    #allocation20 [shape = 'u8[4096]{0}', space=vmem, size = 0x1000, scoped, tag = 'output window, operand 0, single buffered']
    #allocation21 [shape = 'u8[4096]{0}', space=vmem, size = 0x1000, scoped, tag = 'output window, operand 1, single buffered']
    #allocation22 [shape = 's32[1]{0}', space=sflag, size = 0x4, scoped, tag = 'scoped memory for tpu_custom_call.1']
    %25 = vsyncpa [#allocation3], 0
    %26 = vsyncpa [#allocation6], 0
    %27 = vsyncpa [#allocation9], 0
    %28 = vsyncpa [#allocation12], 0
    %29 = vsyncpa [#allocation15], 0
    %30 = vsyncpa [#allocation18], 0
    %31 = vsyncpa [#allocation4], 0
    %32 = vsyncpa [#allocation22], 0
    // Predicated region
    $region2: #{tpu_custom_call.1} parent=1 // pred_check
      _
    $region3: #{tpu_custom_call.1} parent=1 // pred_check_branch
      %34 = sbr.rel (0) target = $region5
    $region4: #{tpu_custom_call.1} parent=1 // pred_region
      %s36 = ssub.s32 128, 128
      %37 = vsyncadd [#allocation3], %s36
      %s39 = sshll.u32 [#allocation2], 4
      %s40 = int_to_ptr.vmem [resolvable:$true] %s39
      %42 = dma.hbm_to_vmem [thread:$0]  %s0, 128, %s40, [#allocation3]
    $region5: #{tpu_custom_call.1} parent=1 // pred_fallthru
      _
    // Predicated region
    $region6: #{tpu_custom_call.1} parent=1 // pred_check
      _
    $region7: #{tpu_custom_call.1} parent=1 // pred_check_branch
      %44 = sbr.rel (0) target = $region9
    $region8: #{tpu_custom_call.1} parent=1 // pred_region
      %s46 = ssub.s32 128, 128
      %47 = vsyncadd [#allocation6], %s46
      %s49 = sshll.u32 [#allocation5], 4
      %s50 = int_to_ptr.vmem [resolvable:$true] %s49
      %52 = dma.hbm_to_vmem [thread:$0]  %s1, 128, %s50, [#allocation6]
    $region9: #{tpu_custom_call.1} parent=1 // pred_fallthru
      _
    // Predicated region
    $region10: #{tpu_custom_call.1} parent=1 // pred_check
      _
    $region11: #{tpu_custom_call.1} parent=1 // pred_check_branch
      %54 = sbr.rel (0) target = $region13
    $region12: #{tpu_custom_call.1} parent=1 // pred_region
      %s56 = ssub.s32 256, 256
      %57 = vsyncadd [#allocation6], %s56
      %s58 = sshll.u32 [#allocation7], 4
      %s59 = int_to_ptr.vmem [resolvable:$true] %s58
      %64 = dma.hbm_to_vmem [thread:$0]  %s2, 256, %s59, [#allocation6], 128, 128, 8
    $region13: #{tpu_custom_call.1} parent=1 // pred_fallthru
      _
    // Predicated region
    $region14: #{tpu_custom_call.1} parent=1 // pred_check
      _
    $region15: #{tpu_custom_call.1} parent=1 // pred_check_branch
      %66 = sbr.rel (0) target = $region17
    $region16: #{tpu_custom_call.1} parent=1 // pred_region
      _
    $region17: #{tpu_custom_call.1} parent=1 // pred_fallthru
      _
    // Predicated region
    $region18: #{tpu_custom_call.1} parent=1 // pred_check
      _
    $region19: #{tpu_custom_call.1} parent=1 // pred_check_branch
      %68 = sbr.rel (0) target = $region21
    $region20: #{tpu_custom_call.1} parent=1 // pred_region
      %s70 = ssub.s32 256, 256
      %71 = vsyncadd [#allocation9], %s70
      %s72 = sshll.u32 [#allocation8], 4
      %s73 = int_to_ptr.vmem [resolvable:$true] %s72
      %78 = dma.hbm_to_vmem [thread:$0]  %s4, 256, %s73, [#allocation9], 128, 128, 8
    $region21: #{tpu_custom_call.1} parent=1 // pred_fallthru
      _
    // Predicated region
    $region22: #{tpu_custom_call.1} parent=1 // pred_check
      _
    $region23: #{tpu_custom_call.1} parent=1 // pred_check_branch
      %80 = sbr.rel (0) target = $region25
    $region24: #{tpu_custom_call.1} parent=1 // pred_region
      _
    $region25: #{tpu_custom_call.1} parent=1 // pred_fallthru
      _
    // Predicated region
    $region26: #{tpu_custom_call.1} parent=1 // pred_check
      _
    $region27: #{tpu_custom_call.1} parent=1 // pred_check_branch
      %82 = sbr.rel (0) target = $region29
    $region28: #{tpu_custom_call.1} parent=1 // pred_region
      %s84 = ssub.s32 256, 256
      %85 = vsyncadd [#allocation9], %s84
      %s86 = sshll.u32 [#allocation10], 4
      %s87 = int_to_ptr.vmem [resolvable:$true] %s86
      %92 = dma.hbm_to_vmem [thread:$0]  %s6, 256, %s87, [#allocation9], 128, 128, 8
    $region29: #{tpu_custom_call.1} parent=1 // pred_fallthru
      _
    // Predicated region
    $region30: #{tpu_custom_call.1} parent=1 // pred_check
      _
    $region31: #{tpu_custom_call.1} parent=1 // pred_check_branch
      %94 = sbr.rel (0) target = $region33
    $region32: #{tpu_custom_call.1} parent=1 // pred_region
      %s96 = ssub.s32 16, 16
      %97 = vsyncadd [#allocation12], %s96
      %s99 = sshll.u32 [#allocation11], 4
      %s100 = int_to_ptr.vmem [resolvable:$true] %s99
      %102 = dma.hbm_to_vmem [thread:$0]  %s7, 16, %s100, [#allocation12]
    $region33: #{tpu_custom_call.1} parent=1 // pred_fallthru
      _
    // Predicated region
    $region34: #{tpu_custom_call.1} parent=1 // pred_check
      _
    $region35: #{tpu_custom_call.1} parent=1 // pred_check_branch
      %104 = sbr.rel (0) target = $region37
    $region36: #{tpu_custom_call.1} parent=1 // pred_region
      %s106 = ssub.s32 256, 256
      %107 = vsyncadd [#allocation12], %s106
      %s108 = sshll.u32 [#allocation13], 4
      %s109 = int_to_ptr.vmem [resolvable:$true] %s108
      %114 = dma.hbm_to_vmem [thread:$0]  %s8, 256, %s109, [#allocation12], 128, 128, 8
    $region37: #{tpu_custom_call.1} parent=1 // pred_fallthru
      _
    // Predicated region
    $region38: #{tpu_custom_call.1} parent=1 // pred_check
      _
    $region39: #{tpu_custom_call.1} parent=1 // pred_check_branch
      %116 = sbr.rel (0) target = $region41
    $region40: #{tpu_custom_call.1} parent=1 // pred_region
      %s118 = ssub.s32 16, 16
      %119 = vsyncadd [#allocation15], %s118
      %s121 = sshll.u32 [#allocation14], 4
      %s122 = int_to_ptr.vmem [resolvable:$true] %s121
      %124 = dma.hbm_to_vmem [thread:$0]  %s9, 16, %s122, [#allocation15]
    $region41: #{tpu_custom_call.1} parent=1 // pred_fallthru
      _
    // Predicated region
    $region42: #{tpu_custom_call.1} parent=1 // pred_check
      _
    $region43: #{tpu_custom_call.1} parent=1 // pred_check_branch
      %126 = sbr.rel (0) target = $region45
    $region44: #{tpu_custom_call.1} parent=1 // pred_region
      _
    $region45: #{tpu_custom_call.1} parent=1 // pred_fallthru
      _
    // Predicated region
    $region46: #{tpu_custom_call.1} parent=1 // pred_check
      _
    $region47: #{tpu_custom_call.1} parent=1 // pred_check_branch
      %128 = sbr.rel (0) target = $region49
    $region48: #{tpu_custom_call.1} parent=1 // pred_region
      _
    $region49: #{tpu_custom_call.1} parent=1 // pred_fallthru
      _
    // Predicated region
    $region50: #{tpu_custom_call.1} parent=1 // pred_check
      _
    $region51: #{tpu_custom_call.1} parent=1 // pred_check_branch
      %130 = sbr.rel (0) target = $region53
    $region52: #{tpu_custom_call.1} parent=1 // pred_region
      %s132 = ssub.s32 256, 256
      %133 = vsyncadd [#allocation15], %s132
      %s134 = sshll.u32 [#allocation16], 4
      %s135 = int_to_ptr.vmem [resolvable:$true] %s134
      %140 = dma.hbm_to_vmem [thread:$0]  %s12, 256, %s135, [#allocation15], 128, 128, 8
    $region53: #{tpu_custom_call.1} parent=1 // pred_fallthru
      _
    // Predicated region
    $region54: #{tpu_custom_call.1} parent=1 // pred_check
      _
    $region55: #{tpu_custom_call.1} parent=1 // pred_check_branch
      %142 = sbr.rel (0) target = $region57
    $region56: #{tpu_custom_call.1} parent=1 // pred_region
      _
    $region57: #{tpu_custom_call.1} parent=1 // pred_fallthru
      _
    // Predicated region
    $region58: #{tpu_custom_call.1} parent=1 // pred_check
      _
    $region59: #{tpu_custom_call.1} parent=1 // pred_check_branch
      %144 = sbr.rel (0) target = $region61
    $region60: #{tpu_custom_call.1} parent=1 // pred_region
      %s146 = ssub.s32 256, 256
      %147 = vsyncadd [#allocation18], %s146
      %s148 = sshll.u32 [#allocation17], 4
      %s149 = int_to_ptr.vmem [resolvable:$true] %s148
      %154 = dma.hbm_to_vmem [thread:$0]  %s14, 256, %s149, [#allocation18], 128, 128, 8
    $region61: #{tpu_custom_call.1} parent=1 // pred_fallthru
      _
    // Predicated region
    $region62: #{tpu_custom_call.1} parent=1 // pred_check
      _
    $region63: #{tpu_custom_call.1} parent=1 // pred_check_branch
      %156 = sbr.rel (0) target = $region65
    $region64: #{tpu_custom_call.1} parent=1 // pred_region
      _
    $region65: #{tpu_custom_call.1} parent=1 // pred_fallthru
      _
    // Predicated region
    $region66: #{tpu_custom_call.1} parent=1 // pred_check
      _
    $region67: #{tpu_custom_call.1} parent=1 // pred_check_branch
      %158 = sbr.rel (0) target = $region69
    $region68: #{tpu_custom_call.1} parent=1 // pred_region
      %s160 = ssub.s32 256, 256
      %161 = vsyncadd [#allocation18], %s160
      %s162 = sshll.u32 [#allocation19], 4
      %s163 = int_to_ptr.vmem [resolvable:$true] %s162
      %168 = dma.hbm_to_vmem [thread:$0]  %s16, 256, %s163, [#allocation18], 128, 128, 8
    $region69: #{tpu_custom_call.1} parent=1 // pred_fallthru
      _
    // Predicated region
    $region70: #{tpu_custom_call.1} parent=1 // pred_check
      _
    $region71: #{tpu_custom_call.1} parent=1 // pred_check_branch
      %170 = sbr.rel (0) target = $region73
    $region72: #{tpu_custom_call.1} parent=1 // pred_region
      _
    $region73: #{tpu_custom_call.1} parent=1 // pred_fallthru
      _
    // Predicated region
    $region74: #{tpu_custom_call.1} parent=1 // pred_check
      _
    $region75: #{tpu_custom_call.1} parent=1 // pred_check_branch
      %172 = sbr.rel (0) target = $region77
    $region76: #{tpu_custom_call.1} parent=1 // pred_region
      %173 = dma.done [#allocation3], 128
    $region77: #{tpu_custom_call.1} parent=1 // pred_fallthru
      _
    // Predicated region
    $region78: #{tpu_custom_call.1} parent=1 // pred_check
      _
    $region79: #{tpu_custom_call.1} parent=1 // pred_check_branch
      %175 = sbr.rel (0) target = $region81
    $region80: #{tpu_custom_call.1} parent=1 // pred_region
      %176 = dma.done [#allocation6], 128
    $region81: #{tpu_custom_call.1} parent=1 // pred_fallthru
      _
    // Predicated region
    $region82: #{tpu_custom_call.1} parent=1 // pred_check
      _
    $region83: #{tpu_custom_call.1} parent=1 // pred_check_branch
      %178 = sbr.rel (0) target = $region85
    $region84: #{tpu_custom_call.1} parent=1 // pred_region
      %179 = dma.done [#allocation6], 256
    $region85: #{tpu_custom_call.1} parent=1 // pred_fallthru
      _
    // Predicated region
    $region86: #{tpu_custom_call.1} parent=1 // pred_check
      _
    $region87: #{tpu_custom_call.1} parent=1 // pred_check_branch
      %181 = sbr.rel (0) target = $region89
    $region88: #{tpu_custom_call.1} parent=1 // pred_region
      %182 = dma.done [#allocation9], 256
    $region89: #{tpu_custom_call.1} parent=1 // pred_fallthru
      _
    // Predicated region
    $region90: #{tpu_custom_call.1} parent=1 // pred_check
      _
    $region91: #{tpu_custom_call.1} parent=1 // pred_check_branch
      %184 = sbr.rel (0) target = $region93
    $region92: #{tpu_custom_call.1} parent=1 // pred_region
      %185 = dma.done [#allocation9], 256
    $region93: #{tpu_custom_call.1} parent=1 // pred_fallthru
      _
    // Predicated region
    $region94: #{tpu_custom_call.1} parent=1 // pred_check
      _
    $region95: #{tpu_custom_call.1} parent=1 // pred_check_branch
      %187 = sbr.rel (0) target = $region97
    $region96: #{tpu_custom_call.1} parent=1 // pred_region
      %188 = dma.done [#allocation12], 16
    $region97: #{tpu_custom_call.1} parent=1 // pred_fallthru
      _
    // Predicated region
    $region98: #{tpu_custom_call.1} parent=1 // pred_check
      _
    $region99: #{tpu_custom_call.1} parent=1 // pred_check_branch
      %190 = sbr.rel (0) target = $region101
    $region100: #{tpu_custom_call.1} parent=1 // pred_region
      %191 = dma.done [#allocation12], 256
    $region101: #{tpu_custom_call.1} parent=1 // pred_fallthru
      _
    // Predicated region
    $region102: #{tpu_custom_call.1} parent=1 // pred_check
      _
    $region103: #{tpu_custom_call.1} parent=1 // pred_check_branch
      %193 = sbr.rel (0) target = $region105
    $region104: #{tpu_custom_call.1} parent=1 // pred_region
      %194 = dma.done [#allocation15], 16
    $region105: #{tpu_custom_call.1} parent=1 // pred_fallthru
      _
    // Predicated region
    $region106: #{tpu_custom_call.1} parent=1 // pred_check
      _
    $region107: #{tpu_custom_call.1} parent=1 // pred_check_branch
      %196 = sbr.rel (0) target = $region109
    $region108: #{tpu_custom_call.1} parent=1 // pred_region
      %197 = dma.done [#allocation15], 256
    $region109: #{tpu_custom_call.1} parent=1 // pred_fallthru
      _
    // Predicated region
    $region110: #{tpu_custom_call.1} parent=1 // pred_check
      _
    $region111: #{tpu_custom_call.1} parent=1 // pred_check_branch
      %199 = sbr.rel (0) target = $region113
    $region112: #{tpu_custom_call.1} parent=1 // pred_region
      %200 = dma.done [#allocation18], 256
    $region113: #{tpu_custom_call.1} parent=1 // pred_fallthru
      _
    // Predicated region
    $region114: #{tpu_custom_call.1} parent=1 // pred_check
      _
    $region115: #{tpu_custom_call.1} parent=1 // pred_check_branch
      %202 = sbr.rel (0) target = $region117
    $region116: #{tpu_custom_call.1} parent=1 // pred_region
      %203 = dma.done [#allocation18], 256
    $region117: #{tpu_custom_call.1} parent=1 // pred_fallthru
      _
    %v204 = vld [vmem:[#allocation2] sm:$0xff]
    %v205 = vld [vmem:[#allocation5] sm:$0xff]
    %v206 = vld [vmem:[#allocation7] sm:$0xff]
    %v207 = vld [vmem:[#allocation7 + $0x8] sm:$0xff]
    %v208 = vld [vmem:[%s3] sm:$0x1]
    %v209 = vld [vmem:[#allocation8] sm:$0xff]
    %v210 = vld [vmem:[#allocation8 + $0x8] sm:$0xff]
    %v211 = vld [vmem:[%s5] sm:$0x1]
    %v212 = vld [vmem:[#allocation10] sm:$0xff]
    %v213 = vld [vmem:[#allocation10 + $0x8] sm:$0xff]
    %v214 = vld [vmem:[#allocation11] sm:$0x1]
    %v215 = vld [vmem:[#allocation13] sm:$0xff]
    %v216 = vld [vmem:[#allocation13 + $0x8] sm:$0xff]
    %v217 = vld [vmem:[#allocation14] sm:$0x1]
    %v219 = vlaneseq
    %v220 = vshrl.u32 %v219, 7
    %v221 = vsub.s32 0, %v220
    %v222 = vrot.slane %v208, %v221
    %vm224 = vcmask 130048
    %v226 = vsel %vm224, %v204, 0
    %228 = vmatprep.subr.mxu0 0.0
    %229 = vmatpush1.msra.mxu0 0.0
    %230 = vmatprep.subr.mxu0 0.0
    %231 = vmatpush1.msra.mxu0 0.0
    %232 = vmatprep.subr.mxu0 0.0
    %233 = vmatpush1.msra.mxu0 0.0
    %234 = vmatprep.subr.mxu0 0.0
    %235 = vmatpush1.msra.mxu0 0.0
    %236 = vmatprep.subr.mxu0 0.0
    %237 = vmatpush1.msra.mxu0 0.0
    %238 = vmatprep.subr.mxu0 0.0
    %239 = vmatpush1.msra.mxu0 0.0
    %240 = vmatprep.subr.mxu0 0.0
    %241 = vmatpush1.msra.mxu0 0.0
    %242 = vmatprep.subr.mxu0 0.0
    %243 = vmatpush1.msra.mxu0 0.0
    %244 = vmatprep.subr.mxu0 0.0
    %245 = vmatpush1.msra.mxu0 0.0
    %246 = vmatprep.subr.mxu0 0.0
    %247 = vmatpush1.msra.mxu0 0.0
    %248 = vmatprep.subr.mxu0 0.0
    %249 = vmatpush1.msra.mxu0 0.0
    %250 = vmatprep.subr.mxu0 0.0
    %251 = vmatpush1.msra.mxu0 0.0
    %252 = vmatprep.subr.mxu0 0.0
    %253 = vmatpush1.msra.mxu0 0.0
    %254 = vmatprep.subr.mxu0 0.0
    %255 = vmatpush1.msra.mxu0 0.0
    %256 = vmatprep.subr.mxu0 0.0
    %v257 = vand.u32 %v207, 4294901760
    %258 = vmatpush1.msra.mxu0 %v257
    %259 = vmatprep.subr.mxu0 0.0
    %v260 = vand.u32 %v206, 4294901760
    %261 = vmatpush1.msra.mxu0 %v260
    %262 = vmatprep.subr.mxu0 0.0
    %263 = vmatpush2.msra.mxu0 0.0
    %264 = vmatprep.subr.mxu0 0.0
    %265 = vmatpush2.msra.mxu0 0.0
    %266 = vmatprep.subr.mxu0 0.0
    %267 = vmatpush2.msra.mxu0 0.0
    %268 = vmatprep.subr.mxu0 0.0
    %269 = vmatpush2.msra.mxu0 0.0
    %270 = vmatprep.subr.mxu0 0.0
    %271 = vmatpush2.msra.mxu0 0.0
    %272 = vmatprep.subr.mxu0 0.0
    %273 = vmatpush2.msra.mxu0 0.0
    %274 = vmatprep.subr.mxu0 0.0
    %275 = vmatpush2.msra.mxu0 0.0
    %276 = vmatprep.subr.mxu0 0.0
    %277 = vmatpush2.msra.mxu0 0.0
    %278 = vmatprep.subr.mxu0 0.0
    %279 = vmatpush2.msra.mxu0 0.0
    %280 = vmatprep.subr.mxu0 0.0
    %281 = vmatpush2.msra.mxu0 0.0
    %282 = vmatprep.subr.mxu0 0.0
    %283 = vmatpush2.msra.mxu0 0.0
    %284 = vmatprep.subr.mxu0 0.0
    %285 = vmatpush2.msra.mxu0 0.0
    %286 = vmatprep.subr.mxu0 0.0
    %287 = vmatpush2.msra.mxu0 0.0
    %288 = vmatprep.subr.mxu0 0.0
    %289 = vmatpush2.msra.mxu0 0.0
    %290 = vmatprep.subr.mxu0 0.0
    %291 = vmatpush2.msra.mxu0 0.0
    %292 = vmatprep.subr.mxu0 0.0
    %293 = vmatpush2.msra.mxu0 0.0
    %294 = vmatprep.mubr.f32.mxu0 0.0
    %v295 = vand.u32 %v226, 4294901760
    %v296 = vsub.f32 %v226, %v295
    %v297 = vand.u32 %v296, 4294901760
    %v298 = vsub.f32 %v296, %v297
    %v299 = vand.u32 %v298, 4294901760
    %300 = vmatmul.mubr.f32.gmra.mxu0 %v299
    %v301 = vpop.f32.mrf.mxu0
    %v302 = vadd.f32 %v222, %v301
    %v303 = vpop.f32.mrf.mxu0
    %304 = vdwg.mxu0
    %305 = vmatprep.subr.mxu0 0.0
    %306 = vmatpush1.msra.mxu0 0.0
    %307 = vmatprep.subr.mxu0 0.0
    %308 = vmatpush1.msra.mxu0 0.0
    %309 = vmatprep.subr.mxu0 0.0
    %310 = vmatpush1.msra.mxu0 0.0
    %311 = vmatprep.subr.mxu0 0.0
    %312 = vmatpush1.msra.mxu0 0.0
    %313 = vmatprep.subr.mxu0 0.0
    %314 = vmatpush1.msra.mxu0 0.0
    %315 = vmatprep.subr.mxu0 0.0
    %316 = vmatpush1.msra.mxu0 0.0
    %317 = vmatprep.subr.mxu0 0.0
    %318 = vmatpush1.msra.mxu0 0.0
    %319 = vmatprep.subr.mxu0 0.0
    %320 = vmatpush1.msra.mxu0 0.0
    %321 = vmatprep.subr.mxu0 0.0
    %322 = vmatpush1.msra.mxu0 0.0
    %323 = vmatprep.subr.mxu0 0.0
    %324 = vmatpush1.msra.mxu0 0.0
    %325 = vmatprep.subr.mxu0 0.0
    %326 = vmatpush1.msra.mxu0 0.0
    %327 = vmatprep.subr.mxu0 0.0
    %328 = vmatpush1.msra.mxu0 0.0
    %329 = vmatprep.subr.mxu0 0.0
    %330 = vmatpush1.msra.mxu0 0.0
    %331 = vmatprep.subr.mxu0 0.0
    %332 = vmatpush1.msra.mxu0 0.0
    %333 = vmatprep.subr.mxu0 0.0
    %v334 = vand.u32 %v207, 4294901760
    %v335 = vsub.f32 %v207, %v334
    %v336 = vand.u32 %v335, 4294901760
    %v337 = vsub.f32 %v335, %v336
    %v338 = vand.u32 %v337, 4294901760
    %339 = vmatpush1.msra.mxu0 %v338
    %340 = vmatprep.subr.mxu0 0.0
    %v341 = vand.u32 %v206, 4294901760
    %v342 = vsub.f32 %v206, %v341
    %v343 = vand.u32 %v342, 4294901760
    %v344 = vsub.f32 %v342, %v343
    %v345 = vand.u32 %v344, 4294901760
    %346 = vmatpush1.msra.mxu0 %v345
    %347 = vmatprep.subr.mxu0 0.0
    %348 = vmatpush2.msra.mxu0 0.0
    %349 = vmatprep.subr.mxu0 0.0
    %350 = vmatpush2.msra.mxu0 0.0
    %351 = vmatprep.subr.mxu0 0.0
    %352 = vmatpush2.msra.mxu0 0.0
    %353 = vmatprep.subr.mxu0 0.0
    %354 = vmatpush2.msra.mxu0 0.0
    %355 = vmatprep.subr.mxu0 0.0
    %356 = vmatpush2.msra.mxu0 0.0
    %357 = vmatprep.subr.mxu0 0.0
    %358 = vmatpush2.msra.mxu0 0.0
    %359 = vmatprep.subr.mxu0 0.0
    %360 = vmatpush2.msra.mxu0 0.0
    %361 = vmatprep.subr.mxu0 0.0
    %362 = vmatpush2.msra.mxu0 0.0
    %363 = vmatprep.subr.mxu0 0.0
    %364 = vmatpush2.msra.mxu0 0.0
    %365 = vmatprep.subr.mxu0 0.0
    %366 = vmatpush2.msra.mxu0 0.0
    %367 = vmatprep.subr.mxu0 0.0
    %368 = vmatpush2.msra.mxu0 0.0
    %369 = vmatprep.subr.mxu0 0.0
    %370 = vmatpush2.msra.mxu0 0.0
    %371 = vmatprep.subr.mxu0 0.0
    %372 = vmatpush2.msra.mxu0 0.0
    %373 = vmatprep.subr.mxu0 0.0
    %374 = vmatpush2.msra.mxu0 0.0
    %375 = vmatprep.subr.mxu0 0.0
    %376 = vmatpush2.msra.mxu0 0.0
    %377 = vmatprep.subr.mxu0 0.0
    %378 = vmatpush2.msra.mxu0 0.0
    %379 = vmatprep.mubr.f32.mxu0 0.0
    %v380 = vand.u32 %v226, 4294901760
    %381 = vmatmul.mubr.f32.gmra.mxu0 %v380
    %v382 = vpop.f32.mrf.mxu0
    %v383 = vadd.f32 %v302, %v382
    %v384 = vpop.f32.mrf.mxu0
    %385 = vdwg.mxu0
    %386 = vmatprep.subr.mxu0 0.0
    %387 = vmatpush1.msra.mxu0 0.0
    %388 = vmatprep.subr.mxu0 0.0
    %389 = vmatpush1.msra.mxu0 0.0
    %390 = vmatprep.subr.mxu0 0.0
    %391 = vmatpush1.msra.mxu0 0.0
    %392 = vmatprep.subr.mxu0 0.0
    %393 = vmatpush1.msra.mxu0 0.0
    %394 = vmatprep.subr.mxu0 0.0
    %395 = vmatpush1.msra.mxu0 0.0
    %396 = vmatprep.subr.mxu0 0.0
    %397 = vmatpush1.msra.mxu0 0.0
    %398 = vmatprep.subr.mxu0 0.0
    %399 = vmatpush1.msra.mxu0 0.0
    %400 = vmatprep.subr.mxu0 0.0
    %401 = vmatpush1.msra.mxu0 0.0
    %402 = vmatprep.subr.mxu0 0.0
    %403 = vmatpush1.msra.mxu0 0.0
    %404 = vmatprep.subr.mxu0 0.0
    %405 = vmatpush1.msra.mxu0 0.0
    %406 = vmatprep.subr.mxu0 0.0
    %407 = vmatpush1.msra.mxu0 0.0
    %408 = vmatprep.subr.mxu0 0.0
    %409 = vmatpush1.msra.mxu0 0.0
    %410 = vmatprep.subr.mxu0 0.0
    %411 = vmatpush1.msra.mxu0 0.0
    %412 = vmatprep.subr.mxu0 0.0
    %413 = vmatpush1.msra.mxu0 0.0
    %414 = vmatprep.subr.mxu0 0.0
    %v415 = vand.u32 %v207, 4294901760
    %v416 = vsub.f32 %v207, %v415
    %417 = vmatpush1.msra.mxu0 %v416
    %418 = vmatprep.subr.mxu0 0.0
    %v419 = vand.u32 %v206, 4294901760
    %v420 = vsub.f32 %v206, %v419
    %421 = vmatpush1.msra.mxu0 %v420
    %422 = vmatprep.subr.mxu0 0.0
    %423 = vmatpush2.msra.mxu0 0.0
    %424 = vmatprep.subr.mxu0 0.0
    %425 = vmatpush2.msra.mxu0 0.0
    %426 = vmatprep.subr.mxu0 0.0
    %427 = vmatpush2.msra.mxu0 0.0
    %428 = vmatprep.subr.mxu0 0.0
    %429 = vmatpush2.msra.mxu0 0.0
    %430 = vmatprep.subr.mxu0 0.0
    %431 = vmatpush2.msra.mxu0 0.0
    %432 = vmatprep.subr.mxu0 0.0
    %433 = vmatpush2.msra.mxu0 0.0
    %434 = vmatprep.subr.mxu0 0.0
    %435 = vmatpush2.msra.mxu0 0.0
    %436 = vmatprep.subr.mxu0 0.0
    %437 = vmatpush2.msra.mxu0 0.0
    %438 = vmatprep.subr.mxu0 0.0
    %439 = vmatpush2.msra.mxu0 0.0
    %440 = vmatprep.subr.mxu0 0.0
    %441 = vmatpush2.msra.mxu0 0.0
    %442 = vmatprep.subr.mxu0 0.0
    %443 = vmatpush2.msra.mxu0 0.0
    %444 = vmatprep.subr.mxu0 0.0
    %445 = vmatpush2.msra.mxu0 0.0
    %446 = vmatprep.subr.mxu0 0.0
    %447 = vmatpush2.msra.mxu0 0.0
    %448 = vmatprep.subr.mxu0 0.0
    %449 = vmatpush2.msra.mxu0 0.0
    %450 = vmatprep.subr.mxu0 0.0
    %451 = vmatpush2.msra.mxu0 0.0
    %452 = vmatprep.subr.mxu0 0.0
    %453 = vmatpush2.msra.mxu0 0.0
    %454 = vmatprep.mubr.f32.mxu0 0.0
    %v455 = vand.u32 %v226, 4294901760
    %v456 = vsub.f32 %v226, %v455
    %457 = vmatmul.mubr.f32.gmra.mxu0 %v456
    %v458 = vpop.f32.mrf.mxu0
    %v459 = vadd.f32 %v383, %v458
    %v460 = vpop.f32.mrf.mxu0
    %461 = vdwg.mxu0
    %462 = vmatprep.subr.mxu0 0.0
    %463 = vmatpush1.msra.mxu0 0.0
    %464 = vmatprep.subr.mxu0 0.0
    %465 = vmatpush1.msra.mxu0 0.0
    %466 = vmatprep.subr.mxu0 0.0
    %467 = vmatpush1.msra.mxu0 0.0
    %468 = vmatprep.subr.mxu0 0.0
    %469 = vmatpush1.msra.mxu0 0.0
    %470 = vmatprep.subr.mxu0 0.0
    %471 = vmatpush1.msra.mxu0 0.0
    %472 = vmatprep.subr.mxu0 0.0
    %473 = vmatpush1.msra.mxu0 0.0
    %474 = vmatprep.subr.mxu0 0.0
    %475 = vmatpush1.msra.mxu0 0.0
    %476 = vmatprep.subr.mxu0 0.0
    %477 = vmatpush1.msra.mxu0 0.0
    %478 = vmatprep.subr.mxu0 0.0
    %479 = vmatpush1.msra.mxu0 0.0
    %480 = vmatprep.subr.mxu0 0.0
    %481 = vmatpush1.msra.mxu0 0.0
    %482 = vmatprep.subr.mxu0 0.0
    %483 = vmatpush1.msra.mxu0 0.0
    %484 = vmatprep.subr.mxu0 0.0
    %485 = vmatpush1.msra.mxu0 0.0
    %486 = vmatprep.subr.mxu0 0.0
    %487 = vmatpush1.msra.mxu0 0.0
    %488 = vmatprep.subr.mxu0 0.0
    %489 = vmatpush1.msra.mxu0 0.0
    %490 = vmatprep.subr.mxu0 0.0
    %v491 = vand.u32 %v207, 4294901760
    %492 = vmatpush1.msra.mxu0 %v491
    %493 = vmatprep.subr.mxu0 0.0
    %v494 = vand.u32 %v206, 4294901760
    %495 = vmatpush1.msra.mxu0 %v494
    %496 = vmatprep.subr.mxu0 0.0
    %497 = vmatpush2.msra.mxu0 0.0
    %498 = vmatprep.subr.mxu0 0.0
    %499 = vmatpush2.msra.mxu0 0.0
    %500 = vmatprep.subr.mxu0 0.0
    %501 = vmatpush2.msra.mxu0 0.0
    %502 = vmatprep.subr.mxu0 0.0
    %503 = vmatpush2.msra.mxu0 0.0
    %504 = vmatprep.subr.mxu0 0.0
    %505 = vmatpush2.msra.mxu0 0.0
    %506 = vmatprep.subr.mxu0 0.0
    %507 = vmatpush2.msra.mxu0 0.0
    %508 = vmatprep.subr.mxu0 0.0
    %509 = vmatpush2.msra.mxu0 0.0
    %510 = vmatprep.subr.mxu0 0.0
    %511 = vmatpush2.msra.mxu0 0.0
    %512 = vmatprep.subr.mxu0 0.0
    %513 = vmatpush2.msra.mxu0 0.0
    %514 = vmatprep.subr.mxu0 0.0
    %515 = vmatpush2.msra.mxu0 0.0
    %516 = vmatprep.subr.mxu0 0.0
    %517 = vmatpush2.msra.mxu0 0.0
    %518 = vmatprep.subr.mxu0 0.0
    %519 = vmatpush2.msra.mxu0 0.0
    %520 = vmatprep.subr.mxu0 0.0
    %521 = vmatpush2.msra.mxu0 0.0
    %522 = vmatprep.subr.mxu0 0.0
    %523 = vmatpush2.msra.mxu0 0.0
    %524 = vmatprep.subr.mxu0 0.0
    %525 = vmatpush2.msra.mxu0 0.0
    %526 = vmatprep.subr.mxu0 0.0
    %527 = vmatpush2.msra.mxu0 0.0
    %528 = vmatprep.mubr.f32.mxu0 0.0
    %v529 = vand.u32 %v226, 4294901760
    %v530 = vsub.f32 %v226, %v529
    %v531 = vand.u32 %v530, 4294901760
    %532 = vmatmul.mubr.f32.gmra.mxu0 %v531
    %v533 = vpop.f32.mrf.mxu0
    %v534 = vadd.f32 %v459, %v533
    %v535 = vpop.f32.mrf.mxu0
    %536 = vdwg.mxu0
    %537 = vmatprep.subr.mxu0 0.0
    %538 = vmatpush1.msra.mxu0 0.0
    %539 = vmatprep.subr.mxu0 0.0
    %540 = vmatpush1.msra.mxu0 0.0
    %541 = vmatprep.subr.mxu0 0.0
    %542 = vmatpush1.msra.mxu0 0.0
    %543 = vmatprep.subr.mxu0 0.0
    %544 = vmatpush1.msra.mxu0 0.0
    %545 = vmatprep.subr.mxu0 0.0
    %546 = vmatpush1.msra.mxu0 0.0
    %547 = vmatprep.subr.mxu0 0.0
    %548 = vmatpush1.msra.mxu0 0.0
    %549 = vmatprep.subr.mxu0 0.0
    %550 = vmatpush1.msra.mxu0 0.0
    %551 = vmatprep.subr.mxu0 0.0
    %552 = vmatpush1.msra.mxu0 0.0
    %553 = vmatprep.subr.mxu0 0.0
    %554 = vmatpush1.msra.mxu0 0.0
    %555 = vmatprep.subr.mxu0 0.0
    %556 = vmatpush1.msra.mxu0 0.0
    %557 = vmatprep.subr.mxu0 0.0
    %558 = vmatpush1.msra.mxu0 0.0
    %559 = vmatprep.subr.mxu0 0.0
    %560 = vmatpush1.msra.mxu0 0.0
    %561 = vmatprep.subr.mxu0 0.0
    %562 = vmatpush1.msra.mxu0 0.0
    %563 = vmatprep.subr.mxu0 0.0
    %564 = vmatpush1.msra.mxu0 0.0
    %565 = vmatprep.subr.mxu0 0.0
    %v566 = vand.u32 %v207, 4294901760
    %v567 = vsub.f32 %v207, %v566
    %v568 = vand.u32 %v567, 4294901760
    %569 = vmatpush1.msra.mxu0 %v568
    %570 = vmatprep.subr.mxu0 0.0
    %v571 = vand.u32 %v206, 4294901760
    %v572 = vsub.f32 %v206, %v571
    %v573 = vand.u32 %v572, 4294901760
    %574 = vmatpush1.msra.mxu0 %v573
    %575 = vmatprep.subr.mxu0 0.0
    %576 = vmatpush2.msra.mxu0 0.0
    %577 = vmatprep.subr.mxu0 0.0
    %578 = vmatpush2.msra.mxu0 0.0
    %579 = vmatprep.subr.mxu0 0.0
    %580 = vmatpush2.msra.mxu0 0.0
    %581 = vmatprep.subr.mxu0 0.0
    %582 = vmatpush2.msra.mxu0 0.0
    %583 = vmatprep.subr.mxu0 0.0
    %584 = vmatpush2.msra.mxu0 0.0
    %585 = vmatprep.subr.mxu0 0.0
    %586 = vmatpush2.msra.mxu0 0.0
    %587 = vmatprep.subr.mxu0 0.0
    %588 = vmatpush2.msra.mxu0 0.0
    %589 = vmatprep.subr.mxu0 0.0
    %590 = vmatpush2.msra.mxu0 0.0
    %591 = vmatprep.subr.mxu0 0.0
    %592 = vmatpush2.msra.mxu0 0.0
    %593 = vmatprep.subr.mxu0 0.0
    %594 = vmatpush2.msra.mxu0 0.0
    %595 = vmatprep.subr.mxu0 0.0
    %596 = vmatpush2.msra.mxu0 0.0
    %597 = vmatprep.subr.mxu0 0.0
    %598 = vmatpush2.msra.mxu0 0.0
    %599 = vmatprep.subr.mxu0 0.0
    %600 = vmatpush2.msra.mxu0 0.0
    %601 = vmatprep.subr.mxu0 0.0
    %602 = vmatpush2.msra.mxu0 0.0
    %603 = vmatprep.subr.mxu0 0.0
    %604 = vmatpush2.msra.mxu0 0.0
    %605 = vmatprep.subr.mxu0 0.0
    %606 = vmatpush2.msra.mxu0 0.0
    %607 = vmatprep.mubr.f32.mxu0 0.0
    %v608 = vand.u32 %v226, 4294901760
    %609 = vmatmul.mubr.f32.gmra.mxu0 %v608
    %v610 = vpop.f32.mrf.mxu0
    %v611 = vadd.f32 %v534, %v610
    %v612 = vpop.f32.mrf.mxu0
    %613 = vdwg.mxu0
    %614 = vmatprep.subr.mxu0 0.0
    %615 = vmatpush1.msra.mxu0 0.0
    %616 = vmatprep.subr.mxu0 0.0
    %617 = vmatpush1.msra.mxu0 0.0
    %618 = vmatprep.subr.mxu0 0.0
    %619 = vmatpush1.msra.mxu0 0.0
    %620 = vmatprep.subr.mxu0 0.0
    %621 = vmatpush1.msra.mxu0 0.0
    %622 = vmatprep.subr.mxu0 0.0
    %623 = vmatpush1.msra.mxu0 0.0
    %624 = vmatprep.subr.mxu0 0.0
    %625 = vmatpush1.msra.mxu0 0.0
    %626 = vmatprep.subr.mxu0 0.0
    %627 = vmatpush1.msra.mxu0 0.0
    %628 = vmatprep.subr.mxu0 0.0
    %629 = vmatpush1.msra.mxu0 0.0
    %630 = vmatprep.subr.mxu0 0.0
    %631 = vmatpush1.msra.mxu0 0.0
    %632 = vmatprep.subr.mxu0 0.0
    %633 = vmatpush1.msra.mxu0 0.0
    %634 = vmatprep.subr.mxu0 0.0
    %635 = vmatpush1.msra.mxu0 0.0
    %636 = vmatprep.subr.mxu0 0.0
    %637 = vmatpush1.msra.mxu0 0.0
    %638 = vmatprep.subr.mxu0 0.0
    %639 = vmatpush1.msra.mxu0 0.0
    %640 = vmatprep.subr.mxu0 0.0
    %641 = vmatpush1.msra.mxu0 0.0
    %642 = vmatprep.subr.mxu0 0.0
    %v643 = vand.u32 %v207, 4294901760
    %644 = vmatpush1.msra.mxu0 %v643
    %645 = vmatprep.subr.mxu0 0.0
    %v646 = vand.u32 %v206, 4294901760
    %647 = vmatpush1.msra.mxu0 %v646
    %648 = vmatprep.subr.mxu0 0.0
    %649 = vmatpush2.msra.mxu0 0.0
    %650 = vmatprep.subr.mxu0 0.0
    %651 = vmatpush2.msra.mxu0 0.0
    %652 = vmatprep.subr.mxu0 0.0
    %653 = vmatpush2.msra.mxu0 0.0
    %654 = vmatprep.subr.mxu0 0.0
    %655 = vmatpush2.msra.mxu0 0.0
    %656 = vmatprep.subr.mxu0 0.0
    %657 = vmatpush2.msra.mxu0 0.0
    %658 = vmatprep.subr.mxu0 0.0
    %659 = vmatpush2.msra.mxu0 0.0
    %660 = vmatprep.subr.mxu0 0.0
    %661 = vmatpush2.msra.mxu0 0.0
    %662 = vmatprep.subr.mxu0 0.0
    %663 = vmatpush2.msra.mxu0 0.0
    %664 = vmatprep.subr.mxu0 0.0
    %665 = vmatpush2.msra.mxu0 0.0
    %666 = vmatprep.subr.mxu0 0.0
    %667 = vmatpush2.msra.mxu0 0.0
    %668 = vmatprep.subr.mxu0 0.0
    %669 = vmatpush2.msra.mxu0 0.0
    %670 = vmatprep.subr.mxu0 0.0
    %671 = vmatpush2.msra.mxu0 0.0
    %672 = vmatprep.subr.mxu0 0.0
    %673 = vmatpush2.msra.mxu0 0.0
    %674 = vmatprep.subr.mxu0 0.0
    %675 = vmatpush2.msra.mxu0 0.0
    %676 = vmatprep.subr.mxu0 0.0
    %677 = vmatpush2.msra.mxu0 0.0
    %678 = vmatprep.subr.mxu0 0.0
    %679 = vmatpush2.msra.mxu0 0.0
    %680 = vmatprep.mubr.f32.mxu0 0.0
    %v681 = vand.u32 %v226, 4294901760
    %682 = vmatmul.mubr.f32.gmra.mxu0 %v681
    %v683 = vpop.f32.mrf.mxu0
    %v684 = vadd.f32 %v611, %v683
    %v685 = vpop.f32.mrf.mxu0
    %686 = vdwg.mxu0
    %v687 = vmax.f32 %v684, 0.0
    %v689 = vlaneseq
    %v690 = vshrl.u32 %v689, 7
    %v691 = vsub.s32 0, %v690
    %v692 = vrot.slane %v211, %v691
    %v695 = vsel %vm224, %v687, 0
    %697 = vmatprep.subr.mxu0 0.0
    %698 = vmatpush1.msra.mxu0 0.0
    %699 = vmatprep.subr.mxu0 0.0
    %700 = vmatpush1.msra.mxu0 0.0
    %701 = vmatprep.subr.mxu0 0.0
    %702 = vmatpush1.msra.mxu0 0.0
    %703 = vmatprep.subr.mxu0 0.0
    %704 = vmatpush1.msra.mxu0 0.0
    %705 = vmatprep.subr.mxu0 0.0
    %706 = vmatpush1.msra.mxu0 0.0
    %707 = vmatprep.subr.mxu0 0.0
    %708 = vmatpush1.msra.mxu0 0.0
    %709 = vmatprep.subr.mxu0 0.0
    %710 = vmatpush1.msra.mxu0 0.0
    %711 = vmatprep.subr.mxu0 0.0
    %712 = vmatpush1.msra.mxu0 0.0
    %713 = vmatprep.subr.mxu0 0.0
    %714 = vmatpush1.msra.mxu0 0.0
    %715 = vmatprep.subr.mxu0 0.0
    %716 = vmatpush1.msra.mxu0 0.0
    %717 = vmatprep.subr.mxu0 0.0
    %718 = vmatpush1.msra.mxu0 0.0
    %719 = vmatprep.subr.mxu0 0.0
    %720 = vmatpush1.msra.mxu0 0.0
    %721 = vmatprep.subr.mxu0 0.0
    %722 = vmatpush1.msra.mxu0 0.0
    %723 = vmatprep.subr.mxu0 0.0
    %724 = vmatpush1.msra.mxu0 0.0
    %725 = vmatprep.subr.mxu0 0.0
    %v726 = vand.u32 %v210, 4294901760
    %727 = vmatpush1.msra.mxu0 %v726
    %728 = vmatprep.subr.mxu0 0.0
    %v729 = vand.u32 %v209, 4294901760
    %730 = vmatpush1.msra.mxu0 %v729
    %731 = vmatprep.subr.mxu0 0.0
    %732 = vmatpush2.msra.mxu0 0.0
    %733 = vmatprep.subr.mxu0 0.0
    %734 = vmatpush2.msra.mxu0 0.0
    %735 = vmatprep.subr.mxu0 0.0
    %736 = vmatpush2.msra.mxu0 0.0
    %737 = vmatprep.subr.mxu0 0.0
    %738 = vmatpush2.msra.mxu0 0.0
    %739 = vmatprep.subr.mxu0 0.0
    %740 = vmatpush2.msra.mxu0 0.0
    %741 = vmatprep.subr.mxu0 0.0
    %742 = vmatpush2.msra.mxu0 0.0
    %743 = vmatprep.subr.mxu0 0.0
    %744 = vmatpush2.msra.mxu0 0.0
    %745 = vmatprep.subr.mxu0 0.0
    %746 = vmatpush2.msra.mxu0 0.0
    %747 = vmatprep.subr.mxu0 0.0
    %748 = vmatpush2.msra.mxu0 0.0
    %749 = vmatprep.subr.mxu0 0.0
    %750 = vmatpush2.msra.mxu0 0.0
    %751 = vmatprep.subr.mxu0 0.0
    %752 = vmatpush2.msra.mxu0 0.0
    %753 = vmatprep.subr.mxu0 0.0
    %754 = vmatpush2.msra.mxu0 0.0
    %755 = vmatprep.subr.mxu0 0.0
    %756 = vmatpush2.msra.mxu0 0.0
    %757 = vmatprep.subr.mxu0 0.0
    %758 = vmatpush2.msra.mxu0 0.0
    %759 = vmatprep.subr.mxu0 0.0
    %760 = vmatpush2.msra.mxu0 0.0
    %761 = vmatprep.subr.mxu0 0.0
    %762 = vmatpush2.msra.mxu0 0.0
    %763 = vmatprep.mubr.f32.mxu0 0.0
    %v764 = vand.u32 %v695, 4294901760
    %v765 = vsub.f32 %v695, %v764
    %v766 = vand.u32 %v765, 4294901760
    %v767 = vsub.f32 %v765, %v766
    %v768 = vand.u32 %v767, 4294901760
    %769 = vmatmul.mubr.f32.gmra.mxu0 %v768
    %v770 = vpop.f32.mrf.mxu0
    %v771 = vadd.f32 %v692, %v770
    %v772 = vpop.f32.mrf.mxu0
    %773 = vdwg.mxu0
    %774 = vmatprep.subr.mxu0 0.0
    %775 = vmatpush1.msra.mxu0 0.0
    %776 = vmatprep.subr.mxu0 0.0
    %777 = vmatpush1.msra.mxu0 0.0
    %778 = vmatprep.subr.mxu0 0.0
    %779 = vmatpush1.msra.mxu0 0.0
    %780 = vmatprep.subr.mxu0 0.0
    %781 = vmatpush1.msra.mxu0 0.0
    %782 = vmatprep.subr.mxu0 0.0
    %783 = vmatpush1.msra.mxu0 0.0
    %784 = vmatprep.subr.mxu0 0.0
    %785 = vmatpush1.msra.mxu0 0.0
    %786 = vmatprep.subr.mxu0 0.0
    %787 = vmatpush1.msra.mxu0 0.0
    %788 = vmatprep.subr.mxu0 0.0
    %789 = vmatpush1.msra.mxu0 0.0
    %790 = vmatprep.subr.mxu0 0.0
    %791 = vmatpush1.msra.mxu0 0.0
    %792 = vmatprep.subr.mxu0 0.0
    %793 = vmatpush1.msra.mxu0 0.0
    %794 = vmatprep.subr.mxu0 0.0
    %795 = vmatpush1.msra.mxu0 0.0
    %796 = vmatprep.subr.mxu0 0.0
    %797 = vmatpush1.msra.mxu0 0.0
    %798 = vmatprep.subr.mxu0 0.0
    %799 = vmatpush1.msra.mxu0 0.0
    %800 = vmatprep.subr.mxu0 0.0
    %801 = vmatpush1.msra.mxu0 0.0
    %802 = vmatprep.subr.mxu0 0.0
    %v803 = vand.u32 %v210, 4294901760
    %v804 = vsub.f32 %v210, %v803
    %v805 = vand.u32 %v804, 4294901760
    %v806 = vsub.f32 %v804, %v805
    %v807 = vand.u32 %v806, 4294901760
    %808 = vmatpush1.msra.mxu0 %v807
    %809 = vmatprep.subr.mxu0 0.0
    %v810 = vand.u32 %v209, 4294901760
    %v811 = vsub.f32 %v209, %v810
    %v812 = vand.u32 %v811, 4294901760
    %v813 = vsub.f32 %v811, %v812
    %v814 = vand.u32 %v813, 4294901760
    %815 = vmatpush1.msra.mxu0 %v814
    %816 = vmatprep.subr.mxu0 0.0
    %817 = vmatpush2.msra.mxu0 0.0
    %818 = vmatprep.subr.mxu0 0.0
    %819 = vmatpush2.msra.mxu0 0.0
    %820 = vmatprep.subr.mxu0 0.0
    %821 = vmatpush2.msra.mxu0 0.0
    %822 = vmatprep.subr.mxu0 0.0
    %823 = vmatpush2.msra.mxu0 0.0
    %824 = vmatprep.subr.mxu0 0.0
    %825 = vmatpush2.msra.mxu0 0.0
    %826 = vmatprep.subr.mxu0 0.0
    %827 = vmatpush2.msra.mxu0 0.0
    %828 = vmatprep.subr.mxu0 0.0
    %829 = vmatpush2.msra.mxu0 0.0
    %830 = vmatprep.subr.mxu0 0.0
    %831 = vmatpush2.msra.mxu0 0.0
    %832 = vmatprep.subr.mxu0 0.0
    %833 = vmatpush2.msra.mxu0 0.0
    %834 = vmatprep.subr.mxu0 0.0
    %835 = vmatpush2.msra.mxu0 0.0
    %836 = vmatprep.subr.mxu0 0.0
    %837 = vmatpush2.msra.mxu0 0.0
    %838 = vmatprep.subr.mxu0 0.0
    %839 = vmatpush2.msra.mxu0 0.0
    %840 = vmatprep.subr.mxu0 0.0
    %841 = vmatpush2.msra.mxu0 0.0
    %842 = vmatprep.subr.mxu0 0.0
    %843 = vmatpush2.msra.mxu0 0.0
    %844 = vmatprep.subr.mxu0 0.0
    %845 = vmatpush2.msra.mxu0 0.0
    %846 = vmatprep.subr.mxu0 0.0
    %847 = vmatpush2.msra.mxu0 0.0
    %848 = vmatprep.mubr.f32.mxu0 0.0
    %v849 = vand.u32 %v695, 4294901760
    %850 = vmatmul.mubr.f32.gmra.mxu0 %v849
    %v851 = vpop.f32.mrf.mxu0
    %v852 = vadd.f32 %v771, %v851
    %v853 = vpop.f32.mrf.mxu0
    %854 = vdwg.mxu0
    %855 = vmatprep.subr.mxu0 0.0
    %856 = vmatpush1.msra.mxu0 0.0
    %857 = vmatprep.subr.mxu0 0.0
    %858 = vmatpush1.msra.mxu0 0.0
    %859 = vmatprep.subr.mxu0 0.0
    %860 = vmatpush1.msra.mxu0 0.0
    %861 = vmatprep.subr.mxu0 0.0
    %862 = vmatpush1.msra.mxu0 0.0
    %863 = vmatprep.subr.mxu0 0.0
    %864 = vmatpush1.msra.mxu0 0.0
    %865 = vmatprep.subr.mxu0 0.0
    %866 = vmatpush1.msra.mxu0 0.0
    %867 = vmatprep.subr.mxu0 0.0
    %868 = vmatpush1.msra.mxu0 0.0
    %869 = vmatprep.subr.mxu0 0.0
    %870 = vmatpush1.msra.mxu0 0.0
    %871 = vmatprep.subr.mxu0 0.0
    %872 = vmatpush1.msra.mxu0 0.0
    %873 = vmatprep.subr.mxu0 0.0
    %874 = vmatpush1.msra.mxu0 0.0
    %875 = vmatprep.subr.mxu0 0.0
    %876 = vmatpush1.msra.mxu0 0.0
    %877 = vmatprep.subr.mxu0 0.0
    %878 = vmatpush1.msra.mxu0 0.0
    %879 = vmatprep.subr.mxu0 0.0
    %880 = vmatpush1.msra.mxu0 0.0
    %881 = vmatprep.subr.mxu0 0.0
    %882 = vmatpush1.msra.mxu0 0.0
    %883 = vmatprep.subr.mxu0 0.0
    %v884 = vand.u32 %v210, 4294901760
    %v885 = vsub.f32 %v210, %v884
    %886 = vmatpush1.msra.mxu0 %v885
    %887 = vmatprep.subr.mxu0 0.0
    %v888 = vand.u32 %v209, 4294901760
    %v889 = vsub.f32 %v209, %v888
    %890 = vmatpush1.msra.mxu0 %v889
    %891 = vmatprep.subr.mxu0 0.0
    %892 = vmatpush2.msra.mxu0 0.0
    %893 = vmatprep.subr.mxu0 0.0
    %894 = vmatpush2.msra.mxu0 0.0
    %895 = vmatprep.subr.mxu0 0.0
    %896 = vmatpush2.msra.mxu0 0.0
    %897 = vmatprep.subr.mxu0 0.0
    %898 = vmatpush2.msra.mxu0 0.0
    %899 = vmatprep.subr.mxu0 0.0
    %900 = vmatpush2.msra.mxu0 0.0
    %901 = vmatprep.subr.mxu0 0.0
    %902 = vmatpush2.msra.mxu0 0.0
    %903 = vmatprep.subr.mxu0 0.0
    %904 = vmatpush2.msra.mxu0 0.0
    %905 = vmatprep.subr.mxu0 0.0
    %906 = vmatpush2.msra.mxu0 0.0
    %907 = vmatprep.subr.mxu0 0.0
    %908 = vmatpush2.msra.mxu0 0.0
    %909 = vmatprep.subr.mxu0 0.0
    %910 = vmatpush2.msra.mxu0 0.0
    %911 = vmatprep.subr.mxu0 0.0
    %912 = vmatpush2.msra.mxu0 0.0
    %913 = vmatprep.subr.mxu0 0.0
    %914 = vmatpush2.msra.mxu0 0.0
    %915 = vmatprep.subr.mxu0 0.0
    %916 = vmatpush2.msra.mxu0 0.0
    %917 = vmatprep.subr.mxu0 0.0
    %918 = vmatpush2.msra.mxu0 0.0
    %919 = vmatprep.subr.mxu0 0.0
    %920 = vmatpush2.msra.mxu0 0.0
    %921 = vmatprep.subr.mxu0 0.0
    %922 = vmatpush2.msra.mxu0 0.0
    %923 = vmatprep.mubr.f32.mxu0 0.0
    %v924 = vand.u32 %v695, 4294901760
    %v925 = vsub.f32 %v695, %v924
    %926 = vmatmul.mubr.f32.gmra.mxu0 %v925
    %v927 = vpop.f32.mrf.mxu0
    %v928 = vadd.f32 %v852, %v927
    %v929 = vpop.f32.mrf.mxu0
    %930 = vdwg.mxu0
    %931 = vmatprep.subr.mxu0 0.0
    %932 = vmatpush1.msra.mxu0 0.0
    %933 = vmatprep.subr.mxu0 0.0
    %934 = vmatpush1.msra.mxu0 0.0
    %935 = vmatprep.subr.mxu0 0.0
    %936 = vmatpush1.msra.mxu0 0.0
    %937 = vmatprep.subr.mxu0 0.0
    %938 = vmatpush1.msra.mxu0 0.0
    %939 = vmatprep.subr.mxu0 0.0
    %940 = vmatpush1.msra.mxu0 0.0
    %941 = vmatprep.subr.mxu0 0.0
    %942 = vmatpush1.msra.mxu0 0.0
    %943 = vmatprep.subr.mxu0 0.0
    %944 = vmatpush1.msra.mxu0 0.0
    %945 = vmatprep.subr.mxu0 0.0
    %946 = vmatpush1.msra.mxu0 0.0
    %947 = vmatprep.subr.mxu0 0.0
    %948 = vmatpush1.msra.mxu0 0.0
    %949 = vmatprep.subr.mxu0 0.0
    %950 = vmatpush1.msra.mxu0 0.0
    %951 = vmatprep.subr.mxu0 0.0
    %952 = vmatpush1.msra.mxu0 0.0
    %953 = vmatprep.subr.mxu0 0.0
    %954 = vmatpush1.msra.mxu0 0.0
    %955 = vmatprep.subr.mxu0 0.0
    %956 = vmatpush1.msra.mxu0 0.0
    %957 = vmatprep.subr.mxu0 0.0
    %958 = vmatpush1.msra.mxu0 0.0
    %959 = vmatprep.subr.mxu0 0.0
    %v960 = vand.u32 %v210, 4294901760
    %961 = vmatpush1.msra.mxu0 %v960
    %962 = vmatprep.subr.mxu0 0.0
    %v963 = vand.u32 %v209, 4294901760
    %964 = vmatpush1.msra.mxu0 %v963
    %965 = vmatprep.subr.mxu0 0.0
    %966 = vmatpush2.msra.mxu0 0.0
    %967 = vmatprep.subr.mxu0 0.0
    %968 = vmatpush2.msra.mxu0 0.0
    %969 = vmatprep.subr.mxu0 0.0
    %970 = vmatpush2.msra.mxu0 0.0
    %971 = vmatprep.subr.mxu0 0.0
    %972 = vmatpush2.msra.mxu0 0.0
    %973 = vmatprep.subr.mxu0 0.0
    %974 = vmatpush2.msra.mxu0 0.0
    %975 = vmatprep.subr.mxu0 0.0
    %976 = vmatpush2.msra.mxu0 0.0
    %977 = vmatprep.subr.mxu0 0.0
    %978 = vmatpush2.msra.mxu0 0.0
    %979 = vmatprep.subr.mxu0 0.0
    %980 = vmatpush2.msra.mxu0 0.0
    %981 = vmatprep.subr.mxu0 0.0
    %982 = vmatpush2.msra.mxu0 0.0
    %983 = vmatprep.subr.mxu0 0.0
    %984 = vmatpush2.msra.mxu0 0.0
    %985 = vmatprep.subr.mxu0 0.0
    %986 = vmatpush2.msra.mxu0 0.0
    %987 = vmatprep.subr.mxu0 0.0
    %988 = vmatpush2.msra.mxu0 0.0
    %989 = vmatprep.subr.mxu0 0.0
    %990 = vmatpush2.msra.mxu0 0.0
    %991 = vmatprep.subr.mxu0 0.0
    %992 = vmatpush2.msra.mxu0 0.0
    %993 = vmatprep.subr.mxu0 0.0
    %994 = vmatpush2.msra.mxu0 0.0
    %995 = vmatprep.subr.mxu0 0.0
    %996 = vmatpush2.msra.mxu0 0.0
    %997 = vmatprep.mubr.f32.mxu0 0.0
    %v998 = vand.u32 %v695, 4294901760
    %v999 = vsub.f32 %v695, %v998
    %v1000 = vand.u32 %v999, 4294901760
    %1001 = vmatmul.mubr.f32.gmra.mxu0 %v1000
    %v1002 = vpop.f32.mrf.mxu0
    %v1003 = vadd.f32 %v928, %v1002
    %v1004 = vpop.f32.mrf.mxu0
    %1005 = vdwg.mxu0
    %1006 = vmatprep.subr.mxu0 0.0
    %1007 = vmatpush1.msra.mxu0 0.0
    %1008 = vmatprep.subr.mxu0 0.0
    %1009 = vmatpush1.msra.mxu0 0.0
    %1010 = vmatprep.subr.mxu0 0.0
    %1011 = vmatpush1.msra.mxu0 0.0
    %1012 = vmatprep.subr.mxu0 0.0
    %1013 = vmatpush1.msra.mxu0 0.0
    %1014 = vmatprep.subr.mxu0 0.0
    %1015 = vmatpush1.msra.mxu0 0.0
    %1016 = vmatprep.subr.mxu0 0.0
    %1017 = vmatpush1.msra.mxu0 0.0
    %1018 = vmatprep.subr.mxu0 0.0
    %1019 = vmatpush1.msra.mxu0 0.0
    %1020 = vmatprep.subr.mxu0 0.0
    %1021 = vmatpush1.msra.mxu0 0.0
    %1022 = vmatprep.subr.mxu0 0.0
    %1023 = vmatpush1.msra.mxu0 0.0
    %1024 = vmatprep.subr.mxu0 0.0
    %1025 = vmatpush1.msra.mxu0 0.0
    %1026 = vmatprep.subr.mxu0 0.0
    %1027 = vmatpush1.msra.mxu0 0.0
    %1028 = vmatprep.subr.mxu0 0.0
    %1029 = vmatpush1.msra.mxu0 0.0
    %1030 = vmatprep.subr.mxu0 0.0
    %1031 = vmatpush1.msra.mxu0 0.0
    %1032 = vmatprep.subr.mxu0 0.0
    %1033 = vmatpush1.msra.mxu0 0.0
    %1034 = vmatprep.subr.mxu0 0.0
    %v1035 = vand.u32 %v210, 4294901760
    %v1036 = vsub.f32 %v210, %v1035
    %v1037 = vand.u32 %v1036, 4294901760
    %1038 = vmatpush1.msra.mxu0 %v1037
    %1039 = vmatprep.subr.mxu0 0.0
    %v1040 = vand.u32 %v209, 4294901760
    %v1041 = vsub.f32 %v209, %v1040
    %v1042 = vand.u32 %v1041, 4294901760
    %1043 = vmatpush1.msra.mxu0 %v1042
    %1044 = vmatprep.subr.mxu0 0.0
    %1045 = vmatpush2.msra.mxu0 0.0
    %1046 = vmatprep.subr.mxu0 0.0
    %1047 = vmatpush2.msra.mxu0 0.0
    %1048 = vmatprep.subr.mxu0 0.0
    %1049 = vmatpush2.msra.mxu0 0.0
    %1050 = vmatprep.subr.mxu0 0.0
    %1051 = vmatpush2.msra.mxu0 0.0
    %1052 = vmatprep.subr.mxu0 0.0
    %1053 = vmatpush2.msra.mxu0 0.0
    %1054 = vmatprep.subr.mxu0 0.0
    %1055 = vmatpush2.msra.mxu0 0.0
    %1056 = vmatprep.subr.mxu0 0.0
    %1057 = vmatpush2.msra.mxu0 0.0
    %1058 = vmatprep.subr.mxu0 0.0
    %1059 = vmatpush2.msra.mxu0 0.0
    %1060 = vmatprep.subr.mxu0 0.0
    %1061 = vmatpush2.msra.mxu0 0.0
    %1062 = vmatprep.subr.mxu0 0.0
    %1063 = vmatpush2.msra.mxu0 0.0
    %1064 = vmatprep.subr.mxu0 0.0
    %1065 = vmatpush2.msra.mxu0 0.0
    %1066 = vmatprep.subr.mxu0 0.0
    %1067 = vmatpush2.msra.mxu0 0.0
    %1068 = vmatprep.subr.mxu0 0.0
    %1069 = vmatpush2.msra.mxu0 0.0
    %1070 = vmatprep.subr.mxu0 0.0
    %1071 = vmatpush2.msra.mxu0 0.0
    %1072 = vmatprep.subr.mxu0 0.0
    %1073 = vmatpush2.msra.mxu0 0.0
    %1074 = vmatprep.subr.mxu0 0.0
    %1075 = vmatpush2.msra.mxu0 0.0
    %1076 = vmatprep.mubr.f32.mxu0 0.0
    %v1077 = vand.u32 %v695, 4294901760
    %1078 = vmatmul.mubr.f32.gmra.mxu0 %v1077
    %v1079 = vpop.f32.mrf.mxu0
    %v1080 = vadd.f32 %v1003, %v1079
    %v1081 = vpop.f32.mrf.mxu0
    %1082 = vdwg.mxu0
    %1083 = vmatprep.subr.mxu0 0.0
    %1084 = vmatpush1.msra.mxu0 0.0
    %1085 = vmatprep.subr.mxu0 0.0
    %1086 = vmatpush1.msra.mxu0 0.0
    %1087 = vmatprep.subr.mxu0 0.0
    %1088 = vmatpush1.msra.mxu0 0.0
    %1089 = vmatprep.subr.mxu0 0.0
    %1090 = vmatpush1.msra.mxu0 0.0
    %1091 = vmatprep.subr.mxu0 0.0
    %1092 = vmatpush1.msra.mxu0 0.0
    %1093 = vmatprep.subr.mxu0 0.0
    %1094 = vmatpush1.msra.mxu0 0.0
    %1095 = vmatprep.subr.mxu0 0.0
    %1096 = vmatpush1.msra.mxu0 0.0
    %1097 = vmatprep.subr.mxu0 0.0
    %1098 = vmatpush1.msra.mxu0 0.0
    %1099 = vmatprep.subr.mxu0 0.0
    %1100 = vmatpush1.msra.mxu0 0.0
    %1101 = vmatprep.subr.mxu0 0.0
    %1102 = vmatpush1.msra.mxu0 0.0
    %1103 = vmatprep.subr.mxu0 0.0
    %1104 = vmatpush1.msra.mxu0 0.0
    %1105 = vmatprep.subr.mxu0 0.0
    %1106 = vmatpush1.msra.mxu0 0.0
    %1107 = vmatprep.subr.mxu0 0.0
    %1108 = vmatpush1.msra.mxu0 0.0
    %1109 = vmatprep.subr.mxu0 0.0
    %1110 = vmatpush1.msra.mxu0 0.0
    %1111 = vmatprep.subr.mxu0 0.0
    %v1112 = vand.u32 %v210, 4294901760
    %1113 = vmatpush1.msra.mxu0 %v1112
    %1114 = vmatprep.subr.mxu0 0.0
    %v1115 = vand.u32 %v209, 4294901760
    %1116 = vmatpush1.msra.mxu0 %v1115
    %1117 = vmatprep.subr.mxu0 0.0
    %1118 = vmatpush2.msra.mxu0 0.0
    %1119 = vmatprep.subr.mxu0 0.0
    %1120 = vmatpush2.msra.mxu0 0.0
    %1121 = vmatprep.subr.mxu0 0.0
    %1122 = vmatpush2.msra.mxu0 0.0
    %1123 = vmatprep.subr.mxu0 0.0
    %1124 = vmatpush2.msra.mxu0 0.0
    %1125 = vmatprep.subr.mxu0 0.0
    %1126 = vmatpush2.msra.mxu0 0.0
    %1127 = vmatprep.subr.mxu0 0.0
    %1128 = vmatpush2.msra.mxu0 0.0
    %1129 = vmatprep.subr.mxu0 0.0
    %1130 = vmatpush2.msra.mxu0 0.0
    %1131 = vmatprep.subr.mxu0 0.0
    %1132 = vmatpush2.msra.mxu0 0.0
    %1133 = vmatprep.subr.mxu0 0.0
    %1134 = vmatpush2.msra.mxu0 0.0
    %1135 = vmatprep.subr.mxu0 0.0
    %1136 = vmatpush2.msra.mxu0 0.0
    %1137 = vmatprep.subr.mxu0 0.0
    %1138 = vmatpush2.msra.mxu0 0.0
    %1139 = vmatprep.subr.mxu0 0.0
    %1140 = vmatpush2.msra.mxu0 0.0
    %1141 = vmatprep.subr.mxu0 0.0
    %1142 = vmatpush2.msra.mxu0 0.0
    %1143 = vmatprep.subr.mxu0 0.0
    %1144 = vmatpush2.msra.mxu0 0.0
    %1145 = vmatprep.subr.mxu0 0.0
    %1146 = vmatpush2.msra.mxu0 0.0
    %1147 = vmatprep.subr.mxu0 0.0
    %1148 = vmatpush2.msra.mxu0 0.0
    %1149 = vmatprep.mubr.f32.mxu0 0.0
    %v1150 = vand.u32 %v695, 4294901760
    %1151 = vmatmul.mubr.f32.gmra.mxu0 %v1150
    %v1152 = vpop.f32.mrf.mxu0
    %v1153 = vadd.f32 %v1080, %v1152
    %v1154 = vpop.f32.mrf.mxu0
    %1155 = vdwg.mxu0
    %v1156 = vmax.f32 %v1153, 0.0
    %v1158 = vlaneseq
    %v1159 = vshrl.u32 %v1158, 7
    %v1160 = vsub.s32 0, %v1159
    %v1161 = vrot.slane %v214, %v1160
    %v1164 = vsel %vm224, %v1156, 0
    %1166 = vmatprep.subr.mxu0 0.0
    %1167 = vmatpush1.msra.mxu0 0.0
    %1168 = vmatprep.subr.mxu0 0.0
    %1169 = vmatpush1.msra.mxu0 0.0
    %1170 = vmatprep.subr.mxu0 0.0
    %1171 = vmatpush1.msra.mxu0 0.0
    %1172 = vmatprep.subr.mxu0 0.0
    %1173 = vmatpush1.msra.mxu0 0.0
    %1174 = vmatprep.subr.mxu0 0.0
    %1175 = vmatpush1.msra.mxu0 0.0
    %1176 = vmatprep.subr.mxu0 0.0
    %1177 = vmatpush1.msra.mxu0 0.0
    %1178 = vmatprep.subr.mxu0 0.0
    %1179 = vmatpush1.msra.mxu0 0.0
    %1180 = vmatprep.subr.mxu0 0.0
    %1181 = vmatpush1.msra.mxu0 0.0
    %1182 = vmatprep.subr.mxu0 0.0
    %1183 = vmatpush1.msra.mxu0 0.0
    %1184 = vmatprep.subr.mxu0 0.0
    %1185 = vmatpush1.msra.mxu0 0.0
    %1186 = vmatprep.subr.mxu0 0.0
    %1187 = vmatpush1.msra.mxu0 0.0
    %1188 = vmatprep.subr.mxu0 0.0
    %1189 = vmatpush1.msra.mxu0 0.0
    %1190 = vmatprep.subr.mxu0 0.0
    %1191 = vmatpush1.msra.mxu0 0.0
    %1192 = vmatprep.subr.mxu0 0.0
    %1193 = vmatpush1.msra.mxu0 0.0
    %1194 = vmatprep.subr.mxu0 0.0
    %v1195 = vand.u32 %v213, 4294901760
    %1196 = vmatpush1.msra.mxu0 %v1195
    %1197 = vmatprep.subr.mxu0 0.0
    %v1198 = vand.u32 %v212, 4294901760
    %1199 = vmatpush1.msra.mxu0 %v1198
    %1200 = vmatprep.subr.mxu0 0.0
    %1201 = vmatpush2.msra.mxu0 0.0
    %1202 = vmatprep.subr.mxu0 0.0
    %1203 = vmatpush2.msra.mxu0 0.0
    %1204 = vmatprep.subr.mxu0 0.0
    %1205 = vmatpush2.msra.mxu0 0.0
    %1206 = vmatprep.subr.mxu0 0.0
    %1207 = vmatpush2.msra.mxu0 0.0
    %1208 = vmatprep.subr.mxu0 0.0
    %1209 = vmatpush2.msra.mxu0 0.0
    %1210 = vmatprep.subr.mxu0 0.0
    %1211 = vmatpush2.msra.mxu0 0.0
    %1212 = vmatprep.subr.mxu0 0.0
    %1213 = vmatpush2.msra.mxu0 0.0
    %1214 = vmatprep.subr.mxu0 0.0
    %1215 = vmatpush2.msra.mxu0 0.0
    %1216 = vmatprep.subr.mxu0 0.0
    %1217 = vmatpush2.msra.mxu0 0.0
    %1218 = vmatprep.subr.mxu0 0.0
    %1219 = vmatpush2.msra.mxu0 0.0
    %1220 = vmatprep.subr.mxu0 0.0
    %1221 = vmatpush2.msra.mxu0 0.0
    %1222 = vmatprep.subr.mxu0 0.0
    %1223 = vmatpush2.msra.mxu0 0.0
    %1224 = vmatprep.subr.mxu0 0.0
    %1225 = vmatpush2.msra.mxu0 0.0
    %1226 = vmatprep.subr.mxu0 0.0
    %1227 = vmatpush2.msra.mxu0 0.0
    %1228 = vmatprep.subr.mxu0 0.0
    %1229 = vmatpush2.msra.mxu0 0.0
    %1230 = vmatprep.subr.mxu0 0.0
    %1231 = vmatpush2.msra.mxu0 0.0
    %1232 = vmatprep.mubr.f32.mxu0 0.0
    %v1233 = vand.u32 %v1164, 4294901760
    %v1234 = vsub.f32 %v1164, %v1233
    %v1235 = vand.u32 %v1234, 4294901760
    %v1236 = vsub.f32 %v1234, %v1235
    %v1237 = vand.u32 %v1236, 4294901760
    %1238 = vmatmul.mubr.f32.gmra.mxu0 %v1237
    %v1239 = vpop.f32.mrf.mxu0
    %v1240 = vadd.f32 %v1161, %v1239
    %v1241 = vpop.f32.mrf.mxu0
    %1242 = vdwg.mxu0
    %1243 = vmatprep.subr.mxu0 0.0
    %1244 = vmatpush1.msra.mxu0 0.0
    %1245 = vmatprep.subr.mxu0 0.0
    %1246 = vmatpush1.msra.mxu0 0.0
    %1247 = vmatprep.subr.mxu0 0.0
    %1248 = vmatpush1.msra.mxu0 0.0
    %1249 = vmatprep.subr.mxu0 0.0
    %1250 = vmatpush1.msra.mxu0 0.0
    %1251 = vmatprep.subr.mxu0 0.0
    %1252 = vmatpush1.msra.mxu0 0.0
    %1253 = vmatprep.subr.mxu0 0.0
    %1254 = vmatpush1.msra.mxu0 0.0
    %1255 = vmatprep.subr.mxu0 0.0
    %1256 = vmatpush1.msra.mxu0 0.0
    %1257 = vmatprep.subr.mxu0 0.0
    %1258 = vmatpush1.msra.mxu0 0.0
    %1259 = vmatprep.subr.mxu0 0.0
    %1260 = vmatpush1.msra.mxu0 0.0
    %1261 = vmatprep.subr.mxu0 0.0
    %1262 = vmatpush1.msra.mxu0 0.0
    %1263 = vmatprep.subr.mxu0 0.0
    %1264 = vmatpush1.msra.mxu0 0.0
    %1265 = vmatprep.subr.mxu0 0.0
    %1266 = vmatpush1.msra.mxu0 0.0
    %1267 = vmatprep.subr.mxu0 0.0
    %1268 = vmatpush1.msra.mxu0 0.0
    %1269 = vmatprep.subr.mxu0 0.0
    %1270 = vmatpush1.msra.mxu0 0.0
    %1271 = vmatprep.subr.mxu0 0.0
    %v1272 = vand.u32 %v213, 4294901760
    %v1273 = vsub.f32 %v213, %v1272
    %v1274 = vand.u32 %v1273, 4294901760
    %v1275 = vsub.f32 %v1273, %v1274
    %v1276 = vand.u32 %v1275, 4294901760
    %1277 = vmatpush1.msra.mxu0 %v1276
    %1278 = vmatprep.subr.mxu0 0.0
    %v1279 = vand.u32 %v212, 4294901760
    %v1280 = vsub.f32 %v212, %v1279
    %v1281 = vand.u32 %v1280, 4294901760
    %v1282 = vsub.f32 %v1280, %v1281
    %v1283 = vand.u32 %v1282, 4294901760
    %1284 = vmatpush1.msra.mxu0 %v1283
    %1285 = vmatprep.subr.mxu0 0.0
    %1286 = vmatpush2.msra.mxu0 0.0
    %1287 = vmatprep.subr.mxu0 0.0
    %1288 = vmatpush2.msra.mxu0 0.0
    %1289 = vmatprep.subr.mxu0 0.0
    %1290 = vmatpush2.msra.mxu0 0.0
    %1291 = vmatprep.subr.mxu0 0.0
    %1292 = vmatpush2.msra.mxu0 0.0
    %1293 = vmatprep.subr.mxu0 0.0
    %1294 = vmatpush2.msra.mxu0 0.0
    %1295 = vmatprep.subr.mxu0 0.0
    %1296 = vmatpush2.msra.mxu0 0.0
    %1297 = vmatprep.subr.mxu0 0.0
    %1298 = vmatpush2.msra.mxu0 0.0
    %1299 = vmatprep.subr.mxu0 0.0
    %1300 = vmatpush2.msra.mxu0 0.0
    %1301 = vmatprep.subr.mxu0 0.0
    %1302 = vmatpush2.msra.mxu0 0.0
    %1303 = vmatprep.subr.mxu0 0.0
    %1304 = vmatpush2.msra.mxu0 0.0
    %1305 = vmatprep.subr.mxu0 0.0
    %1306 = vmatpush2.msra.mxu0 0.0
    %1307 = vmatprep.subr.mxu0 0.0
    %1308 = vmatpush2.msra.mxu0 0.0
    %1309 = vmatprep.subr.mxu0 0.0
    %1310 = vmatpush2.msra.mxu0 0.0
    %1311 = vmatprep.subr.mxu0 0.0
    %1312 = vmatpush2.msra.mxu0 0.0
    %1313 = vmatprep.subr.mxu0 0.0
    %1314 = vmatpush2.msra.mxu0 0.0
    %1315 = vmatprep.subr.mxu0 0.0
    %1316 = vmatpush2.msra.mxu0 0.0
    %1317 = vmatprep.mubr.f32.mxu0 0.0
    %v1318 = vand.u32 %v1164, 4294901760
    %1319 = vmatmul.mubr.f32.gmra.mxu0 %v1318
    %v1320 = vpop.f32.mrf.mxu0
    %v1321 = vadd.f32 %v1240, %v1320
    %v1322 = vpop.f32.mrf.mxu0
    %1323 = vdwg.mxu0
    %1324 = vmatprep.subr.mxu0 0.0
    %1325 = vmatpush1.msra.mxu0 0.0
    %1326 = vmatprep.subr.mxu0 0.0
    %1327 = vmatpush1.msra.mxu0 0.0
    %1328 = vmatprep.subr.mxu0 0.0
    %1329 = vmatpush1.msra.mxu0 0.0
    %1330 = vmatprep.subr.mxu0 0.0
    %1331 = vmatpush1.msra.mxu0 0.0
    %1332 = vmatprep.subr.mxu0 0.0
    %1333 = vmatpush1.msra.mxu0 0.0
    %1334 = vmatprep.subr.mxu0 0.0
    %1335 = vmatpush1.msra.mxu0 0.0
    %1336 = vmatprep.subr.mxu0 0.0
    %1337 = vmatpush1.msra.mxu0 0.0
    %1338 = vmatprep.subr.mxu0 0.0
    %1339 = vmatpush1.msra.mxu0 0.0
    %1340 = vmatprep.subr.mxu0 0.0
    %1341 = vmatpush1.msra.mxu0 0.0
    %1342 = vmatprep.subr.mxu0 0.0
    %1343 = vmatpush1.msra.mxu0 0.0
    %1344 = vmatprep.subr.mxu0 0.0
    %1345 = vmatpush1.msra.mxu0 0.0
    %1346 = vmatprep.subr.mxu0 0.0
    %1347 = vmatpush1.msra.mxu0 0.0
    %1348 = vmatprep.subr.mxu0 0.0
    %1349 = vmatpush1.msra.mxu0 0.0
    %1350 = vmatprep.subr.mxu0 0.0
    %1351 = vmatpush1.msra.mxu0 0.0
    %1352 = vmatprep.subr.mxu0 0.0
    %v1353 = vand.u32 %v213, 4294901760
    %v1354 = vsub.f32 %v213, %v1353
    %1355 = vmatpush1.msra.mxu0 %v1354
    %1356 = vmatprep.subr.mxu0 0.0
    %v1357 = vand.u32 %v212, 4294901760
    %v1358 = vsub.f32 %v212, %v1357
    %1359 = vmatpush1.msra.mxu0 %v1358
    %1360 = vmatprep.subr.mxu0 0.0
    %1361 = vmatpush2.msra.mxu0 0.0
    %1362 = vmatprep.subr.mxu0 0.0
    %1363 = vmatpush2.msra.mxu0 0.0
    %1364 = vmatprep.subr.mxu0 0.0
    %1365 = vmatpush2.msra.mxu0 0.0
    %1366 = vmatprep.subr.mxu0 0.0
    %1367 = vmatpush2.msra.mxu0 0.0
    %1368 = vmatprep.subr.mxu0 0.0
    %1369 = vmatpush2.msra.mxu0 0.0
    %1370 = vmatprep.subr.mxu0 0.0
    %1371 = vmatpush2.msra.mxu0 0.0
    %1372 = vmatprep.subr.mxu0 0.0
    %1373 = vmatpush2.msra.mxu0 0.0
    %1374 = vmatprep.subr.mxu0 0.0
    %1375 = vmatpush2.msra.mxu0 0.0
    %1376 = vmatprep.subr.mxu0 0.0
    %1377 = vmatpush2.msra.mxu0 0.0
    %1378 = vmatprep.subr.mxu0 0.0
    %1379 = vmatpush2.msra.mxu0 0.0
    %1380 = vmatprep.subr.mxu0 0.0
    %1381 = vmatpush2.msra.mxu0 0.0
    %1382 = vmatprep.subr.mxu0 0.0
    %1383 = vmatpush2.msra.mxu0 0.0
    %1384 = vmatprep.subr.mxu0 0.0
    %1385 = vmatpush2.msra.mxu0 0.0
    %1386 = vmatprep.subr.mxu0 0.0
    %1387 = vmatpush2.msra.mxu0 0.0
    %1388 = vmatprep.subr.mxu0 0.0
    %1389 = vmatpush2.msra.mxu0 0.0
    %1390 = vmatprep.subr.mxu0 0.0
    %1391 = vmatpush2.msra.mxu0 0.0
    %1392 = vmatprep.mubr.f32.mxu0 0.0
    %v1393 = vand.u32 %v1164, 4294901760
    %v1394 = vsub.f32 %v1164, %v1393
    %1395 = vmatmul.mubr.f32.gmra.mxu0 %v1394
    %v1396 = vpop.f32.mrf.mxu0
    %v1397 = vadd.f32 %v1321, %v1396
    %v1398 = vpop.f32.mrf.mxu0
    %1399 = vdwg.mxu0
    %1400 = vmatprep.subr.mxu0 0.0
    %1401 = vmatpush1.msra.mxu0 0.0
    %1402 = vmatprep.subr.mxu0 0.0
    %1403 = vmatpush1.msra.mxu0 0.0
    %1404 = vmatprep.subr.mxu0 0.0
    %1405 = vmatpush1.msra.mxu0 0.0
    %1406 = vmatprep.subr.mxu0 0.0
    %1407 = vmatpush1.msra.mxu0 0.0
    %1408 = vmatprep.subr.mxu0 0.0
    %1409 = vmatpush1.msra.mxu0 0.0
    %1410 = vmatprep.subr.mxu0 0.0
    %1411 = vmatpush1.msra.mxu0 0.0
    %1412 = vmatprep.subr.mxu0 0.0
    %1413 = vmatpush1.msra.mxu0 0.0
    %1414 = vmatprep.subr.mxu0 0.0
    %1415 = vmatpush1.msra.mxu0 0.0
    %1416 = vmatprep.subr.mxu0 0.0
    %1417 = vmatpush1.msra.mxu0 0.0
    %1418 = vmatprep.subr.mxu0 0.0
    %1419 = vmatpush1.msra.mxu0 0.0
    %1420 = vmatprep.subr.mxu0 0.0
    %1421 = vmatpush1.msra.mxu0 0.0
    %1422 = vmatprep.subr.mxu0 0.0
    %1423 = vmatpush1.msra.mxu0 0.0
    %1424 = vmatprep.subr.mxu0 0.0
    %1425 = vmatpush1.msra.mxu0 0.0
    %1426 = vmatprep.subr.mxu0 0.0
    %1427 = vmatpush1.msra.mxu0 0.0
    %1428 = vmatprep.subr.mxu0 0.0
    %v1429 = vand.u32 %v213, 4294901760
    %1430 = vmatpush1.msra.mxu0 %v1429
    %1431 = vmatprep.subr.mxu0 0.0
    %v1432 = vand.u32 %v212, 4294901760
    %1433 = vmatpush1.msra.mxu0 %v1432
    %1434 = vmatprep.subr.mxu0 0.0
    %1435 = vmatpush2.msra.mxu0 0.0
    %1436 = vmatprep.subr.mxu0 0.0
    %1437 = vmatpush2.msra.mxu0 0.0
    %1438 = vmatprep.subr.mxu0 0.0
    %1439 = vmatpush2.msra.mxu0 0.0
    %1440 = vmatprep.subr.mxu0 0.0
    %1441 = vmatpush2.msra.mxu0 0.0
    %1442 = vmatprep.subr.mxu0 0.0
    %1443 = vmatpush2.msra.mxu0 0.0
    %1444 = vmatprep.subr.mxu0 0.0
    %1445 = vmatpush2.msra.mxu0 0.0
    %1446 = vmatprep.subr.mxu0 0.0
    %1447 = vmatpush2.msra.mxu0 0.0
    %1448 = vmatprep.subr.mxu0 0.0
    %1449 = vmatpush2.msra.mxu0 0.0
    %1450 = vmatprep.subr.mxu0 0.0
    %1451 = vmatpush2.msra.mxu0 0.0
    %1452 = vmatprep.subr.mxu0 0.0
    %1453 = vmatpush2.msra.mxu0 0.0
    %1454 = vmatprep.subr.mxu0 0.0
    %1455 = vmatpush2.msra.mxu0 0.0
    %1456 = vmatprep.subr.mxu0 0.0
    %1457 = vmatpush2.msra.mxu0 0.0
    %1458 = vmatprep.subr.mxu0 0.0
    %1459 = vmatpush2.msra.mxu0 0.0
    %1460 = vmatprep.subr.mxu0 0.0
    %1461 = vmatpush2.msra.mxu0 0.0
    %1462 = vmatprep.subr.mxu0 0.0
    %1463 = vmatpush2.msra.mxu0 0.0
    %1464 = vmatprep.subr.mxu0 0.0
    %1465 = vmatpush2.msra.mxu0 0.0
    %1466 = vmatprep.mubr.f32.mxu0 0.0
    %v1467 = vand.u32 %v1164, 4294901760
    %v1468 = vsub.f32 %v1164, %v1467
    %v1469 = vand.u32 %v1468, 4294901760
    %1470 = vmatmul.mubr.f32.gmra.mxu0 %v1469
    %v1471 = vpop.f32.mrf.mxu0
    %v1472 = vadd.f32 %v1397, %v1471
    %v1473 = vpop.f32.mrf.mxu0
    %1474 = vdwg.mxu0
    %1475 = vmatprep.subr.mxu0 0.0
    %1476 = vmatpush1.msra.mxu0 0.0
    %1477 = vmatprep.subr.mxu0 0.0
    %1478 = vmatpush1.msra.mxu0 0.0
    %1479 = vmatprep.subr.mxu0 0.0
    %1480 = vmatpush1.msra.mxu0 0.0
    %1481 = vmatprep.subr.mxu0 0.0
    %1482 = vmatpush1.msra.mxu0 0.0
    %1483 = vmatprep.subr.mxu0 0.0
    %1484 = vmatpush1.msra.mxu0 0.0
    %1485 = vmatprep.subr.mxu0 0.0
    %1486 = vmatpush1.msra.mxu0 0.0
    %1487 = vmatprep.subr.mxu0 0.0
    %1488 = vmatpush1.msra.mxu0 0.0
    %1489 = vmatprep.subr.mxu0 0.0
    %1490 = vmatpush1.msra.mxu0 0.0
    %1491 = vmatprep.subr.mxu0 0.0
    %1492 = vmatpush1.msra.mxu0 0.0
    %1493 = vmatprep.subr.mxu0 0.0
    %1494 = vmatpush1.msra.mxu0 0.0
    %1495 = vmatprep.subr.mxu0 0.0
    %1496 = vmatpush1.msra.mxu0 0.0
    %1497 = vmatprep.subr.mxu0 0.0
    %1498 = vmatpush1.msra.mxu0 0.0
    %1499 = vmatprep.subr.mxu0 0.0
    %1500 = vmatpush1.msra.mxu0 0.0
    %1501 = vmatprep.subr.mxu0 0.0
    %1502 = vmatpush1.msra.mxu0 0.0
    %1503 = vmatprep.subr.mxu0 0.0
    %v1504 = vand.u32 %v213, 4294901760
    %v1505 = vsub.f32 %v213, %v1504
    %v1506 = vand.u32 %v1505, 4294901760
    %1507 = vmatpush1.msra.mxu0 %v1506
    %1508 = vmatprep.subr.mxu0 0.0
    %v1509 = vand.u32 %v212, 4294901760
    %v1510 = vsub.f32 %v212, %v1509
    %v1511 = vand.u32 %v1510, 4294901760
    %1512 = vmatpush1.msra.mxu0 %v1511
    %1513 = vmatprep.subr.mxu0 0.0
    %1514 = vmatpush2.msra.mxu0 0.0
    %1515 = vmatprep.subr.mxu0 0.0
    %1516 = vmatpush2.msra.mxu0 0.0
    %1517 = vmatprep.subr.mxu0 0.0
    %1518 = vmatpush2.msra.mxu0 0.0
    %1519 = vmatprep.subr.mxu0 0.0
    %1520 = vmatpush2.msra.mxu0 0.0
    %1521 = vmatprep.subr.mxu0 0.0
    %1522 = vmatpush2.msra.mxu0 0.0
    %1523 = vmatprep.subr.mxu0 0.0
    %1524 = vmatpush2.msra.mxu0 0.0
    %1525 = vmatprep.subr.mxu0 0.0
    %1526 = vmatpush2.msra.mxu0 0.0
    %1527 = vmatprep.subr.mxu0 0.0
    %1528 = vmatpush2.msra.mxu0 0.0
    %1529 = vmatprep.subr.mxu0 0.0
    %1530 = vmatpush2.msra.mxu0 0.0
    %1531 = vmatprep.subr.mxu0 0.0
    %1532 = vmatpush2.msra.mxu0 0.0
    %1533 = vmatprep.subr.mxu0 0.0
    %1534 = vmatpush2.msra.mxu0 0.0
    %1535 = vmatprep.subr.mxu0 0.0
    %1536 = vmatpush2.msra.mxu0 0.0
    %1537 = vmatprep.subr.mxu0 0.0
    %1538 = vmatpush2.msra.mxu0 0.0
    %1539 = vmatprep.subr.mxu0 0.0
    %1540 = vmatpush2.msra.mxu0 0.0
    %1541 = vmatprep.subr.mxu0 0.0
    %1542 = vmatpush2.msra.mxu0 0.0
    %1543 = vmatprep.subr.mxu0 0.0
    %1544 = vmatpush2.msra.mxu0 0.0
    %1545 = vmatprep.mubr.f32.mxu0 0.0
    %v1546 = vand.u32 %v1164, 4294901760
    %1547 = vmatmul.mubr.f32.gmra.mxu0 %v1546
    %v1548 = vpop.f32.mrf.mxu0
    %v1549 = vadd.f32 %v1472, %v1548
    %v1550 = vpop.f32.mrf.mxu0
    %1551 = vdwg.mxu0
    %1552 = vmatprep.subr.mxu0 0.0
    %1553 = vmatpush1.msra.mxu0 0.0
    %1554 = vmatprep.subr.mxu0 0.0
    %1555 = vmatpush1.msra.mxu0 0.0
    %1556 = vmatprep.subr.mxu0 0.0
    %1557 = vmatpush1.msra.mxu0 0.0
    %1558 = vmatprep.subr.mxu0 0.0
    %1559 = vmatpush1.msra.mxu0 0.0
    %1560 = vmatprep.subr.mxu0 0.0
    %1561 = vmatpush1.msra.mxu0 0.0
    %1562 = vmatprep.subr.mxu0 0.0
    %1563 = vmatpush1.msra.mxu0 0.0
    %1564 = vmatprep.subr.mxu0 0.0
    %1565 = vmatpush1.msra.mxu0 0.0
    %1566 = vmatprep.subr.mxu0 0.0
    %1567 = vmatpush1.msra.mxu0 0.0
    %1568 = vmatprep.subr.mxu0 0.0
    %1569 = vmatpush1.msra.mxu0 0.0
    %1570 = vmatprep.subr.mxu0 0.0
    %1571 = vmatpush1.msra.mxu0 0.0
    %1572 = vmatprep.subr.mxu0 0.0
    %1573 = vmatpush1.msra.mxu0 0.0
    %1574 = vmatprep.subr.mxu0 0.0
    %1575 = vmatpush1.msra.mxu0 0.0
    %1576 = vmatprep.subr.mxu0 0.0
    %1577 = vmatpush1.msra.mxu0 0.0
    %1578 = vmatprep.subr.mxu0 0.0
    %1579 = vmatpush1.msra.mxu0 0.0
    %1580 = vmatprep.subr.mxu0 0.0
    %v1581 = vand.u32 %v213, 4294901760
    %1582 = vmatpush1.msra.mxu0 %v1581
    %1583 = vmatprep.subr.mxu0 0.0
    %v1584 = vand.u32 %v212, 4294901760
    %1585 = vmatpush1.msra.mxu0 %v1584
    %1586 = vmatprep.subr.mxu0 0.0
    %1587 = vmatpush2.msra.mxu0 0.0
    %1588 = vmatprep.subr.mxu0 0.0
    %1589 = vmatpush2.msra.mxu0 0.0
    %1590 = vmatprep.subr.mxu0 0.0
    %1591 = vmatpush2.msra.mxu0 0.0
    %1592 = vmatprep.subr.mxu0 0.0
    %1593 = vmatpush2.msra.mxu0 0.0
    %1594 = vmatprep.subr.mxu0 0.0
    %1595 = vmatpush2.msra.mxu0 0.0
    %1596 = vmatprep.subr.mxu0 0.0
    %1597 = vmatpush2.msra.mxu0 0.0
    %1598 = vmatprep.subr.mxu0 0.0
    %1599 = vmatpush2.msra.mxu0 0.0
    %1600 = vmatprep.subr.mxu0 0.0
    %1601 = vmatpush2.msra.mxu0 0.0
    %1602 = vmatprep.subr.mxu0 0.0
    %1603 = vmatpush2.msra.mxu0 0.0
    %1604 = vmatprep.subr.mxu0 0.0
    %1605 = vmatpush2.msra.mxu0 0.0
    %1606 = vmatprep.subr.mxu0 0.0
    %1607 = vmatpush2.msra.mxu0 0.0
    %1608 = vmatprep.subr.mxu0 0.0
    %1609 = vmatpush2.msra.mxu0 0.0
    %1610 = vmatprep.subr.mxu0 0.0
    %1611 = vmatpush2.msra.mxu0 0.0
    %1612 = vmatprep.subr.mxu0 0.0
    %1613 = vmatpush2.msra.mxu0 0.0
    %1614 = vmatprep.subr.mxu0 0.0
    %1615 = vmatpush2.msra.mxu0 0.0
    %1616 = vmatprep.subr.mxu0 0.0
    %1617 = vmatpush2.msra.mxu0 0.0
    %1618 = vmatprep.mubr.f32.mxu0 0.0
    %v1619 = vand.u32 %v1164, 4294901760
    %1620 = vmatmul.mubr.f32.gmra.mxu0 %v1619
    %v1621 = vpop.f32.mrf.mxu0
    %v1622 = vadd.f32 %v1549, %v1621
    %v1623 = vpop.f32.mrf.mxu0
    %1624 = vdwg.mxu0
    %v1625 = vtanh.pop %v1622
    %v1626 = vmul.f32 %v1625, 0.1
    %v1628 = vlaneseq
    %v1629 = vshrl.u32 %v1628, 7
    %v1630 = vsub.s32 0, %v1629
    %v1631 = vrot.slane %v217, %v1630
    %1633 = vmatprep.subr.mxu0 0.0
    %1634 = vmatpush1.msra.mxu0 0.0
    %1635 = vmatprep.subr.mxu0 0.0
    %1636 = vmatpush1.msra.mxu0 0.0
    %1637 = vmatprep.subr.mxu0 0.0
    %1638 = vmatpush1.msra.mxu0 0.0
    %1639 = vmatprep.subr.mxu0 0.0
    %1640 = vmatpush1.msra.mxu0 0.0
    %1641 = vmatprep.subr.mxu0 0.0
    %1642 = vmatpush1.msra.mxu0 0.0
    %1643 = vmatprep.subr.mxu0 0.0
    %1644 = vmatpush1.msra.mxu0 0.0
    %1645 = vmatprep.subr.mxu0 0.0
    %1646 = vmatpush1.msra.mxu0 0.0
    %1647 = vmatprep.subr.mxu0 0.0
    %1648 = vmatpush1.msra.mxu0 0.0
    %1649 = vmatprep.subr.mxu0 0.0
    %1650 = vmatpush1.msra.mxu0 0.0
    %1651 = vmatprep.subr.mxu0 0.0
    %1652 = vmatpush1.msra.mxu0 0.0
    %1653 = vmatprep.subr.mxu0 0.0
    %1654 = vmatpush1.msra.mxu0 0.0
    %1655 = vmatprep.subr.mxu0 0.0
    %1656 = vmatpush1.msra.mxu0 0.0
    %1657 = vmatprep.subr.mxu0 0.0
    %1658 = vmatpush1.msra.mxu0 0.0
    %1659 = vmatprep.subr.mxu0 0.0
    %1660 = vmatpush1.msra.mxu0 0.0
    %1661 = vmatprep.subr.mxu0 0.0
    %v1662 = vand.u32 %v216, 4294901760
    %1663 = vmatpush1.msra.mxu0 %v1662
    %1664 = vmatprep.subr.mxu0 0.0
    %v1665 = vand.u32 %v215, 4294901760
    %1666 = vmatpush1.msra.mxu0 %v1665
    %1667 = vmatprep.subr.mxu0 0.0
    %1668 = vmatpush2.msra.mxu0 0.0
    %1669 = vmatprep.subr.mxu0 0.0
    %1670 = vmatpush2.msra.mxu0 0.0
    %1671 = vmatprep.subr.mxu0 0.0
    %1672 = vmatpush2.msra.mxu0 0.0
    %1673 = vmatprep.subr.mxu0 0.0
    %1674 = vmatpush2.msra.mxu0 0.0
    %1675 = vmatprep.subr.mxu0 0.0
    %1676 = vmatpush2.msra.mxu0 0.0
    %1677 = vmatprep.subr.mxu0 0.0
    %1678 = vmatpush2.msra.mxu0 0.0
    %1679 = vmatprep.subr.mxu0 0.0
    %1680 = vmatpush2.msra.mxu0 0.0
    %1681 = vmatprep.subr.mxu0 0.0
    %1682 = vmatpush2.msra.mxu0 0.0
    %1683 = vmatprep.subr.mxu0 0.0
    %1684 = vmatpush2.msra.mxu0 0.0
    %1685 = vmatprep.subr.mxu0 0.0
    %1686 = vmatpush2.msra.mxu0 0.0
    %1687 = vmatprep.subr.mxu0 0.0
    %1688 = vmatpush2.msra.mxu0 0.0
    %1689 = vmatprep.subr.mxu0 0.0
    %1690 = vmatpush2.msra.mxu0 0.0
    %1691 = vmatprep.subr.mxu0 0.0
    %1692 = vmatpush2.msra.mxu0 0.0
    %1693 = vmatprep.subr.mxu0 0.0
    %1694 = vmatpush2.msra.mxu0 0.0
    %1695 = vmatprep.subr.mxu0 0.0
    %1696 = vmatpush2.msra.mxu0 0.0
    %1697 = vmatprep.subr.mxu0 0.0
    %1698 = vmatpush2.msra.mxu0 0.0
    %1699 = vmatprep.mubr.f32.mxu0 0.0
    %v1700 = vand.u32 %v1164, 4294901760
    %v1701 = vsub.f32 %v1164, %v1700
    %v1702 = vand.u32 %v1701, 4294901760
    %v1703 = vsub.f32 %v1701, %v1702
    %v1704 = vand.u32 %v1703, 4294901760
    %1705 = vmatmul.mubr.f32.gmra.mxu0 %v1704
    %v1706 = vpop.f32.mrf.mxu0
    %v1707 = vadd.f32 %v1631, %v1706
    %v1708 = vpop.f32.mrf.mxu0
    %1709 = vdwg.mxu0
    %1710 = vmatprep.subr.mxu0 0.0
    %1711 = vmatpush1.msra.mxu0 0.0
    %1712 = vmatprep.subr.mxu0 0.0
    %1713 = vmatpush1.msra.mxu0 0.0
    %1714 = vmatprep.subr.mxu0 0.0
    %1715 = vmatpush1.msra.mxu0 0.0
    %1716 = vmatprep.subr.mxu0 0.0
    %1717 = vmatpush1.msra.mxu0 0.0
    %1718 = vmatprep.subr.mxu0 0.0
    %1719 = vmatpush1.msra.mxu0 0.0
    %1720 = vmatprep.subr.mxu0 0.0
    %1721 = vmatpush1.msra.mxu0 0.0
    %1722 = vmatprep.subr.mxu0 0.0
    %1723 = vmatpush1.msra.mxu0 0.0
    %1724 = vmatprep.subr.mxu0 0.0
    %1725 = vmatpush1.msra.mxu0 0.0
    %1726 = vmatprep.subr.mxu0 0.0
    %1727 = vmatpush1.msra.mxu0 0.0
    %1728 = vmatprep.subr.mxu0 0.0
    %1729 = vmatpush1.msra.mxu0 0.0
    %1730 = vmatprep.subr.mxu0 0.0
    %1731 = vmatpush1.msra.mxu0 0.0
    %1732 = vmatprep.subr.mxu0 0.0
    %1733 = vmatpush1.msra.mxu0 0.0
    %1734 = vmatprep.subr.mxu0 0.0
    %1735 = vmatpush1.msra.mxu0 0.0
    %1736 = vmatprep.subr.mxu0 0.0
    %1737 = vmatpush1.msra.mxu0 0.0
    %1738 = vmatprep.subr.mxu0 0.0
    %v1739 = vand.u32 %v216, 4294901760
    %v1740 = vsub.f32 %v216, %v1739
    %v1741 = vand.u32 %v1740, 4294901760
    %v1742 = vsub.f32 %v1740, %v1741
    %v1743 = vand.u32 %v1742, 4294901760
    %1744 = vmatpush1.msra.mxu0 %v1743
    %1745 = vmatprep.subr.mxu0 0.0
    %v1746 = vand.u32 %v215, 4294901760
    %v1747 = vsub.f32 %v215, %v1746
    %v1748 = vand.u32 %v1747, 4294901760
    %v1749 = vsub.f32 %v1747, %v1748
    %v1750 = vand.u32 %v1749, 4294901760
    %1751 = vmatpush1.msra.mxu0 %v1750
    %1752 = vmatprep.subr.mxu0 0.0
    %1753 = vmatpush2.msra.mxu0 0.0
    %1754 = vmatprep.subr.mxu0 0.0
    %1755 = vmatpush2.msra.mxu0 0.0
    %1756 = vmatprep.subr.mxu0 0.0
    %1757 = vmatpush2.msra.mxu0 0.0
    %1758 = vmatprep.subr.mxu0 0.0
    %1759 = vmatpush2.msra.mxu0 0.0
    %1760 = vmatprep.subr.mxu0 0.0
    %1761 = vmatpush2.msra.mxu0 0.0
    %1762 = vmatprep.subr.mxu0 0.0
    %1763 = vmatpush2.msra.mxu0 0.0
    %1764 = vmatprep.subr.mxu0 0.0
    %1765 = vmatpush2.msra.mxu0 0.0
    %1766 = vmatprep.subr.mxu0 0.0
    %1767 = vmatpush2.msra.mxu0 0.0
    %1768 = vmatprep.subr.mxu0 0.0
    %1769 = vmatpush2.msra.mxu0 0.0
    %1770 = vmatprep.subr.mxu0 0.0
    %1771 = vmatpush2.msra.mxu0 0.0
    %1772 = vmatprep.subr.mxu0 0.0
    %1773 = vmatpush2.msra.mxu0 0.0
    %1774 = vmatprep.subr.mxu0 0.0
    %1775 = vmatpush2.msra.mxu0 0.0
    %1776 = vmatprep.subr.mxu0 0.0
    %1777 = vmatpush2.msra.mxu0 0.0
    %1778 = vmatprep.subr.mxu0 0.0
    %1779 = vmatpush2.msra.mxu0 0.0
    %1780 = vmatprep.subr.mxu0 0.0
    %1781 = vmatpush2.msra.mxu0 0.0
    %1782 = vmatprep.subr.mxu0 0.0
    %1783 = vmatpush2.msra.mxu0 0.0
    %1784 = vmatprep.mubr.f32.mxu0 0.0
    %v1785 = vand.u32 %v1164, 4294901760
    %1786 = vmatmul.mubr.f32.gmra.mxu0 %v1785
    %v1787 = vpop.f32.mrf.mxu0
    %v1788 = vadd.f32 %v1707, %v1787
    %v1789 = vpop.f32.mrf.mxu0
    %1790 = vdwg.mxu0
    %1791 = vmatprep.subr.mxu0 0.0
    %1792 = vmatpush1.msra.mxu0 0.0
    %1793 = vmatprep.subr.mxu0 0.0
    %1794 = vmatpush1.msra.mxu0 0.0
    %1795 = vmatprep.subr.mxu0 0.0
    %1796 = vmatpush1.msra.mxu0 0.0
    %1797 = vmatprep.subr.mxu0 0.0
    %1798 = vmatpush1.msra.mxu0 0.0
    %1799 = vmatprep.subr.mxu0 0.0
    %1800 = vmatpush1.msra.mxu0 0.0
    %1801 = vmatprep.subr.mxu0 0.0
    %1802 = vmatpush1.msra.mxu0 0.0
    %1803 = vmatprep.subr.mxu0 0.0
    %1804 = vmatpush1.msra.mxu0 0.0
    %1805 = vmatprep.subr.mxu0 0.0
    %1806 = vmatpush1.msra.mxu0 0.0
    %1807 = vmatprep.subr.mxu0 0.0
    %1808 = vmatpush1.msra.mxu0 0.0
    %1809 = vmatprep.subr.mxu0 0.0
    %1810 = vmatpush1.msra.mxu0 0.0
    %1811 = vmatprep.subr.mxu0 0.0
    %1812 = vmatpush1.msra.mxu0 0.0
    %1813 = vmatprep.subr.mxu0 0.0
    %1814 = vmatpush1.msra.mxu0 0.0
    %1815 = vmatprep.subr.mxu0 0.0
    %1816 = vmatpush1.msra.mxu0 0.0
    %1817 = vmatprep.subr.mxu0 0.0
    %1818 = vmatpush1.msra.mxu0 0.0
    %1819 = vmatprep.subr.mxu0 0.0
    %v1820 = vand.u32 %v216, 4294901760
    %v1821 = vsub.f32 %v216, %v1820
    %1822 = vmatpush1.msra.mxu0 %v1821
    %1823 = vmatprep.subr.mxu0 0.0
    %v1824 = vand.u32 %v215, 4294901760
    %v1825 = vsub.f32 %v215, %v1824
    %1826 = vmatpush1.msra.mxu0 %v1825
    %1827 = vmatprep.subr.mxu0 0.0
    %1828 = vmatpush2.msra.mxu0 0.0
    %1829 = vmatprep.subr.mxu0 0.0
    %1830 = vmatpush2.msra.mxu0 0.0
    %1831 = vmatprep.subr.mxu0 0.0
    %1832 = vmatpush2.msra.mxu0 0.0
    %1833 = vmatprep.subr.mxu0 0.0
    %1834 = vmatpush2.msra.mxu0 0.0
    %1835 = vmatprep.subr.mxu0 0.0
    %1836 = vmatpush2.msra.mxu0 0.0
    %1837 = vmatprep.subr.mxu0 0.0
    %1838 = vmatpush2.msra.mxu0 0.0
    %1839 = vmatprep.subr.mxu0 0.0
    %1840 = vmatpush2.msra.mxu0 0.0
    %1841 = vmatprep.subr.mxu0 0.0
    %1842 = vmatpush2.msra.mxu0 0.0
    %1843 = vmatprep.subr.mxu0 0.0
    %1844 = vmatpush2.msra.mxu0 0.0
    %1845 = vmatprep.subr.mxu0 0.0
    %1846 = vmatpush2.msra.mxu0 0.0
    %1847 = vmatprep.subr.mxu0 0.0
    %1848 = vmatpush2.msra.mxu0 0.0
    %1849 = vmatprep.subr.mxu0 0.0
    %1850 = vmatpush2.msra.mxu0 0.0
    %1851 = vmatprep.subr.mxu0 0.0
    %1852 = vmatpush2.msra.mxu0 0.0
    %1853 = vmatprep.subr.mxu0 0.0
    %1854 = vmatpush2.msra.mxu0 0.0
    %1855 = vmatprep.subr.mxu0 0.0
    %1856 = vmatpush2.msra.mxu0 0.0
    %1857 = vmatprep.subr.mxu0 0.0
    %1858 = vmatpush2.msra.mxu0 0.0
    %1859 = vmatprep.mubr.f32.mxu0 0.0
    %v1860 = vand.u32 %v1164, 4294901760
    %v1861 = vsub.f32 %v1164, %v1860
    %1862 = vmatmul.mubr.f32.gmra.mxu0 %v1861
    %v1863 = vpop.f32.mrf.mxu0
    %v1864 = vadd.f32 %v1788, %v1863
    %v1865 = vpop.f32.mrf.mxu0
    %1866 = vdwg.mxu0
    %1867 = vmatprep.subr.mxu0 0.0
    %1868 = vmatpush1.msra.mxu0 0.0
    %1869 = vmatprep.subr.mxu0 0.0
    %1870 = vmatpush1.msra.mxu0 0.0
    %1871 = vmatprep.subr.mxu0 0.0
    %1872 = vmatpush1.msra.mxu0 0.0
    %1873 = vmatprep.subr.mxu0 0.0
    %1874 = vmatpush1.msra.mxu0 0.0
    %1875 = vmatprep.subr.mxu0 0.0
    %1876 = vmatpush1.msra.mxu0 0.0
    %1877 = vmatprep.subr.mxu0 0.0
    %1878 = vmatpush1.msra.mxu0 0.0
    %1879 = vmatprep.subr.mxu0 0.0
    %1880 = vmatpush1.msra.mxu0 0.0
    %1881 = vmatprep.subr.mxu0 0.0
    %1882 = vmatpush1.msra.mxu0 0.0
    %1883 = vmatprep.subr.mxu0 0.0
    %1884 = vmatpush1.msra.mxu0 0.0
    %1885 = vmatprep.subr.mxu0 0.0
    %1886 = vmatpush1.msra.mxu0 0.0
    %1887 = vmatprep.subr.mxu0 0.0
    %1888 = vmatpush1.msra.mxu0 0.0
    %1889 = vmatprep.subr.mxu0 0.0
    %1890 = vmatpush1.msra.mxu0 0.0
    %1891 = vmatprep.subr.mxu0 0.0
    %1892 = vmatpush1.msra.mxu0 0.0
    %1893 = vmatprep.subr.mxu0 0.0
    %1894 = vmatpush1.msra.mxu0 0.0
    %1895 = vmatprep.subr.mxu0 0.0
    %v1896 = vand.u32 %v216, 4294901760
    %1897 = vmatpush1.msra.mxu0 %v1896
    %1898 = vmatprep.subr.mxu0 0.0
    %v1899 = vand.u32 %v215, 4294901760
    %1900 = vmatpush1.msra.mxu0 %v1899
    %1901 = vmatprep.subr.mxu0 0.0
    %1902 = vmatpush2.msra.mxu0 0.0
    %1903 = vmatprep.subr.mxu0 0.0
    %1904 = vmatpush2.msra.mxu0 0.0
    %1905 = vmatprep.subr.mxu0 0.0
    %1906 = vmatpush2.msra.mxu0 0.0
    %1907 = vmatprep.subr.mxu0 0.0
    %1908 = vmatpush2.msra.mxu0 0.0
    %1909 = vmatprep.subr.mxu0 0.0
    %1910 = vmatpush2.msra.mxu0 0.0
    %1911 = vmatprep.subr.mxu0 0.0
    %1912 = vmatpush2.msra.mxu0 0.0
    %1913 = vmatprep.subr.mxu0 0.0
    %1914 = vmatpush2.msra.mxu0 0.0
    %1915 = vmatprep.subr.mxu0 0.0
    %1916 = vmatpush2.msra.mxu0 0.0
    %1917 = vmatprep.subr.mxu0 0.0
    %1918 = vmatpush2.msra.mxu0 0.0
    %1919 = vmatprep.subr.mxu0 0.0
    %1920 = vmatpush2.msra.mxu0 0.0
    %1921 = vmatprep.subr.mxu0 0.0
    %1922 = vmatpush2.msra.mxu0 0.0
    %1923 = vmatprep.subr.mxu0 0.0
    %1924 = vmatpush2.msra.mxu0 0.0
    %1925 = vmatprep.subr.mxu0 0.0
    %1926 = vmatpush2.msra.mxu0 0.0
    %1927 = vmatprep.subr.mxu0 0.0
    %1928 = vmatpush2.msra.mxu0 0.0
    %1929 = vmatprep.subr.mxu0 0.0
    %1930 = vmatpush2.msra.mxu0 0.0
    %1931 = vmatprep.subr.mxu0 0.0
    %1932 = vmatpush2.msra.mxu0 0.0
    %1933 = vmatprep.mubr.f32.mxu0 0.0
    %v1934 = vand.u32 %v1164, 4294901760
    %v1935 = vsub.f32 %v1164, %v1934
    %v1936 = vand.u32 %v1935, 4294901760
    %1937 = vmatmul.mubr.f32.gmra.mxu0 %v1936
    %v1938 = vpop.f32.mrf.mxu0
    %v1939 = vadd.f32 %v1864, %v1938
    %v1940 = vpop.f32.mrf.mxu0
    %1941 = vdwg.mxu0
    %1942 = vmatprep.subr.mxu0 0.0
    %1943 = vmatpush1.msra.mxu0 0.0
    %1944 = vmatprep.subr.mxu0 0.0
    %1945 = vmatpush1.msra.mxu0 0.0
    %1946 = vmatprep.subr.mxu0 0.0
    %1947 = vmatpush1.msra.mxu0 0.0
    %1948 = vmatprep.subr.mxu0 0.0
    %1949 = vmatpush1.msra.mxu0 0.0
    %1950 = vmatprep.subr.mxu0 0.0
    %1951 = vmatpush1.msra.mxu0 0.0
    %1952 = vmatprep.subr.mxu0 0.0
    %1953 = vmatpush1.msra.mxu0 0.0
    %1954 = vmatprep.subr.mxu0 0.0
    %1955 = vmatpush1.msra.mxu0 0.0
    %1956 = vmatprep.subr.mxu0 0.0
    %1957 = vmatpush1.msra.mxu0 0.0
    %1958 = vmatprep.subr.mxu0 0.0
    %1959 = vmatpush1.msra.mxu0 0.0
    %1960 = vmatprep.subr.mxu0 0.0
    %1961 = vmatpush1.msra.mxu0 0.0
    %1962 = vmatprep.subr.mxu0 0.0
    %1963 = vmatpush1.msra.mxu0 0.0
    %1964 = vmatprep.subr.mxu0 0.0
    %1965 = vmatpush1.msra.mxu0 0.0
    %1966 = vmatprep.subr.mxu0 0.0
    %1967 = vmatpush1.msra.mxu0 0.0
    %1968 = vmatprep.subr.mxu0 0.0
    %1969 = vmatpush1.msra.mxu0 0.0
    %1970 = vmatprep.subr.mxu0 0.0
    %v1971 = vand.u32 %v216, 4294901760
    %v1972 = vsub.f32 %v216, %v1971
    %v1973 = vand.u32 %v1972, 4294901760
    %1974 = vmatpush1.msra.mxu0 %v1973
    %1975 = vmatprep.subr.mxu0 0.0
    %v1976 = vand.u32 %v215, 4294901760
    %v1977 = vsub.f32 %v215, %v1976
    %v1978 = vand.u32 %v1977, 4294901760
    %1979 = vmatpush1.msra.mxu0 %v1978
    %1980 = vmatprep.subr.mxu0 0.0
    %1981 = vmatpush2.msra.mxu0 0.0
    %1982 = vmatprep.subr.mxu0 0.0
    %1983 = vmatpush2.msra.mxu0 0.0
    %1984 = vmatprep.subr.mxu0 0.0
    %1985 = vmatpush2.msra.mxu0 0.0
    %1986 = vmatprep.subr.mxu0 0.0
    %1987 = vmatpush2.msra.mxu0 0.0
    %1988 = vmatprep.subr.mxu0 0.0
    %1989 = vmatpush2.msra.mxu0 0.0
    %1990 = vmatprep.subr.mxu0 0.0
    %1991 = vmatpush2.msra.mxu0 0.0
    %1992 = vmatprep.subr.mxu0 0.0
    %1993 = vmatpush2.msra.mxu0 0.0
    %1994 = vmatprep.subr.mxu0 0.0
    %1995 = vmatpush2.msra.mxu0 0.0
    %1996 = vmatprep.subr.mxu0 0.0
    %1997 = vmatpush2.msra.mxu0 0.0
    %1998 = vmatprep.subr.mxu0 0.0
    %1999 = vmatpush2.msra.mxu0 0.0
    %2000 = vmatprep.subr.mxu0 0.0
    %2001 = vmatpush2.msra.mxu0 0.0
    %2002 = vmatprep.subr.mxu0 0.0
    %2003 = vmatpush2.msra.mxu0 0.0
    %2004 = vmatprep.subr.mxu0 0.0
    %2005 = vmatpush2.msra.mxu0 0.0
    %2006 = vmatprep.subr.mxu0 0.0
    %2007 = vmatpush2.msra.mxu0 0.0
    %2008 = vmatprep.subr.mxu0 0.0
    %2009 = vmatpush2.msra.mxu0 0.0
    %2010 = vmatprep.subr.mxu0 0.0
    %2011 = vmatpush2.msra.mxu0 0.0
    %2012 = vmatprep.mubr.f32.mxu0 0.0
    %v2013 = vand.u32 %v1164, 4294901760
    %2014 = vmatmul.mubr.f32.gmra.mxu0 %v2013
    %v2015 = vpop.f32.mrf.mxu0
    %v2016 = vadd.f32 %v1939, %v2015
    %v2017 = vpop.f32.mrf.mxu0
    %2018 = vdwg.mxu0
    %2019 = vmatprep.subr.mxu0 0.0
    %2020 = vmatpush1.msra.mxu0 0.0
    %2021 = vmatprep.subr.mxu0 0.0
    %2022 = vmatpush1.msra.mxu0 0.0
    %2023 = vmatprep.subr.mxu0 0.0
    %2024 = vmatpush1.msra.mxu0 0.0
    %2025 = vmatprep.subr.mxu0 0.0
    %2026 = vmatpush1.msra.mxu0 0.0
    %2027 = vmatprep.subr.mxu0 0.0
    %2028 = vmatpush1.msra.mxu0 0.0
    %2029 = vmatprep.subr.mxu0 0.0
    %2030 = vmatpush1.msra.mxu0 0.0
    %2031 = vmatprep.subr.mxu0 0.0
    %2032 = vmatpush1.msra.mxu0 0.0
    %2033 = vmatprep.subr.mxu0 0.0
    %2034 = vmatpush1.msra.mxu0 0.0
    %2035 = vmatprep.subr.mxu0 0.0
    %2036 = vmatpush1.msra.mxu0 0.0
    %2037 = vmatprep.subr.mxu0 0.0
    %2038 = vmatpush1.msra.mxu0 0.0
    %2039 = vmatprep.subr.mxu0 0.0
    %2040 = vmatpush1.msra.mxu0 0.0
    %2041 = vmatprep.subr.mxu0 0.0
    %2042 = vmatpush1.msra.mxu0 0.0
    %2043 = vmatprep.subr.mxu0 0.0
    %2044 = vmatpush1.msra.mxu0 0.0
    %2045 = vmatprep.subr.mxu0 0.0
    %2046 = vmatpush1.msra.mxu0 0.0
    %2047 = vmatprep.subr.mxu0 0.0
    %v2048 = vand.u32 %v216, 4294901760
    %2049 = vmatpush1.msra.mxu0 %v2048
    %2050 = vmatprep.subr.mxu0 0.0
    %v2051 = vand.u32 %v215, 4294901760
    %2052 = vmatpush1.msra.mxu0 %v2051
    %2053 = vmatprep.subr.mxu0 0.0
    %2054 = vmatpush2.msra.mxu0 0.0
    %2055 = vmatprep.subr.mxu0 0.0
    %2056 = vmatpush2.msra.mxu0 0.0
    %2057 = vmatprep.subr.mxu0 0.0
    %2058 = vmatpush2.msra.mxu0 0.0
    %2059 = vmatprep.subr.mxu0 0.0
    %2060 = vmatpush2.msra.mxu0 0.0
    %2061 = vmatprep.subr.mxu0 0.0
    %2062 = vmatpush2.msra.mxu0 0.0
    %2063 = vmatprep.subr.mxu0 0.0
    %2064 = vmatpush2.msra.mxu0 0.0
    %2065 = vmatprep.subr.mxu0 0.0
    %2066 = vmatpush2.msra.mxu0 0.0
    %2067 = vmatprep.subr.mxu0 0.0
    %2068 = vmatpush2.msra.mxu0 0.0
    %2069 = vmatprep.subr.mxu0 0.0
    %2070 = vmatpush2.msra.mxu0 0.0
    %2071 = vmatprep.subr.mxu0 0.0
    %2072 = vmatpush2.msra.mxu0 0.0
    %2073 = vmatprep.subr.mxu0 0.0
    %2074 = vmatpush2.msra.mxu0 0.0
    %2075 = vmatprep.subr.mxu0 0.0
    %2076 = vmatpush2.msra.mxu0 0.0
    %2077 = vmatprep.subr.mxu0 0.0
    %2078 = vmatpush2.msra.mxu0 0.0
    %2079 = vmatprep.subr.mxu0 0.0
    %2080 = vmatpush2.msra.mxu0 0.0
    %2081 = vmatprep.subr.mxu0 0.0
    %2082 = vmatpush2.msra.mxu0 0.0
    %2083 = vmatprep.subr.mxu0 0.0
    %2084 = vmatpush2.msra.mxu0 0.0
    %2085 = vmatprep.mubr.f32.mxu0 0.0
    %v2086 = vand.u32 %v1164, 4294901760
    %2087 = vmatmul.mubr.f32.gmra.mxu0 %v2086
    %v2088 = vpop.f32.mrf.mxu0
    %v2089 = vadd.f32 %v2016, %v2088
    %v2090 = vpop.f32.mrf.mxu0
    %2091 = vdwg.mxu0
    %v2092 = vmul.f32 %v1626, 1.442695
    %v2093 = vpow.pop %v2092
    %v2094 = vmul.f32 %v205, %v2093
    %v2095 = vadd.f32 %v2094, %v2089
    %v2096 = vld [vmem:[%s10] sm:$0xff]
    %v2097 = vld [vmem:[%s10 + $0x8] sm:$0xff]
    %v2098 = vld [vmem:[%s11] sm:$0x1]
    %v2099 = vld [vmem:[#allocation16] sm:$0xff]
    %v2100 = vld [vmem:[#allocation16 + $0x8] sm:$0xff]
    %v2101 = vld [vmem:[%s13] sm:$0x1]
    %v2102 = vld [vmem:[#allocation17] sm:$0xff]
    %v2103 = vld [vmem:[#allocation17 + $0x8] sm:$0xff]
    %v2104 = vld [vmem:[%s15] sm:$0x1]
    %v2105 = vld [vmem:[#allocation19] sm:$0xff]
    %v2106 = vld [vmem:[#allocation19 + $0x8] sm:$0xff]
    %v2107 = vld [vmem:[%s17] sm:$0x1]
    %v2109 = vlaneseq
    %v2110 = vshrl.u32 %v2109, 7
    %v2111 = vsub.s32 0, %v2110
    %v2112 = vrot.slane %v2098, %v2111
    %v2115 = vsel %vm224, %v2095, 0
    %2117 = vmatprep.subr.mxu0 0.0
    %2118 = vmatpush1.msra.mxu0 0.0
    %2119 = vmatprep.subr.mxu0 0.0
    %2120 = vmatpush1.msra.mxu0 0.0
    %2121 = vmatprep.subr.mxu0 0.0
    %2122 = vmatpush1.msra.mxu0 0.0
    %2123 = vmatprep.subr.mxu0 0.0
    %2124 = vmatpush1.msra.mxu0 0.0
    %2125 = vmatprep.subr.mxu0 0.0
    %2126 = vmatpush1.msra.mxu0 0.0
    %2127 = vmatprep.subr.mxu0 0.0
    %2128 = vmatpush1.msra.mxu0 0.0
    %2129 = vmatprep.subr.mxu0 0.0
    %2130 = vmatpush1.msra.mxu0 0.0
    %2131 = vmatprep.subr.mxu0 0.0
    %2132 = vmatpush1.msra.mxu0 0.0
    %2133 = vmatprep.subr.mxu0 0.0
    %2134 = vmatpush1.msra.mxu0 0.0
    %2135 = vmatprep.subr.mxu0 0.0
    %2136 = vmatpush1.msra.mxu0 0.0
    %2137 = vmatprep.subr.mxu0 0.0
    %2138 = vmatpush1.msra.mxu0 0.0
    %2139 = vmatprep.subr.mxu0 0.0
    %2140 = vmatpush1.msra.mxu0 0.0
    %2141 = vmatprep.subr.mxu0 0.0
    %2142 = vmatpush1.msra.mxu0 0.0
    %2143 = vmatprep.subr.mxu0 0.0
    %2144 = vmatpush1.msra.mxu0 0.0
    %2145 = vmatprep.subr.mxu0 0.0
    %v2146 = vand.u32 %v2097, 4294901760
    %2147 = vmatpush1.msra.mxu0 %v2146
    %2148 = vmatprep.subr.mxu0 0.0
    %v2149 = vand.u32 %v2096, 4294901760
    %2150 = vmatpush1.msra.mxu0 %v2149
    %2151 = vmatprep.subr.mxu0 0.0
    %2152 = vmatpush2.msra.mxu0 0.0
    %2153 = vmatprep.subr.mxu0 0.0
    %2154 = vmatpush2.msra.mxu0 0.0
    %2155 = vmatprep.subr.mxu0 0.0
    %2156 = vmatpush2.msra.mxu0 0.0
    %2157 = vmatprep.subr.mxu0 0.0
    %2158 = vmatpush2.msra.mxu0 0.0
    %2159 = vmatprep.subr.mxu0 0.0
    %2160 = vmatpush2.msra.mxu0 0.0
    %2161 = vmatprep.subr.mxu0 0.0
    %2162 = vmatpush2.msra.mxu0 0.0
    %2163 = vmatprep.subr.mxu0 0.0
    %2164 = vmatpush2.msra.mxu0 0.0
    %2165 = vmatprep.subr.mxu0 0.0
    %2166 = vmatpush2.msra.mxu0 0.0
    %2167 = vmatprep.subr.mxu0 0.0
    %2168 = vmatpush2.msra.mxu0 0.0
    %2169 = vmatprep.subr.mxu0 0.0
    %2170 = vmatpush2.msra.mxu0 0.0
    %2171 = vmatprep.subr.mxu0 0.0
    %2172 = vmatpush2.msra.mxu0 0.0
    %2173 = vmatprep.subr.mxu0 0.0
    %2174 = vmatpush2.msra.mxu0 0.0
    %2175 = vmatprep.subr.mxu0 0.0
    %2176 = vmatpush2.msra.mxu0 0.0
    %2177 = vmatprep.subr.mxu0 0.0
    %2178 = vmatpush2.msra.mxu0 0.0
    %2179 = vmatprep.subr.mxu0 0.0
    %2180 = vmatpush2.msra.mxu0 0.0
    %2181 = vmatprep.subr.mxu0 0.0
    %2182 = vmatpush2.msra.mxu0 0.0
    %2183 = vmatprep.mubr.f32.mxu0 0.0
    %v2184 = vand.u32 %v2115, 4294901760
    %v2185 = vsub.f32 %v2115, %v2184
    %v2186 = vand.u32 %v2185, 4294901760
    %v2187 = vsub.f32 %v2185, %v2186
    %v2188 = vand.u32 %v2187, 4294901760
    %2189 = vmatmul.mubr.f32.gmra.mxu0 %v2188
    %v2190 = vpop.f32.mrf.mxu0
    %v2191 = vadd.f32 %v2112, %v2190
    %v2192 = vpop.f32.mrf.mxu0
    %2193 = vdwg.mxu0
    %2194 = vmatprep.subr.mxu0 0.0
    %2195 = vmatpush1.msra.mxu0 0.0
    %2196 = vmatprep.subr.mxu0 0.0
    %2197 = vmatpush1.msra.mxu0 0.0
    %2198 = vmatprep.subr.mxu0 0.0
    %2199 = vmatpush1.msra.mxu0 0.0
    %2200 = vmatprep.subr.mxu0 0.0
    %2201 = vmatpush1.msra.mxu0 0.0
    %2202 = vmatprep.subr.mxu0 0.0
    %2203 = vmatpush1.msra.mxu0 0.0
    %2204 = vmatprep.subr.mxu0 0.0
    %2205 = vmatpush1.msra.mxu0 0.0
    %2206 = vmatprep.subr.mxu0 0.0
    %2207 = vmatpush1.msra.mxu0 0.0
    %2208 = vmatprep.subr.mxu0 0.0
    %2209 = vmatpush1.msra.mxu0 0.0
    %2210 = vmatprep.subr.mxu0 0.0
    %2211 = vmatpush1.msra.mxu0 0.0
    %2212 = vmatprep.subr.mxu0 0.0
    %2213 = vmatpush1.msra.mxu0 0.0
    %2214 = vmatprep.subr.mxu0 0.0
    %2215 = vmatpush1.msra.mxu0 0.0
    %2216 = vmatprep.subr.mxu0 0.0
    %2217 = vmatpush1.msra.mxu0 0.0
    %2218 = vmatprep.subr.mxu0 0.0
    %2219 = vmatpush1.msra.mxu0 0.0
    %2220 = vmatprep.subr.mxu0 0.0
    %2221 = vmatpush1.msra.mxu0 0.0
    %2222 = vmatprep.subr.mxu0 0.0
    %v2223 = vand.u32 %v2097, 4294901760
    %v2224 = vsub.f32 %v2097, %v2223
    %v2225 = vand.u32 %v2224, 4294901760
    %v2226 = vsub.f32 %v2224, %v2225
    %v2227 = vand.u32 %v2226, 4294901760
    %2228 = vmatpush1.msra.mxu0 %v2227
    %2229 = vmatprep.subr.mxu0 0.0
    %v2230 = vand.u32 %v2096, 4294901760
    %v2231 = vsub.f32 %v2096, %v2230
    %v2232 = vand.u32 %v2231, 4294901760
    %v2233 = vsub.f32 %v2231, %v2232
    %v2234 = vand.u32 %v2233, 4294901760
    %2235 = vmatpush1.msra.mxu0 %v2234
    %2236 = vmatprep.subr.mxu0 0.0
    %2237 = vmatpush2.msra.mxu0 0.0
    %2238 = vmatprep.subr.mxu0 0.0
    %2239 = vmatpush2.msra.mxu0 0.0
    %2240 = vmatprep.subr.mxu0 0.0
    %2241 = vmatpush2.msra.mxu0 0.0
    %2242 = vmatprep.subr.mxu0 0.0
    %2243 = vmatpush2.msra.mxu0 0.0
    %2244 = vmatprep.subr.mxu0 0.0
    %2245 = vmatpush2.msra.mxu0 0.0
    %2246 = vmatprep.subr.mxu0 0.0
    %2247 = vmatpush2.msra.mxu0 0.0
    %2248 = vmatprep.subr.mxu0 0.0
    %2249 = vmatpush2.msra.mxu0 0.0
    %2250 = vmatprep.subr.mxu0 0.0
    %2251 = vmatpush2.msra.mxu0 0.0
    %2252 = vmatprep.subr.mxu0 0.0
    %2253 = vmatpush2.msra.mxu0 0.0
    %2254 = vmatprep.subr.mxu0 0.0
    %2255 = vmatpush2.msra.mxu0 0.0
    %2256 = vmatprep.subr.mxu0 0.0
    %2257 = vmatpush2.msra.mxu0 0.0
    %2258 = vmatprep.subr.mxu0 0.0
    %2259 = vmatpush2.msra.mxu0 0.0
    %2260 = vmatprep.subr.mxu0 0.0
    %2261 = vmatpush2.msra.mxu0 0.0
    %2262 = vmatprep.subr.mxu0 0.0
    %2263 = vmatpush2.msra.mxu0 0.0
    %2264 = vmatprep.subr.mxu0 0.0
    %2265 = vmatpush2.msra.mxu0 0.0
    %2266 = vmatprep.subr.mxu0 0.0
    %2267 = vmatpush2.msra.mxu0 0.0
    %2268 = vmatprep.mubr.f32.mxu0 0.0
    %v2269 = vand.u32 %v2115, 4294901760
    %2270 = vmatmul.mubr.f32.gmra.mxu0 %v2269
    %v2271 = vpop.f32.mrf.mxu0
    %v2272 = vadd.f32 %v2191, %v2271
    %v2273 = vpop.f32.mrf.mxu0
    %2274 = vdwg.mxu0
    %2275 = vmatprep.subr.mxu0 0.0
    %2276 = vmatpush1.msra.mxu0 0.0
    %2277 = vmatprep.subr.mxu0 0.0
    %2278 = vmatpush1.msra.mxu0 0.0
    %2279 = vmatprep.subr.mxu0 0.0
    %2280 = vmatpush1.msra.mxu0 0.0
    %2281 = vmatprep.subr.mxu0 0.0
    %2282 = vmatpush1.msra.mxu0 0.0
    %2283 = vmatprep.subr.mxu0 0.0
    %2284 = vmatpush1.msra.mxu0 0.0
    %2285 = vmatprep.subr.mxu0 0.0
    %2286 = vmatpush1.msra.mxu0 0.0
    %2287 = vmatprep.subr.mxu0 0.0
    %2288 = vmatpush1.msra.mxu0 0.0
    %2289 = vmatprep.subr.mxu0 0.0
    %2290 = vmatpush1.msra.mxu0 0.0
    %2291 = vmatprep.subr.mxu0 0.0
    %2292 = vmatpush1.msra.mxu0 0.0
    %2293 = vmatprep.subr.mxu0 0.0
    %2294 = vmatpush1.msra.mxu0 0.0
    %2295 = vmatprep.subr.mxu0 0.0
    %2296 = vmatpush1.msra.mxu0 0.0
    %2297 = vmatprep.subr.mxu0 0.0
    %2298 = vmatpush1.msra.mxu0 0.0
    %2299 = vmatprep.subr.mxu0 0.0
    %2300 = vmatpush1.msra.mxu0 0.0
    %2301 = vmatprep.subr.mxu0 0.0
    %2302 = vmatpush1.msra.mxu0 0.0
    %2303 = vmatprep.subr.mxu0 0.0
    %v2304 = vand.u32 %v2097, 4294901760
    %v2305 = vsub.f32 %v2097, %v2304
    %2306 = vmatpush1.msra.mxu0 %v2305
    %2307 = vmatprep.subr.mxu0 0.0
    %v2308 = vand.u32 %v2096, 4294901760
    %v2309 = vsub.f32 %v2096, %v2308
    %2310 = vmatpush1.msra.mxu0 %v2309
    %2311 = vmatprep.subr.mxu0 0.0
    %2312 = vmatpush2.msra.mxu0 0.0
    %2313 = vmatprep.subr.mxu0 0.0
    %2314 = vmatpush2.msra.mxu0 0.0
    %2315 = vmatprep.subr.mxu0 0.0
    %2316 = vmatpush2.msra.mxu0 0.0
    %2317 = vmatprep.subr.mxu0 0.0
    %2318 = vmatpush2.msra.mxu0 0.0
    %2319 = vmatprep.subr.mxu0 0.0
    %2320 = vmatpush2.msra.mxu0 0.0
    %2321 = vmatprep.subr.mxu0 0.0
    %2322 = vmatpush2.msra.mxu0 0.0
    %2323 = vmatprep.subr.mxu0 0.0
    %2324 = vmatpush2.msra.mxu0 0.0
    %2325 = vmatprep.subr.mxu0 0.0
    %2326 = vmatpush2.msra.mxu0 0.0
    %2327 = vmatprep.subr.mxu0 0.0
    %2328 = vmatpush2.msra.mxu0 0.0
    %2329 = vmatprep.subr.mxu0 0.0
    %2330 = vmatpush2.msra.mxu0 0.0
    %2331 = vmatprep.subr.mxu0 0.0
    %2332 = vmatpush2.msra.mxu0 0.0
    %2333 = vmatprep.subr.mxu0 0.0
    %2334 = vmatpush2.msra.mxu0 0.0
    %2335 = vmatprep.subr.mxu0 0.0
    %2336 = vmatpush2.msra.mxu0 0.0
    %2337 = vmatprep.subr.mxu0 0.0
    %2338 = vmatpush2.msra.mxu0 0.0
    %2339 = vmatprep.subr.mxu0 0.0
    %2340 = vmatpush2.msra.mxu0 0.0
    %2341 = vmatprep.subr.mxu0 0.0
    %2342 = vmatpush2.msra.mxu0 0.0
    %2343 = vmatprep.mubr.f32.mxu0 0.0
    %v2344 = vand.u32 %v2115, 4294901760
    %v2345 = vsub.f32 %v2115, %v2344
    %2346 = vmatmul.mubr.f32.gmra.mxu0 %v2345
    %v2347 = vpop.f32.mrf.mxu0
    %v2348 = vadd.f32 %v2272, %v2347
    %v2349 = vpop.f32.mrf.mxu0
    %2350 = vdwg.mxu0
    %2351 = vmatprep.subr.mxu0 0.0
    %2352 = vmatpush1.msra.mxu0 0.0
    %2353 = vmatprep.subr.mxu0 0.0
    %2354 = vmatpush1.msra.mxu0 0.0
    %2355 = vmatprep.subr.mxu0 0.0
    %2356 = vmatpush1.msra.mxu0 0.0
    %2357 = vmatprep.subr.mxu0 0.0
    %2358 = vmatpush1.msra.mxu0 0.0
    %2359 = vmatprep.subr.mxu0 0.0
    %2360 = vmatpush1.msra.mxu0 0.0
    %2361 = vmatprep.subr.mxu0 0.0
    %2362 = vmatpush1.msra.mxu0 0.0
    %2363 = vmatprep.subr.mxu0 0.0
    %2364 = vmatpush1.msra.mxu0 0.0
    %2365 = vmatprep.subr.mxu0 0.0
    %2366 = vmatpush1.msra.mxu0 0.0
    %2367 = vmatprep.subr.mxu0 0.0
    %2368 = vmatpush1.msra.mxu0 0.0
    %2369 = vmatprep.subr.mxu0 0.0
    %2370 = vmatpush1.msra.mxu0 0.0
    %2371 = vmatprep.subr.mxu0 0.0
    %2372 = vmatpush1.msra.mxu0 0.0
    %2373 = vmatprep.subr.mxu0 0.0
    %2374 = vmatpush1.msra.mxu0 0.0
    %2375 = vmatprep.subr.mxu0 0.0
    %2376 = vmatpush1.msra.mxu0 0.0
    %2377 = vmatprep.subr.mxu0 0.0
    %2378 = vmatpush1.msra.mxu0 0.0
    %2379 = vmatprep.subr.mxu0 0.0
    %v2380 = vand.u32 %v2097, 4294901760
    %2381 = vmatpush1.msra.mxu0 %v2380
    %2382 = vmatprep.subr.mxu0 0.0
    %v2383 = vand.u32 %v2096, 4294901760
    %2384 = vmatpush1.msra.mxu0 %v2383
    %2385 = vmatprep.subr.mxu0 0.0
    %2386 = vmatpush2.msra.mxu0 0.0
    %2387 = vmatprep.subr.mxu0 0.0
    %2388 = vmatpush2.msra.mxu0 0.0
    %2389 = vmatprep.subr.mxu0 0.0
    %2390 = vmatpush2.msra.mxu0 0.0
    %2391 = vmatprep.subr.mxu0 0.0
    %2392 = vmatpush2.msra.mxu0 0.0
    %2393 = vmatprep.subr.mxu0 0.0
    %2394 = vmatpush2.msra.mxu0 0.0
    %2395 = vmatprep.subr.mxu0 0.0
    %2396 = vmatpush2.msra.mxu0 0.0
    %2397 = vmatprep.subr.mxu0 0.0
    %2398 = vmatpush2.msra.mxu0 0.0
    %2399 = vmatprep.subr.mxu0 0.0
    %2400 = vmatpush2.msra.mxu0 0.0
    %2401 = vmatprep.subr.mxu0 0.0
    %2402 = vmatpush2.msra.mxu0 0.0
    %2403 = vmatprep.subr.mxu0 0.0
    %2404 = vmatpush2.msra.mxu0 0.0
    %2405 = vmatprep.subr.mxu0 0.0
    %2406 = vmatpush2.msra.mxu0 0.0
    %2407 = vmatprep.subr.mxu0 0.0
    %2408 = vmatpush2.msra.mxu0 0.0
    %2409 = vmatprep.subr.mxu0 0.0
    %2410 = vmatpush2.msra.mxu0 0.0
    %2411 = vmatprep.subr.mxu0 0.0
    %2412 = vmatpush2.msra.mxu0 0.0
    %2413 = vmatprep.subr.mxu0 0.0
    %2414 = vmatpush2.msra.mxu0 0.0
    %2415 = vmatprep.subr.mxu0 0.0
    %2416 = vmatpush2.msra.mxu0 0.0
    %2417 = vmatprep.mubr.f32.mxu0 0.0
    %v2418 = vand.u32 %v2115, 4294901760
    %v2419 = vsub.f32 %v2115, %v2418
    %v2420 = vand.u32 %v2419, 4294901760
    %2421 = vmatmul.mubr.f32.gmra.mxu0 %v2420
    %v2422 = vpop.f32.mrf.mxu0
    %v2423 = vadd.f32 %v2348, %v2422
    %v2424 = vpop.f32.mrf.mxu0
    %2425 = vdwg.mxu0
    %2426 = vmatprep.subr.mxu0 0.0
    %2427 = vmatpush1.msra.mxu0 0.0
    %2428 = vmatprep.subr.mxu0 0.0
    %2429 = vmatpush1.msra.mxu0 0.0
    %2430 = vmatprep.subr.mxu0 0.0
    %2431 = vmatpush1.msra.mxu0 0.0
    %2432 = vmatprep.subr.mxu0 0.0
    %2433 = vmatpush1.msra.mxu0 0.0
    %2434 = vmatprep.subr.mxu0 0.0
    %2435 = vmatpush1.msra.mxu0 0.0
    %2436 = vmatprep.subr.mxu0 0.0
    %2437 = vmatpush1.msra.mxu0 0.0
    %2438 = vmatprep.subr.mxu0 0.0
    %2439 = vmatpush1.msra.mxu0 0.0
    %2440 = vmatprep.subr.mxu0 0.0
    %2441 = vmatpush1.msra.mxu0 0.0
    %2442 = vmatprep.subr.mxu0 0.0
    %2443 = vmatpush1.msra.mxu0 0.0
    %2444 = vmatprep.subr.mxu0 0.0
    %2445 = vmatpush1.msra.mxu0 0.0
    %2446 = vmatprep.subr.mxu0 0.0
    %2447 = vmatpush1.msra.mxu0 0.0
    %2448 = vmatprep.subr.mxu0 0.0
    %2449 = vmatpush1.msra.mxu0 0.0
    %2450 = vmatprep.subr.mxu0 0.0
    %2451 = vmatpush1.msra.mxu0 0.0
    %2452 = vmatprep.subr.mxu0 0.0
    %2453 = vmatpush1.msra.mxu0 0.0
    %2454 = vmatprep.subr.mxu0 0.0
    %v2455 = vand.u32 %v2097, 4294901760
    %v2456 = vsub.f32 %v2097, %v2455
    %v2457 = vand.u32 %v2456, 4294901760
    %2458 = vmatpush1.msra.mxu0 %v2457
    %2459 = vmatprep.subr.mxu0 0.0
    %v2460 = vand.u32 %v2096, 4294901760
    %v2461 = vsub.f32 %v2096, %v2460
    %v2462 = vand.u32 %v2461, 4294901760
    %2463 = vmatpush1.msra.mxu0 %v2462
    %2464 = vmatprep.subr.mxu0 0.0
    %2465 = vmatpush2.msra.mxu0 0.0
    %2466 = vmatprep.subr.mxu0 0.0
    %2467 = vmatpush2.msra.mxu0 0.0
    %2468 = vmatprep.subr.mxu0 0.0
    %2469 = vmatpush2.msra.mxu0 0.0
    %2470 = vmatprep.subr.mxu0 0.0
    %2471 = vmatpush2.msra.mxu0 0.0
    %2472 = vmatprep.subr.mxu0 0.0
    %2473 = vmatpush2.msra.mxu0 0.0
    %2474 = vmatprep.subr.mxu0 0.0
    %2475 = vmatpush2.msra.mxu0 0.0
    %2476 = vmatprep.subr.mxu0 0.0
    %2477 = vmatpush2.msra.mxu0 0.0
    %2478 = vmatprep.subr.mxu0 0.0
    %2479 = vmatpush2.msra.mxu0 0.0
    %2480 = vmatprep.subr.mxu0 0.0
    %2481 = vmatpush2.msra.mxu0 0.0
    %2482 = vmatprep.subr.mxu0 0.0
    %2483 = vmatpush2.msra.mxu0 0.0
    %2484 = vmatprep.subr.mxu0 0.0
    %2485 = vmatpush2.msra.mxu0 0.0
    %2486 = vmatprep.subr.mxu0 0.0
    %2487 = vmatpush2.msra.mxu0 0.0
    %2488 = vmatprep.subr.mxu0 0.0
    %2489 = vmatpush2.msra.mxu0 0.0
    %2490 = vmatprep.subr.mxu0 0.0
    %2491 = vmatpush2.msra.mxu0 0.0
    %2492 = vmatprep.subr.mxu0 0.0
    %2493 = vmatpush2.msra.mxu0 0.0
    %2494 = vmatprep.subr.mxu0 0.0
    %2495 = vmatpush2.msra.mxu0 0.0
    %2496 = vmatprep.mubr.f32.mxu0 0.0
    %v2497 = vand.u32 %v2115, 4294901760
    %2498 = vmatmul.mubr.f32.gmra.mxu0 %v2497
    %v2499 = vpop.f32.mrf.mxu0
    %v2500 = vadd.f32 %v2423, %v2499
    %v2501 = vpop.f32.mrf.mxu0
    %2502 = vdwg.mxu0
    %2503 = vmatprep.subr.mxu0 0.0
    %2504 = vmatpush1.msra.mxu0 0.0
    %2505 = vmatprep.subr.mxu0 0.0
    %2506 = vmatpush1.msra.mxu0 0.0
    %2507 = vmatprep.subr.mxu0 0.0
    %2508 = vmatpush1.msra.mxu0 0.0
    %2509 = vmatprep.subr.mxu0 0.0
    %2510 = vmatpush1.msra.mxu0 0.0
    %2511 = vmatprep.subr.mxu0 0.0
    %2512 = vmatpush1.msra.mxu0 0.0
    %2513 = vmatprep.subr.mxu0 0.0
    %2514 = vmatpush1.msra.mxu0 0.0
    %2515 = vmatprep.subr.mxu0 0.0
    %2516 = vmatpush1.msra.mxu0 0.0
    %2517 = vmatprep.subr.mxu0 0.0
    %2518 = vmatpush1.msra.mxu0 0.0
    %2519 = vmatprep.subr.mxu0 0.0
    %2520 = vmatpush1.msra.mxu0 0.0
    %2521 = vmatprep.subr.mxu0 0.0
    %2522 = vmatpush1.msra.mxu0 0.0
    %2523 = vmatprep.subr.mxu0 0.0
    %2524 = vmatpush1.msra.mxu0 0.0
    %2525 = vmatprep.subr.mxu0 0.0
    %2526 = vmatpush1.msra.mxu0 0.0
    %2527 = vmatprep.subr.mxu0 0.0
    %2528 = vmatpush1.msra.mxu0 0.0
    %2529 = vmatprep.subr.mxu0 0.0
    %2530 = vmatpush1.msra.mxu0 0.0
    %2531 = vmatprep.subr.mxu0 0.0
    %v2532 = vand.u32 %v2097, 4294901760
    %2533 = vmatpush1.msra.mxu0 %v2532
    %2534 = vmatprep.subr.mxu0 0.0
    %v2535 = vand.u32 %v2096, 4294901760
    %2536 = vmatpush1.msra.mxu0 %v2535
    %2537 = vmatprep.subr.mxu0 0.0
    %2538 = vmatpush2.msra.mxu0 0.0
    %2539 = vmatprep.subr.mxu0 0.0
    %2540 = vmatpush2.msra.mxu0 0.0
    %2541 = vmatprep.subr.mxu0 0.0
    %2542 = vmatpush2.msra.mxu0 0.0
    %2543 = vmatprep.subr.mxu0 0.0
    %2544 = vmatpush2.msra.mxu0 0.0
    %2545 = vmatprep.subr.mxu0 0.0
    %2546 = vmatpush2.msra.mxu0 0.0
    %2547 = vmatprep.subr.mxu0 0.0
    %2548 = vmatpush2.msra.mxu0 0.0
    %2549 = vmatprep.subr.mxu0 0.0
    %2550 = vmatpush2.msra.mxu0 0.0
    %2551 = vmatprep.subr.mxu0 0.0
    %2552 = vmatpush2.msra.mxu0 0.0
    %2553 = vmatprep.subr.mxu0 0.0
    %2554 = vmatpush2.msra.mxu0 0.0
    %2555 = vmatprep.subr.mxu0 0.0
    %2556 = vmatpush2.msra.mxu0 0.0
    %2557 = vmatprep.subr.mxu0 0.0
    %2558 = vmatpush2.msra.mxu0 0.0
    %2559 = vmatprep.subr.mxu0 0.0
    %2560 = vmatpush2.msra.mxu0 0.0
    %2561 = vmatprep.subr.mxu0 0.0
    %2562 = vmatpush2.msra.mxu0 0.0
    %2563 = vmatprep.subr.mxu0 0.0
    %2564 = vmatpush2.msra.mxu0 0.0
    %2565 = vmatprep.subr.mxu0 0.0
    %2566 = vmatpush2.msra.mxu0 0.0
    %2567 = vmatprep.subr.mxu0 0.0
    %2568 = vmatpush2.msra.mxu0 0.0
    %2569 = vmatprep.mubr.f32.mxu0 0.0
    %v2570 = vand.u32 %v2115, 4294901760
    %2571 = vmatmul.mubr.f32.gmra.mxu0 %v2570
    %v2572 = vpop.f32.mrf.mxu0
    %v2573 = vadd.f32 %v2500, %v2572
    %v2574 = vpop.f32.mrf.mxu0
    %2575 = vdwg.mxu0
    %v2576 = vmax.f32 %v2573, 0.0
    %v2578 = vlaneseq
    %v2579 = vshrl.u32 %v2578, 7
    %v2580 = vsub.s32 0, %v2579
    %v2581 = vrot.slane %v2101, %v2580
    %v2584 = vsel %vm224, %v2576, 0
    %2586 = vmatprep.subr.mxu0 0.0
    %2587 = vmatpush1.msra.mxu0 0.0
    %2588 = vmatprep.subr.mxu0 0.0
    %2589 = vmatpush1.msra.mxu0 0.0
    %2590 = vmatprep.subr.mxu0 0.0
    %2591 = vmatpush1.msra.mxu0 0.0
    %2592 = vmatprep.subr.mxu0 0.0
    %2593 = vmatpush1.msra.mxu0 0.0
    %2594 = vmatprep.subr.mxu0 0.0
    %2595 = vmatpush1.msra.mxu0 0.0
    %2596 = vmatprep.subr.mxu0 0.0
    %2597 = vmatpush1.msra.mxu0 0.0
    %2598 = vmatprep.subr.mxu0 0.0
    %2599 = vmatpush1.msra.mxu0 0.0
    %2600 = vmatprep.subr.mxu0 0.0
    %2601 = vmatpush1.msra.mxu0 0.0
    %2602 = vmatprep.subr.mxu0 0.0
    %2603 = vmatpush1.msra.mxu0 0.0
    %2604 = vmatprep.subr.mxu0 0.0
    %2605 = vmatpush1.msra.mxu0 0.0
    %2606 = vmatprep.subr.mxu0 0.0
    %2607 = vmatpush1.msra.mxu0 0.0
    %2608 = vmatprep.subr.mxu0 0.0
    %2609 = vmatpush1.msra.mxu0 0.0
    %2610 = vmatprep.subr.mxu0 0.0
    %2611 = vmatpush1.msra.mxu0 0.0
    %2612 = vmatprep.subr.mxu0 0.0
    %2613 = vmatpush1.msra.mxu0 0.0
    %2614 = vmatprep.subr.mxu0 0.0
    %v2615 = vand.u32 %v2100, 4294901760
    %2616 = vmatpush1.msra.mxu0 %v2615
    %2617 = vmatprep.subr.mxu0 0.0
    %v2618 = vand.u32 %v2099, 4294901760
    %2619 = vmatpush1.msra.mxu0 %v2618
    %2620 = vmatprep.subr.mxu0 0.0
    %2621 = vmatpush2.msra.mxu0 0.0
    %2622 = vmatprep.subr.mxu0 0.0
    %2623 = vmatpush2.msra.mxu0 0.0
    %2624 = vmatprep.subr.mxu0 0.0
    %2625 = vmatpush2.msra.mxu0 0.0
    %2626 = vmatprep.subr.mxu0 0.0
    %2627 = vmatpush2.msra.mxu0 0.0
    %2628 = vmatprep.subr.mxu0 0.0
    %2629 = vmatpush2.msra.mxu0 0.0
    %2630 = vmatprep.subr.mxu0 0.0
    %2631 = vmatpush2.msra.mxu0 0.0
    %2632 = vmatprep.subr.mxu0 0.0
    %2633 = vmatpush2.msra.mxu0 0.0
    %2634 = vmatprep.subr.mxu0 0.0
    %2635 = vmatpush2.msra.mxu0 0.0
    %2636 = vmatprep.subr.mxu0 0.0
    %2637 = vmatpush2.msra.mxu0 0.0
    %2638 = vmatprep.subr.mxu0 0.0
    %2639 = vmatpush2.msra.mxu0 0.0
    %2640 = vmatprep.subr.mxu0 0.0
    %2641 = vmatpush2.msra.mxu0 0.0
    %2642 = vmatprep.subr.mxu0 0.0
    %2643 = vmatpush2.msra.mxu0 0.0
    %2644 = vmatprep.subr.mxu0 0.0
    %2645 = vmatpush2.msra.mxu0 0.0
    %2646 = vmatprep.subr.mxu0 0.0
    %2647 = vmatpush2.msra.mxu0 0.0
    %2648 = vmatprep.subr.mxu0 0.0
    %2649 = vmatpush2.msra.mxu0 0.0
    %2650 = vmatprep.subr.mxu0 0.0
    %2651 = vmatpush2.msra.mxu0 0.0
    %2652 = vmatprep.mubr.f32.mxu0 0.0
    %v2653 = vand.u32 %v2584, 4294901760
    %v2654 = vsub.f32 %v2584, %v2653
    %v2655 = vand.u32 %v2654, 4294901760
    %v2656 = vsub.f32 %v2654, %v2655
    %v2657 = vand.u32 %v2656, 4294901760
    %2658 = vmatmul.mubr.f32.gmra.mxu0 %v2657
    %v2659 = vpop.f32.mrf.mxu0
    %v2660 = vadd.f32 %v2581, %v2659
    %v2661 = vpop.f32.mrf.mxu0
    %2662 = vdwg.mxu0
    %2663 = vmatprep.subr.mxu0 0.0
    %2664 = vmatpush1.msra.mxu0 0.0
    %2665 = vmatprep.subr.mxu0 0.0
    %2666 = vmatpush1.msra.mxu0 0.0
    %2667 = vmatprep.subr.mxu0 0.0
    %2668 = vmatpush1.msra.mxu0 0.0
    %2669 = vmatprep.subr.mxu0 0.0
    %2670 = vmatpush1.msra.mxu0 0.0
    %2671 = vmatprep.subr.mxu0 0.0
    %2672 = vmatpush1.msra.mxu0 0.0
    %2673 = vmatprep.subr.mxu0 0.0
    %2674 = vmatpush1.msra.mxu0 0.0
    %2675 = vmatprep.subr.mxu0 0.0
    %2676 = vmatpush1.msra.mxu0 0.0
    %2677 = vmatprep.subr.mxu0 0.0
    %2678 = vmatpush1.msra.mxu0 0.0
    %2679 = vmatprep.subr.mxu0 0.0
    %2680 = vmatpush1.msra.mxu0 0.0
    %2681 = vmatprep.subr.mxu0 0.0
    %2682 = vmatpush1.msra.mxu0 0.0
    %2683 = vmatprep.subr.mxu0 0.0
    %2684 = vmatpush1.msra.mxu0 0.0
    %2685 = vmatprep.subr.mxu0 0.0
    %2686 = vmatpush1.msra.mxu0 0.0
    %2687 = vmatprep.subr.mxu0 0.0
    %2688 = vmatpush1.msra.mxu0 0.0
    %2689 = vmatprep.subr.mxu0 0.0
    %2690 = vmatpush1.msra.mxu0 0.0
    %2691 = vmatprep.subr.mxu0 0.0
    %v2692 = vand.u32 %v2100, 4294901760
    %v2693 = vsub.f32 %v2100, %v2692
    %v2694 = vand.u32 %v2693, 4294901760
    %v2695 = vsub.f32 %v2693, %v2694
    %v2696 = vand.u32 %v2695, 4294901760
    %2697 = vmatpush1.msra.mxu0 %v2696
    %2698 = vmatprep.subr.mxu0 0.0
    %v2699 = vand.u32 %v2099, 4294901760
    %v2700 = vsub.f32 %v2099, %v2699
    %v2701 = vand.u32 %v2700, 4294901760
    %v2702 = vsub.f32 %v2700, %v2701
    %v2703 = vand.u32 %v2702, 4294901760
    %2704 = vmatpush1.msra.mxu0 %v2703
    %2705 = vmatprep.subr.mxu0 0.0
    %2706 = vmatpush2.msra.mxu0 0.0
    %2707 = vmatprep.subr.mxu0 0.0
    %2708 = vmatpush2.msra.mxu0 0.0
    %2709 = vmatprep.subr.mxu0 0.0
    %2710 = vmatpush2.msra.mxu0 0.0
    %2711 = vmatprep.subr.mxu0 0.0
    %2712 = vmatpush2.msra.mxu0 0.0
    %2713 = vmatprep.subr.mxu0 0.0
    %2714 = vmatpush2.msra.mxu0 0.0
    %2715 = vmatprep.subr.mxu0 0.0
    %2716 = vmatpush2.msra.mxu0 0.0
    %2717 = vmatprep.subr.mxu0 0.0
    %2718 = vmatpush2.msra.mxu0 0.0
    %2719 = vmatprep.subr.mxu0 0.0
    %2720 = vmatpush2.msra.mxu0 0.0
    %2721 = vmatprep.subr.mxu0 0.0
    %2722 = vmatpush2.msra.mxu0 0.0
    %2723 = vmatprep.subr.mxu0 0.0
    %2724 = vmatpush2.msra.mxu0 0.0
    %2725 = vmatprep.subr.mxu0 0.0
    %2726 = vmatpush2.msra.mxu0 0.0
    %2727 = vmatprep.subr.mxu0 0.0
    %2728 = vmatpush2.msra.mxu0 0.0
    %2729 = vmatprep.subr.mxu0 0.0
    %2730 = vmatpush2.msra.mxu0 0.0
    %2731 = vmatprep.subr.mxu0 0.0
    %2732 = vmatpush2.msra.mxu0 0.0
    %2733 = vmatprep.subr.mxu0 0.0
    %2734 = vmatpush2.msra.mxu0 0.0
    %2735 = vmatprep.subr.mxu0 0.0
    %2736 = vmatpush2.msra.mxu0 0.0
    %2737 = vmatprep.mubr.f32.mxu0 0.0
    %v2738 = vand.u32 %v2584, 4294901760
    %2739 = vmatmul.mubr.f32.gmra.mxu0 %v2738
    %v2740 = vpop.f32.mrf.mxu0
    %v2741 = vadd.f32 %v2660, %v2740
    %v2742 = vpop.f32.mrf.mxu0
    %2743 = vdwg.mxu0
    %2744 = vmatprep.subr.mxu0 0.0
    %2745 = vmatpush1.msra.mxu0 0.0
    %2746 = vmatprep.subr.mxu0 0.0
    %2747 = vmatpush1.msra.mxu0 0.0
    %2748 = vmatprep.subr.mxu0 0.0
    %2749 = vmatpush1.msra.mxu0 0.0
    %2750 = vmatprep.subr.mxu0 0.0
    %2751 = vmatpush1.msra.mxu0 0.0
    %2752 = vmatprep.subr.mxu0 0.0
    %2753 = vmatpush1.msra.mxu0 0.0
    %2754 = vmatprep.subr.mxu0 0.0
    %2755 = vmatpush1.msra.mxu0 0.0
    %2756 = vmatprep.subr.mxu0 0.0
    %2757 = vmatpush1.msra.mxu0 0.0
    %2758 = vmatprep.subr.mxu0 0.0
    %2759 = vmatpush1.msra.mxu0 0.0
    %2760 = vmatprep.subr.mxu0 0.0
    %2761 = vmatpush1.msra.mxu0 0.0
    %2762 = vmatprep.subr.mxu0 0.0
    %2763 = vmatpush1.msra.mxu0 0.0
    %2764 = vmatprep.subr.mxu0 0.0
    %2765 = vmatpush1.msra.mxu0 0.0
    %2766 = vmatprep.subr.mxu0 0.0
    %2767 = vmatpush1.msra.mxu0 0.0
    %2768 = vmatprep.subr.mxu0 0.0
    %2769 = vmatpush1.msra.mxu0 0.0
    %2770 = vmatprep.subr.mxu0 0.0
    %2771 = vmatpush1.msra.mxu0 0.0
    %2772 = vmatprep.subr.mxu0 0.0
    %v2773 = vand.u32 %v2100, 4294901760
    %v2774 = vsub.f32 %v2100, %v2773
    %2775 = vmatpush1.msra.mxu0 %v2774
    %2776 = vmatprep.subr.mxu0 0.0
    %v2777 = vand.u32 %v2099, 4294901760
    %v2778 = vsub.f32 %v2099, %v2777
    %2779 = vmatpush1.msra.mxu0 %v2778
    %2780 = vmatprep.subr.mxu0 0.0
    %2781 = vmatpush2.msra.mxu0 0.0
    %2782 = vmatprep.subr.mxu0 0.0
    %2783 = vmatpush2.msra.mxu0 0.0
    %2784 = vmatprep.subr.mxu0 0.0
    %2785 = vmatpush2.msra.mxu0 0.0
    %2786 = vmatprep.subr.mxu0 0.0
    %2787 = vmatpush2.msra.mxu0 0.0
    %2788 = vmatprep.subr.mxu0 0.0
    %2789 = vmatpush2.msra.mxu0 0.0
    %2790 = vmatprep.subr.mxu0 0.0
    %2791 = vmatpush2.msra.mxu0 0.0
    %2792 = vmatprep.subr.mxu0 0.0
    %2793 = vmatpush2.msra.mxu0 0.0
    %2794 = vmatprep.subr.mxu0 0.0
    %2795 = vmatpush2.msra.mxu0 0.0
    %2796 = vmatprep.subr.mxu0 0.0
    %2797 = vmatpush2.msra.mxu0 0.0
    %2798 = vmatprep.subr.mxu0 0.0
    %2799 = vmatpush2.msra.mxu0 0.0
    %2800 = vmatprep.subr.mxu0 0.0
    %2801 = vmatpush2.msra.mxu0 0.0
    %2802 = vmatprep.subr.mxu0 0.0
    %2803 = vmatpush2.msra.mxu0 0.0
    %2804 = vmatprep.subr.mxu0 0.0
    %2805 = vmatpush2.msra.mxu0 0.0
    %2806 = vmatprep.subr.mxu0 0.0
    %2807 = vmatpush2.msra.mxu0 0.0
    %2808 = vmatprep.subr.mxu0 0.0
    %2809 = vmatpush2.msra.mxu0 0.0
    %2810 = vmatprep.subr.mxu0 0.0
    %2811 = vmatpush2.msra.mxu0 0.0
    %2812 = vmatprep.mubr.f32.mxu0 0.0
    %v2813 = vand.u32 %v2584, 4294901760
    %v2814 = vsub.f32 %v2584, %v2813
    %2815 = vmatmul.mubr.f32.gmra.mxu0 %v2814
    %v2816 = vpop.f32.mrf.mxu0
    %v2817 = vadd.f32 %v2741, %v2816
    %v2818 = vpop.f32.mrf.mxu0
    %2819 = vdwg.mxu0
    %2820 = vmatprep.subr.mxu0 0.0
    %2821 = vmatpush1.msra.mxu0 0.0
    %2822 = vmatprep.subr.mxu0 0.0
    %2823 = vmatpush1.msra.mxu0 0.0
    %2824 = vmatprep.subr.mxu0 0.0
    %2825 = vmatpush1.msra.mxu0 0.0
    %2826 = vmatprep.subr.mxu0 0.0
    %2827 = vmatpush1.msra.mxu0 0.0
    %2828 = vmatprep.subr.mxu0 0.0
    %2829 = vmatpush1.msra.mxu0 0.0
    %2830 = vmatprep.subr.mxu0 0.0
    %2831 = vmatpush1.msra.mxu0 0.0
    %2832 = vmatprep.subr.mxu0 0.0
    %2833 = vmatpush1.msra.mxu0 0.0
    %2834 = vmatprep.subr.mxu0 0.0
    %2835 = vmatpush1.msra.mxu0 0.0
    %2836 = vmatprep.subr.mxu0 0.0
    %2837 = vmatpush1.msra.mxu0 0.0
    %2838 = vmatprep.subr.mxu0 0.0
    %2839 = vmatpush1.msra.mxu0 0.0
    %2840 = vmatprep.subr.mxu0 0.0
    %2841 = vmatpush1.msra.mxu0 0.0
    %2842 = vmatprep.subr.mxu0 0.0
    %2843 = vmatpush1.msra.mxu0 0.0
    %2844 = vmatprep.subr.mxu0 0.0
    %2845 = vmatpush1.msra.mxu0 0.0
    %2846 = vmatprep.subr.mxu0 0.0
    %2847 = vmatpush1.msra.mxu0 0.0
    %2848 = vmatprep.subr.mxu0 0.0
    %v2849 = vand.u32 %v2100, 4294901760
    %2850 = vmatpush1.msra.mxu0 %v2849
    %2851 = vmatprep.subr.mxu0 0.0
    %v2852 = vand.u32 %v2099, 4294901760
    %2853 = vmatpush1.msra.mxu0 %v2852
    %2854 = vmatprep.subr.mxu0 0.0
    %2855 = vmatpush2.msra.mxu0 0.0
    %2856 = vmatprep.subr.mxu0 0.0
    %2857 = vmatpush2.msra.mxu0 0.0
    %2858 = vmatprep.subr.mxu0 0.0
    %2859 = vmatpush2.msra.mxu0 0.0
    %2860 = vmatprep.subr.mxu0 0.0
    %2861 = vmatpush2.msra.mxu0 0.0
    %2862 = vmatprep.subr.mxu0 0.0
    %2863 = vmatpush2.msra.mxu0 0.0
    %2864 = vmatprep.subr.mxu0 0.0
    %2865 = vmatpush2.msra.mxu0 0.0
    %2866 = vmatprep.subr.mxu0 0.0
    %2867 = vmatpush2.msra.mxu0 0.0
    %2868 = vmatprep.subr.mxu0 0.0
    %2869 = vmatpush2.msra.mxu0 0.0
    %2870 = vmatprep.subr.mxu0 0.0
    %2871 = vmatpush2.msra.mxu0 0.0
    %2872 = vmatprep.subr.mxu0 0.0
    %2873 = vmatpush2.msra.mxu0 0.0
    %2874 = vmatprep.subr.mxu0 0.0
    %2875 = vmatpush2.msra.mxu0 0.0
    %2876 = vmatprep.subr.mxu0 0.0
    %2877 = vmatpush2.msra.mxu0 0.0
    %2878 = vmatprep.subr.mxu0 0.0
    %2879 = vmatpush2.msra.mxu0 0.0
    %2880 = vmatprep.subr.mxu0 0.0
    %2881 = vmatpush2.msra.mxu0 0.0
    %2882 = vmatprep.subr.mxu0 0.0
    %2883 = vmatpush2.msra.mxu0 0.0
    %2884 = vmatprep.subr.mxu0 0.0
    %2885 = vmatpush2.msra.mxu0 0.0
    %2886 = vmatprep.mubr.f32.mxu0 0.0
    %v2887 = vand.u32 %v2584, 4294901760
    %v2888 = vsub.f32 %v2584, %v2887
    %v2889 = vand.u32 %v2888, 4294901760
    %2890 = vmatmul.mubr.f32.gmra.mxu0 %v2889
    %v2891 = vpop.f32.mrf.mxu0
    %v2892 = vadd.f32 %v2817, %v2891
    %v2893 = vpop.f32.mrf.mxu0
    %2894 = vdwg.mxu0
    %2895 = vmatprep.subr.mxu0 0.0
    %2896 = vmatpush1.msra.mxu0 0.0
    %2897 = vmatprep.subr.mxu0 0.0
    %2898 = vmatpush1.msra.mxu0 0.0
    %2899 = vmatprep.subr.mxu0 0.0
    %2900 = vmatpush1.msra.mxu0 0.0
    %2901 = vmatprep.subr.mxu0 0.0
    %2902 = vmatpush1.msra.mxu0 0.0
    %2903 = vmatprep.subr.mxu0 0.0
    %2904 = vmatpush1.msra.mxu0 0.0
    %2905 = vmatprep.subr.mxu0 0.0
    %2906 = vmatpush1.msra.mxu0 0.0
    %2907 = vmatprep.subr.mxu0 0.0
    %2908 = vmatpush1.msra.mxu0 0.0
    %2909 = vmatprep.subr.mxu0 0.0
    %2910 = vmatpush1.msra.mxu0 0.0
    %2911 = vmatprep.subr.mxu0 0.0
    %2912 = vmatpush1.msra.mxu0 0.0
    %2913 = vmatprep.subr.mxu0 0.0
    %2914 = vmatpush1.msra.mxu0 0.0
    %2915 = vmatprep.subr.mxu0 0.0
    %2916 = vmatpush1.msra.mxu0 0.0
    %2917 = vmatprep.subr.mxu0 0.0
    %2918 = vmatpush1.msra.mxu0 0.0
    %2919 = vmatprep.subr.mxu0 0.0
    %2920 = vmatpush1.msra.mxu0 0.0
    %2921 = vmatprep.subr.mxu0 0.0
    %2922 = vmatpush1.msra.mxu0 0.0
    %2923 = vmatprep.subr.mxu0 0.0
    %v2924 = vand.u32 %v2100, 4294901760
    %v2925 = vsub.f32 %v2100, %v2924
    %v2926 = vand.u32 %v2925, 4294901760
    %2927 = vmatpush1.msra.mxu0 %v2926
    %2928 = vmatprep.subr.mxu0 0.0
    %v2929 = vand.u32 %v2099, 4294901760
    %v2930 = vsub.f32 %v2099, %v2929
    %v2931 = vand.u32 %v2930, 4294901760
    %2932 = vmatpush1.msra.mxu0 %v2931
    %2933 = vmatprep.subr.mxu0 0.0
    %2934 = vmatpush2.msra.mxu0 0.0
    %2935 = vmatprep.subr.mxu0 0.0
    %2936 = vmatpush2.msra.mxu0 0.0
    %2937 = vmatprep.subr.mxu0 0.0
    %2938 = vmatpush2.msra.mxu0 0.0
    %2939 = vmatprep.subr.mxu0 0.0
    %2940 = vmatpush2.msra.mxu0 0.0
    %2941 = vmatprep.subr.mxu0 0.0
    %2942 = vmatpush2.msra.mxu0 0.0
    %2943 = vmatprep.subr.mxu0 0.0
    %2944 = vmatpush2.msra.mxu0 0.0
    %2945 = vmatprep.subr.mxu0 0.0
    %2946 = vmatpush2.msra.mxu0 0.0
    %2947 = vmatprep.subr.mxu0 0.0
    %2948 = vmatpush2.msra.mxu0 0.0
    %2949 = vmatprep.subr.mxu0 0.0
    %2950 = vmatpush2.msra.mxu0 0.0
    %2951 = vmatprep.subr.mxu0 0.0
    %2952 = vmatpush2.msra.mxu0 0.0
    %2953 = vmatprep.subr.mxu0 0.0
    %2954 = vmatpush2.msra.mxu0 0.0
    %2955 = vmatprep.subr.mxu0 0.0
    %2956 = vmatpush2.msra.mxu0 0.0
    %2957 = vmatprep.subr.mxu0 0.0
    %2958 = vmatpush2.msra.mxu0 0.0
    %2959 = vmatprep.subr.mxu0 0.0
    %2960 = vmatpush2.msra.mxu0 0.0
    %2961 = vmatprep.subr.mxu0 0.0
    %2962 = vmatpush2.msra.mxu0 0.0
    %2963 = vmatprep.subr.mxu0 0.0
    %2964 = vmatpush2.msra.mxu0 0.0
    %2965 = vmatprep.mubr.f32.mxu0 0.0
    %v2966 = vand.u32 %v2584, 4294901760
    %2967 = vmatmul.mubr.f32.gmra.mxu0 %v2966
    %v2968 = vpop.f32.mrf.mxu0
    %v2969 = vadd.f32 %v2892, %v2968
    %v2970 = vpop.f32.mrf.mxu0
    %2971 = vdwg.mxu0
    %2972 = vmatprep.subr.mxu0 0.0
    %2973 = vmatpush1.msra.mxu0 0.0
    %2974 = vmatprep.subr.mxu0 0.0
    %2975 = vmatpush1.msra.mxu0 0.0
    %2976 = vmatprep.subr.mxu0 0.0
    %2977 = vmatpush1.msra.mxu0 0.0
    %2978 = vmatprep.subr.mxu0 0.0
    %2979 = vmatpush1.msra.mxu0 0.0
    %2980 = vmatprep.subr.mxu0 0.0
    %2981 = vmatpush1.msra.mxu0 0.0
    %2982 = vmatprep.subr.mxu0 0.0
    %2983 = vmatpush1.msra.mxu0 0.0
    %2984 = vmatprep.subr.mxu0 0.0
    %2985 = vmatpush1.msra.mxu0 0.0
    %2986 = vmatprep.subr.mxu0 0.0
    %2987 = vmatpush1.msra.mxu0 0.0
    %2988 = vmatprep.subr.mxu0 0.0
    %2989 = vmatpush1.msra.mxu0 0.0
    %2990 = vmatprep.subr.mxu0 0.0
    %2991 = vmatpush1.msra.mxu0 0.0
    %2992 = vmatprep.subr.mxu0 0.0
    %2993 = vmatpush1.msra.mxu0 0.0
    %2994 = vmatprep.subr.mxu0 0.0
    %2995 = vmatpush1.msra.mxu0 0.0
    %2996 = vmatprep.subr.mxu0 0.0
    %2997 = vmatpush1.msra.mxu0 0.0
    %2998 = vmatprep.subr.mxu0 0.0
    %2999 = vmatpush1.msra.mxu0 0.0
    %3000 = vmatprep.subr.mxu0 0.0
    %v3001 = vand.u32 %v2100, 4294901760
    %3002 = vmatpush1.msra.mxu0 %v3001
    %3003 = vmatprep.subr.mxu0 0.0
    %v3004 = vand.u32 %v2099, 4294901760
    %3005 = vmatpush1.msra.mxu0 %v3004
    %3006 = vmatprep.subr.mxu0 0.0
    %3007 = vmatpush2.msra.mxu0 0.0
    %3008 = vmatprep.subr.mxu0 0.0
    %3009 = vmatpush2.msra.mxu0 0.0
    %3010 = vmatprep.subr.mxu0 0.0
    %3011 = vmatpush2.msra.mxu0 0.0
    %3012 = vmatprep.subr.mxu0 0.0
    %3013 = vmatpush2.msra.mxu0 0.0
    %3014 = vmatprep.subr.mxu0 0.0
    %3015 = vmatpush2.msra.mxu0 0.0
    %3016 = vmatprep.subr.mxu0 0.0
    %3017 = vmatpush2.msra.mxu0 0.0
    %3018 = vmatprep.subr.mxu0 0.0
    %3019 = vmatpush2.msra.mxu0 0.0
    %3020 = vmatprep.subr.mxu0 0.0
    %3021 = vmatpush2.msra.mxu0 0.0
    %3022 = vmatprep.subr.mxu0 0.0
    %3023 = vmatpush2.msra.mxu0 0.0
    %3024 = vmatprep.subr.mxu0 0.0
    %3025 = vmatpush2.msra.mxu0 0.0
    %3026 = vmatprep.subr.mxu0 0.0
    %3027 = vmatpush2.msra.mxu0 0.0
    %3028 = vmatprep.subr.mxu0 0.0
    %3029 = vmatpush2.msra.mxu0 0.0
    %3030 = vmatprep.subr.mxu0 0.0
    %3031 = vmatpush2.msra.mxu0 0.0
    %3032 = vmatprep.subr.mxu0 0.0
    %3033 = vmatpush2.msra.mxu0 0.0
    %3034 = vmatprep.subr.mxu0 0.0
    %3035 = vmatpush2.msra.mxu0 0.0
    %3036 = vmatprep.subr.mxu0 0.0
    %3037 = vmatpush2.msra.mxu0 0.0
    %3038 = vmatprep.mubr.f32.mxu0 0.0
    %v3039 = vand.u32 %v2584, 4294901760
    %3040 = vmatmul.mubr.f32.gmra.mxu0 %v3039
    %v3041 = vpop.f32.mrf.mxu0
    %v3042 = vadd.f32 %v2969, %v3041
    %v3043 = vpop.f32.mrf.mxu0
    %3044 = vdwg.mxu0
    %v3045 = vmax.f32 %v3042, 0.0
    %v3047 = vlaneseq
    %v3048 = vshrl.u32 %v3047, 7
    %v3049 = vsub.s32 0, %v3048
    %v3050 = vrot.slane %v2104, %v3049
    %v3053 = vsel %vm224, %v3045, 0
    %3055 = vmatprep.subr.mxu0 0.0
    %3056 = vmatpush1.msra.mxu0 0.0
    %3057 = vmatprep.subr.mxu0 0.0
    %3058 = vmatpush1.msra.mxu0 0.0
    %3059 = vmatprep.subr.mxu0 0.0
    %3060 = vmatpush1.msra.mxu0 0.0
    %3061 = vmatprep.subr.mxu0 0.0
    %3062 = vmatpush1.msra.mxu0 0.0
    %3063 = vmatprep.subr.mxu0 0.0
    %3064 = vmatpush1.msra.mxu0 0.0
    %3065 = vmatprep.subr.mxu0 0.0
    %3066 = vmatpush1.msra.mxu0 0.0
    %3067 = vmatprep.subr.mxu0 0.0
    %3068 = vmatpush1.msra.mxu0 0.0
    %3069 = vmatprep.subr.mxu0 0.0
    %3070 = vmatpush1.msra.mxu0 0.0
    %3071 = vmatprep.subr.mxu0 0.0
    %3072 = vmatpush1.msra.mxu0 0.0
    %3073 = vmatprep.subr.mxu0 0.0
    %3074 = vmatpush1.msra.mxu0 0.0
    %3075 = vmatprep.subr.mxu0 0.0
    %3076 = vmatpush1.msra.mxu0 0.0
    %3077 = vmatprep.subr.mxu0 0.0
    %3078 = vmatpush1.msra.mxu0 0.0
    %3079 = vmatprep.subr.mxu0 0.0
    %3080 = vmatpush1.msra.mxu0 0.0
    %3081 = vmatprep.subr.mxu0 0.0
    %3082 = vmatpush1.msra.mxu0 0.0
    %3083 = vmatprep.subr.mxu0 0.0
    %v3084 = vand.u32 %v2103, 4294901760
    %3085 = vmatpush1.msra.mxu0 %v3084
    %3086 = vmatprep.subr.mxu0 0.0
    %v3087 = vand.u32 %v2102, 4294901760
    %3088 = vmatpush1.msra.mxu0 %v3087
    %3089 = vmatprep.subr.mxu0 0.0
    %3090 = vmatpush2.msra.mxu0 0.0
    %3091 = vmatprep.subr.mxu0 0.0
    %3092 = vmatpush2.msra.mxu0 0.0
    %3093 = vmatprep.subr.mxu0 0.0
    %3094 = vmatpush2.msra.mxu0 0.0
    %3095 = vmatprep.subr.mxu0 0.0
    %3096 = vmatpush2.msra.mxu0 0.0
    %3097 = vmatprep.subr.mxu0 0.0
    %3098 = vmatpush2.msra.mxu0 0.0
    %3099 = vmatprep.subr.mxu0 0.0
    %3100 = vmatpush2.msra.mxu0 0.0
    %3101 = vmatprep.subr.mxu0 0.0
    %3102 = vmatpush2.msra.mxu0 0.0
    %3103 = vmatprep.subr.mxu0 0.0
    %3104 = vmatpush2.msra.mxu0 0.0
    %3105 = vmatprep.subr.mxu0 0.0
    %3106 = vmatpush2.msra.mxu0 0.0
    %3107 = vmatprep.subr.mxu0 0.0
    %3108 = vmatpush2.msra.mxu0 0.0
    %3109 = vmatprep.subr.mxu0 0.0
    %3110 = vmatpush2.msra.mxu0 0.0
    %3111 = vmatprep.subr.mxu0 0.0
    %3112 = vmatpush2.msra.mxu0 0.0
    %3113 = vmatprep.subr.mxu0 0.0
    %3114 = vmatpush2.msra.mxu0 0.0
    %3115 = vmatprep.subr.mxu0 0.0
    %3116 = vmatpush2.msra.mxu0 0.0
    %3117 = vmatprep.subr.mxu0 0.0
    %3118 = vmatpush2.msra.mxu0 0.0
    %3119 = vmatprep.subr.mxu0 0.0
    %3120 = vmatpush2.msra.mxu0 0.0
    %3121 = vmatprep.mubr.f32.mxu0 0.0
    %v3122 = vand.u32 %v3053, 4294901760
    %v3123 = vsub.f32 %v3053, %v3122
    %v3124 = vand.u32 %v3123, 4294901760
    %v3125 = vsub.f32 %v3123, %v3124
    %v3126 = vand.u32 %v3125, 4294901760
    %3127 = vmatmul.mubr.f32.gmra.mxu0 %v3126
    %v3128 = vpop.f32.mrf.mxu0
    %v3129 = vadd.f32 %v3050, %v3128
    %v3130 = vpop.f32.mrf.mxu0
    %3131 = vdwg.mxu0
    %3132 = vmatprep.subr.mxu0 0.0
    %3133 = vmatpush1.msra.mxu0 0.0
    %3134 = vmatprep.subr.mxu0 0.0
    %3135 = vmatpush1.msra.mxu0 0.0
    %3136 = vmatprep.subr.mxu0 0.0
    %3137 = vmatpush1.msra.mxu0 0.0
    %3138 = vmatprep.subr.mxu0 0.0
    %3139 = vmatpush1.msra.mxu0 0.0
    %3140 = vmatprep.subr.mxu0 0.0
    %3141 = vmatpush1.msra.mxu0 0.0
    %3142 = vmatprep.subr.mxu0 0.0
    %3143 = vmatpush1.msra.mxu0 0.0
    %3144 = vmatprep.subr.mxu0 0.0
    %3145 = vmatpush1.msra.mxu0 0.0
    %3146 = vmatprep.subr.mxu0 0.0
    %3147 = vmatpush1.msra.mxu0 0.0
    %3148 = vmatprep.subr.mxu0 0.0
    %3149 = vmatpush1.msra.mxu0 0.0
    %3150 = vmatprep.subr.mxu0 0.0
    %3151 = vmatpush1.msra.mxu0 0.0
    %3152 = vmatprep.subr.mxu0 0.0
    %3153 = vmatpush1.msra.mxu0 0.0
    %3154 = vmatprep.subr.mxu0 0.0
    %3155 = vmatpush1.msra.mxu0 0.0
    %3156 = vmatprep.subr.mxu0 0.0
    %3157 = vmatpush1.msra.mxu0 0.0
    %3158 = vmatprep.subr.mxu0 0.0
    %3159 = vmatpush1.msra.mxu0 0.0
    %3160 = vmatprep.subr.mxu0 0.0
    %v3161 = vand.u32 %v2103, 4294901760
    %v3162 = vsub.f32 %v2103, %v3161
    %v3163 = vand.u32 %v3162, 4294901760
    %v3164 = vsub.f32 %v3162, %v3163
    %v3165 = vand.u32 %v3164, 4294901760
    %3166 = vmatpush1.msra.mxu0 %v3165
    %3167 = vmatprep.subr.mxu0 0.0
    %v3168 = vand.u32 %v2102, 4294901760
    %v3169 = vsub.f32 %v2102, %v3168
    %v3170 = vand.u32 %v3169, 4294901760
    %v3171 = vsub.f32 %v3169, %v3170
    %v3172 = vand.u32 %v3171, 4294901760
    %3173 = vmatpush1.msra.mxu0 %v3172
    %3174 = vmatprep.subr.mxu0 0.0
    %3175 = vmatpush2.msra.mxu0 0.0
    %3176 = vmatprep.subr.mxu0 0.0
    %3177 = vmatpush2.msra.mxu0 0.0
    %3178 = vmatprep.subr.mxu0 0.0
    %3179 = vmatpush2.msra.mxu0 0.0
    %3180 = vmatprep.subr.mxu0 0.0
    %3181 = vmatpush2.msra.mxu0 0.0
    %3182 = vmatprep.subr.mxu0 0.0
    %3183 = vmatpush2.msra.mxu0 0.0
    %3184 = vmatprep.subr.mxu0 0.0
    %3185 = vmatpush2.msra.mxu0 0.0
    %3186 = vmatprep.subr.mxu0 0.0
    %3187 = vmatpush2.msra.mxu0 0.0
    %3188 = vmatprep.subr.mxu0 0.0
    %3189 = vmatpush2.msra.mxu0 0.0
    %3190 = vmatprep.subr.mxu0 0.0
    %3191 = vmatpush2.msra.mxu0 0.0
    %3192 = vmatprep.subr.mxu0 0.0
    %3193 = vmatpush2.msra.mxu0 0.0
    %3194 = vmatprep.subr.mxu0 0.0
    %3195 = vmatpush2.msra.mxu0 0.0
    %3196 = vmatprep.subr.mxu0 0.0
    %3197 = vmatpush2.msra.mxu0 0.0
    %3198 = vmatprep.subr.mxu0 0.0
    %3199 = vmatpush2.msra.mxu0 0.0
    %3200 = vmatprep.subr.mxu0 0.0
    %3201 = vmatpush2.msra.mxu0 0.0
    %3202 = vmatprep.subr.mxu0 0.0
    %3203 = vmatpush2.msra.mxu0 0.0
    %3204 = vmatprep.subr.mxu0 0.0
    %3205 = vmatpush2.msra.mxu0 0.0
    %3206 = vmatprep.mubr.f32.mxu0 0.0
    %v3207 = vand.u32 %v3053, 4294901760
    %3208 = vmatmul.mubr.f32.gmra.mxu0 %v3207
    %v3209 = vpop.f32.mrf.mxu0
    %v3210 = vadd.f32 %v3129, %v3209
    %v3211 = vpop.f32.mrf.mxu0
    %3212 = vdwg.mxu0
    %3213 = vmatprep.subr.mxu0 0.0
    %3214 = vmatpush1.msra.mxu0 0.0
    %3215 = vmatprep.subr.mxu0 0.0
    %3216 = vmatpush1.msra.mxu0 0.0
    %3217 = vmatprep.subr.mxu0 0.0
    %3218 = vmatpush1.msra.mxu0 0.0
    %3219 = vmatprep.subr.mxu0 0.0
    %3220 = vmatpush1.msra.mxu0 0.0
    %3221 = vmatprep.subr.mxu0 0.0
    %3222 = vmatpush1.msra.mxu0 0.0
    %3223 = vmatprep.subr.mxu0 0.0
    %3224 = vmatpush1.msra.mxu0 0.0
    %3225 = vmatprep.subr.mxu0 0.0
    %3226 = vmatpush1.msra.mxu0 0.0
    %3227 = vmatprep.subr.mxu0 0.0
    %3228 = vmatpush1.msra.mxu0 0.0
    %3229 = vmatprep.subr.mxu0 0.0
    %3230 = vmatpush1.msra.mxu0 0.0
    %3231 = vmatprep.subr.mxu0 0.0
    %3232 = vmatpush1.msra.mxu0 0.0
    %3233 = vmatprep.subr.mxu0 0.0
    %3234 = vmatpush1.msra.mxu0 0.0
    %3235 = vmatprep.subr.mxu0 0.0
    %3236 = vmatpush1.msra.mxu0 0.0
    %3237 = vmatprep.subr.mxu0 0.0
    %3238 = vmatpush1.msra.mxu0 0.0
    %3239 = vmatprep.subr.mxu0 0.0
    %3240 = vmatpush1.msra.mxu0 0.0
    %3241 = vmatprep.subr.mxu0 0.0
    %v3242 = vand.u32 %v2103, 4294901760
    %v3243 = vsub.f32 %v2103, %v3242
    %3244 = vmatpush1.msra.mxu0 %v3243
    %3245 = vmatprep.subr.mxu0 0.0
    %v3246 = vand.u32 %v2102, 4294901760
    %v3247 = vsub.f32 %v2102, %v3246
    %3248 = vmatpush1.msra.mxu0 %v3247
    %3249 = vmatprep.subr.mxu0 0.0
    %3250 = vmatpush2.msra.mxu0 0.0
    %3251 = vmatprep.subr.mxu0 0.0
    %3252 = vmatpush2.msra.mxu0 0.0
    %3253 = vmatprep.subr.mxu0 0.0
    %3254 = vmatpush2.msra.mxu0 0.0
    %3255 = vmatprep.subr.mxu0 0.0
    %3256 = vmatpush2.msra.mxu0 0.0
    %3257 = vmatprep.subr.mxu0 0.0
    %3258 = vmatpush2.msra.mxu0 0.0
    %3259 = vmatprep.subr.mxu0 0.0
    %3260 = vmatpush2.msra.mxu0 0.0
    %3261 = vmatprep.subr.mxu0 0.0
    %3262 = vmatpush2.msra.mxu0 0.0
    %3263 = vmatprep.subr.mxu0 0.0
    %3264 = vmatpush2.msra.mxu0 0.0
    %3265 = vmatprep.subr.mxu0 0.0
    %3266 = vmatpush2.msra.mxu0 0.0
    %3267 = vmatprep.subr.mxu0 0.0
    %3268 = vmatpush2.msra.mxu0 0.0
    %3269 = vmatprep.subr.mxu0 0.0
    %3270 = vmatpush2.msra.mxu0 0.0
    %3271 = vmatprep.subr.mxu0 0.0
    %3272 = vmatpush2.msra.mxu0 0.0
    %3273 = vmatprep.subr.mxu0 0.0
    %3274 = vmatpush2.msra.mxu0 0.0
    %3275 = vmatprep.subr.mxu0 0.0
    %3276 = vmatpush2.msra.mxu0 0.0
    %3277 = vmatprep.subr.mxu0 0.0
    %3278 = vmatpush2.msra.mxu0 0.0
    %3279 = vmatprep.subr.mxu0 0.0
    %3280 = vmatpush2.msra.mxu0 0.0
    %3281 = vmatprep.mubr.f32.mxu0 0.0
    %v3282 = vand.u32 %v3053, 4294901760
    %v3283 = vsub.f32 %v3053, %v3282
    %3284 = vmatmul.mubr.f32.gmra.mxu0 %v3283
    %v3285 = vpop.f32.mrf.mxu0
    %v3286 = vadd.f32 %v3210, %v3285
    %v3287 = vpop.f32.mrf.mxu0
    %3288 = vdwg.mxu0
    %3289 = vmatprep.subr.mxu0 0.0
    %3290 = vmatpush1.msra.mxu0 0.0
    %3291 = vmatprep.subr.mxu0 0.0
    %3292 = vmatpush1.msra.mxu0 0.0
    %3293 = vmatprep.subr.mxu0 0.0
    %3294 = vmatpush1.msra.mxu0 0.0
    %3295 = vmatprep.subr.mxu0 0.0
    %3296 = vmatpush1.msra.mxu0 0.0
    %3297 = vmatprep.subr.mxu0 0.0
    %3298 = vmatpush1.msra.mxu0 0.0
    %3299 = vmatprep.subr.mxu0 0.0
    %3300 = vmatpush1.msra.mxu0 0.0
    %3301 = vmatprep.subr.mxu0 0.0
    %3302 = vmatpush1.msra.mxu0 0.0
    %3303 = vmatprep.subr.mxu0 0.0
    %3304 = vmatpush1.msra.mxu0 0.0
    %3305 = vmatprep.subr.mxu0 0.0
    %3306 = vmatpush1.msra.mxu0 0.0
    %3307 = vmatprep.subr.mxu0 0.0
    %3308 = vmatpush1.msra.mxu0 0.0
    %3309 = vmatprep.subr.mxu0 0.0
    %3310 = vmatpush1.msra.mxu0 0.0
    %3311 = vmatprep.subr.mxu0 0.0
    %3312 = vmatpush1.msra.mxu0 0.0
    %3313 = vmatprep.subr.mxu0 0.0
    %3314 = vmatpush1.msra.mxu0 0.0
    %3315 = vmatprep.subr.mxu0 0.0
    %3316 = vmatpush1.msra.mxu0 0.0
    %3317 = vmatprep.subr.mxu0 0.0
    %v3318 = vand.u32 %v2103, 4294901760
    %3319 = vmatpush1.msra.mxu0 %v3318
    %3320 = vmatprep.subr.mxu0 0.0
    %v3321 = vand.u32 %v2102, 4294901760
    %3322 = vmatpush1.msra.mxu0 %v3321
    %3323 = vmatprep.subr.mxu0 0.0
    %3324 = vmatpush2.msra.mxu0 0.0
    %3325 = vmatprep.subr.mxu0 0.0
    %3326 = vmatpush2.msra.mxu0 0.0
    %3327 = vmatprep.subr.mxu0 0.0
    %3328 = vmatpush2.msra.mxu0 0.0
    %3329 = vmatprep.subr.mxu0 0.0
    %3330 = vmatpush2.msra.mxu0 0.0
    %3331 = vmatprep.subr.mxu0 0.0
    %3332 = vmatpush2.msra.mxu0 0.0
    %3333 = vmatprep.subr.mxu0 0.0
    %3334 = vmatpush2.msra.mxu0 0.0
    %3335 = vmatprep.subr.mxu0 0.0
    %3336 = vmatpush2.msra.mxu0 0.0
    %3337 = vmatprep.subr.mxu0 0.0
    %3338 = vmatpush2.msra.mxu0 0.0
    %3339 = vmatprep.subr.mxu0 0.0
    %3340 = vmatpush2.msra.mxu0 0.0
    %3341 = vmatprep.subr.mxu0 0.0
    %3342 = vmatpush2.msra.mxu0 0.0
    %3343 = vmatprep.subr.mxu0 0.0
    %3344 = vmatpush2.msra.mxu0 0.0
    %3345 = vmatprep.subr.mxu0 0.0
    %3346 = vmatpush2.msra.mxu0 0.0
    %3347 = vmatprep.subr.mxu0 0.0
    %3348 = vmatpush2.msra.mxu0 0.0
    %3349 = vmatprep.subr.mxu0 0.0
    %3350 = vmatpush2.msra.mxu0 0.0
    %3351 = vmatprep.subr.mxu0 0.0
    %3352 = vmatpush2.msra.mxu0 0.0
    %3353 = vmatprep.subr.mxu0 0.0
    %3354 = vmatpush2.msra.mxu0 0.0
    %3355 = vmatprep.mubr.f32.mxu0 0.0
    %v3356 = vand.u32 %v3053, 4294901760
    %v3357 = vsub.f32 %v3053, %v3356
    %v3358 = vand.u32 %v3357, 4294901760
    %3359 = vmatmul.mubr.f32.gmra.mxu0 %v3358
    %v3360 = vpop.f32.mrf.mxu0
    %v3361 = vadd.f32 %v3286, %v3360
    %v3362 = vpop.f32.mrf.mxu0
    %3363 = vdwg.mxu0
    %3364 = vmatprep.subr.mxu0 0.0
    %3365 = vmatpush1.msra.mxu0 0.0
    %3366 = vmatprep.subr.mxu0 0.0
    %3367 = vmatpush1.msra.mxu0 0.0
    %3368 = vmatprep.subr.mxu0 0.0
    %3369 = vmatpush1.msra.mxu0 0.0
    %3370 = vmatprep.subr.mxu0 0.0
    %3371 = vmatpush1.msra.mxu0 0.0
    %3372 = vmatprep.subr.mxu0 0.0
    %3373 = vmatpush1.msra.mxu0 0.0
    %3374 = vmatprep.subr.mxu0 0.0
    %3375 = vmatpush1.msra.mxu0 0.0
    %3376 = vmatprep.subr.mxu0 0.0
    %3377 = vmatpush1.msra.mxu0 0.0
    %3378 = vmatprep.subr.mxu0 0.0
    %3379 = vmatpush1.msra.mxu0 0.0
    %3380 = vmatprep.subr.mxu0 0.0
    %3381 = vmatpush1.msra.mxu0 0.0
    %3382 = vmatprep.subr.mxu0 0.0
    %3383 = vmatpush1.msra.mxu0 0.0
    %3384 = vmatprep.subr.mxu0 0.0
    %3385 = vmatpush1.msra.mxu0 0.0
    %3386 = vmatprep.subr.mxu0 0.0
    %3387 = vmatpush1.msra.mxu0 0.0
    %3388 = vmatprep.subr.mxu0 0.0
    %3389 = vmatpush1.msra.mxu0 0.0
    %3390 = vmatprep.subr.mxu0 0.0
    %3391 = vmatpush1.msra.mxu0 0.0
    %3392 = vmatprep.subr.mxu0 0.0
    %v3393 = vand.u32 %v2103, 4294901760
    %v3394 = vsub.f32 %v2103, %v3393
    %v3395 = vand.u32 %v3394, 4294901760
    %3396 = vmatpush1.msra.mxu0 %v3395
    %3397 = vmatprep.subr.mxu0 0.0
    %v3398 = vand.u32 %v2102, 4294901760
    %v3399 = vsub.f32 %v2102, %v3398
    %v3400 = vand.u32 %v3399, 4294901760
    %3401 = vmatpush1.msra.mxu0 %v3400
    %3402 = vmatprep.subr.mxu0 0.0
    %3403 = vmatpush2.msra.mxu0 0.0
    %3404 = vmatprep.subr.mxu0 0.0
    %3405 = vmatpush2.msra.mxu0 0.0
    %3406 = vmatprep.subr.mxu0 0.0
    %3407 = vmatpush2.msra.mxu0 0.0
    %3408 = vmatprep.subr.mxu0 0.0
    %3409 = vmatpush2.msra.mxu0 0.0
    %3410 = vmatprep.subr.mxu0 0.0
    %3411 = vmatpush2.msra.mxu0 0.0
    %3412 = vmatprep.subr.mxu0 0.0
    %3413 = vmatpush2.msra.mxu0 0.0
    %3414 = vmatprep.subr.mxu0 0.0
    %3415 = vmatpush2.msra.mxu0 0.0
    %3416 = vmatprep.subr.mxu0 0.0
    %3417 = vmatpush2.msra.mxu0 0.0
    %3418 = vmatprep.subr.mxu0 0.0
    %3419 = vmatpush2.msra.mxu0 0.0
    %3420 = vmatprep.subr.mxu0 0.0
    %3421 = vmatpush2.msra.mxu0 0.0
    %3422 = vmatprep.subr.mxu0 0.0
    %3423 = vmatpush2.msra.mxu0 0.0
    %3424 = vmatprep.subr.mxu0 0.0
    %3425 = vmatpush2.msra.mxu0 0.0
    %3426 = vmatprep.subr.mxu0 0.0
    %3427 = vmatpush2.msra.mxu0 0.0
    %3428 = vmatprep.subr.mxu0 0.0
    %3429 = vmatpush2.msra.mxu0 0.0
    %3430 = vmatprep.subr.mxu0 0.0
    %3431 = vmatpush2.msra.mxu0 0.0
    %3432 = vmatprep.subr.mxu0 0.0
    %3433 = vmatpush2.msra.mxu0 0.0
    %3434 = vmatprep.mubr.f32.mxu0 0.0
    %v3435 = vand.u32 %v3053, 4294901760
    %3436 = vmatmul.mubr.f32.gmra.mxu0 %v3435
    %v3437 = vpop.f32.mrf.mxu0
    %v3438 = vadd.f32 %v3361, %v3437
    %v3439 = vpop.f32.mrf.mxu0
    %3440 = vdwg.mxu0
    %3441 = vmatprep.subr.mxu0 0.0
    %3442 = vmatpush1.msra.mxu0 0.0
    %3443 = vmatprep.subr.mxu0 0.0
    %3444 = vmatpush1.msra.mxu0 0.0
    %3445 = vmatprep.subr.mxu0 0.0
    %3446 = vmatpush1.msra.mxu0 0.0
    %3447 = vmatprep.subr.mxu0 0.0
    %3448 = vmatpush1.msra.mxu0 0.0
    %3449 = vmatprep.subr.mxu0 0.0
    %3450 = vmatpush1.msra.mxu0 0.0
    %3451 = vmatprep.subr.mxu0 0.0
    %3452 = vmatpush1.msra.mxu0 0.0
    %3453 = vmatprep.subr.mxu0 0.0
    %3454 = vmatpush1.msra.mxu0 0.0
    %3455 = vmatprep.subr.mxu0 0.0
    %3456 = vmatpush1.msra.mxu0 0.0
    %3457 = vmatprep.subr.mxu0 0.0
    %3458 = vmatpush1.msra.mxu0 0.0
    %3459 = vmatprep.subr.mxu0 0.0
    %3460 = vmatpush1.msra.mxu0 0.0
    %3461 = vmatprep.subr.mxu0 0.0
    %3462 = vmatpush1.msra.mxu0 0.0
    %3463 = vmatprep.subr.mxu0 0.0
    %3464 = vmatpush1.msra.mxu0 0.0
    %3465 = vmatprep.subr.mxu0 0.0
    %3466 = vmatpush1.msra.mxu0 0.0
    %3467 = vmatprep.subr.mxu0 0.0
    %3468 = vmatpush1.msra.mxu0 0.0
    %3469 = vmatprep.subr.mxu0 0.0
    %v3470 = vand.u32 %v2103, 4294901760
    %3471 = vmatpush1.msra.mxu0 %v3470
    %3472 = vmatprep.subr.mxu0 0.0
    %v3473 = vand.u32 %v2102, 4294901760
    %3474 = vmatpush1.msra.mxu0 %v3473
    %3475 = vmatprep.subr.mxu0 0.0
    %3476 = vmatpush2.msra.mxu0 0.0
    %3477 = vmatprep.subr.mxu0 0.0
    %3478 = vmatpush2.msra.mxu0 0.0
    %3479 = vmatprep.subr.mxu0 0.0
    %3480 = vmatpush2.msra.mxu0 0.0
    %3481 = vmatprep.subr.mxu0 0.0
    %3482 = vmatpush2.msra.mxu0 0.0
    %3483 = vmatprep.subr.mxu0 0.0
    %3484 = vmatpush2.msra.mxu0 0.0
    %3485 = vmatprep.subr.mxu0 0.0
    %3486 = vmatpush2.msra.mxu0 0.0
    %3487 = vmatprep.subr.mxu0 0.0
    %3488 = vmatpush2.msra.mxu0 0.0
    %3489 = vmatprep.subr.mxu0 0.0
    %3490 = vmatpush2.msra.mxu0 0.0
    %3491 = vmatprep.subr.mxu0 0.0
    %3492 = vmatpush2.msra.mxu0 0.0
    %3493 = vmatprep.subr.mxu0 0.0
    %3494 = vmatpush2.msra.mxu0 0.0
    %3495 = vmatprep.subr.mxu0 0.0
    %3496 = vmatpush2.msra.mxu0 0.0
    %3497 = vmatprep.subr.mxu0 0.0
    %3498 = vmatpush2.msra.mxu0 0.0
    %3499 = vmatprep.subr.mxu0 0.0
    %3500 = vmatpush2.msra.mxu0 0.0
    %3501 = vmatprep.subr.mxu0 0.0
    %3502 = vmatpush2.msra.mxu0 0.0
    %3503 = vmatprep.subr.mxu0 0.0
    %3504 = vmatpush2.msra.mxu0 0.0
    %3505 = vmatprep.subr.mxu0 0.0
    %3506 = vmatpush2.msra.mxu0 0.0
    %3507 = vmatprep.mubr.f32.mxu0 0.0
    %v3508 = vand.u32 %v3053, 4294901760
    %3509 = vmatmul.mubr.f32.gmra.mxu0 %v3508
    %v3510 = vpop.f32.mrf.mxu0
    %v3511 = vadd.f32 %v3438, %v3510
    %v3512 = vpop.f32.mrf.mxu0
    %3513 = vdwg.mxu0
    %v3514 = vtanh.pop %v3511
    %v3515 = vmul.f32 %v3514, 0.1
    %v3517 = vlaneseq
    %v3518 = vshrl.u32 %v3517, 7
    %v3519 = vsub.s32 0, %v3518
    %v3520 = vrot.slane %v2107, %v3519
    %3522 = vmatprep.subr.mxu0 0.0
    %3523 = vmatpush1.msra.mxu0 0.0
    %3524 = vmatprep.subr.mxu0 0.0
    %3525 = vmatpush1.msra.mxu0 0.0
    %3526 = vmatprep.subr.mxu0 0.0
    %3527 = vmatpush1.msra.mxu0 0.0
    %3528 = vmatprep.subr.mxu0 0.0
    %3529 = vmatpush1.msra.mxu0 0.0
    %3530 = vmatprep.subr.mxu0 0.0
    %3531 = vmatpush1.msra.mxu0 0.0
    %3532 = vmatprep.subr.mxu0 0.0
    %3533 = vmatpush1.msra.mxu0 0.0
    %3534 = vmatprep.subr.mxu0 0.0
    %3535 = vmatpush1.msra.mxu0 0.0
    %3536 = vmatprep.subr.mxu0 0.0
    %3537 = vmatpush1.msra.mxu0 0.0
    %3538 = vmatprep.subr.mxu0 0.0
    %3539 = vmatpush1.msra.mxu0 0.0
    %3540 = vmatprep.subr.mxu0 0.0
    %3541 = vmatpush1.msra.mxu0 0.0
    %3542 = vmatprep.subr.mxu0 0.0
    %3543 = vmatpush1.msra.mxu0 0.0
    %3544 = vmatprep.subr.mxu0 0.0
    %3545 = vmatpush1.msra.mxu0 0.0
    %3546 = vmatprep.subr.mxu0 0.0
    %3547 = vmatpush1.msra.mxu0 0.0
    %3548 = vmatprep.subr.mxu0 0.0
    %3549 = vmatpush1.msra.mxu0 0.0
    %3550 = vmatprep.subr.mxu0 0.0
    %v3551 = vand.u32 %v2106, 4294901760
    %3552 = vmatpush1.msra.mxu0 %v3551
    %3553 = vmatprep.subr.mxu0 0.0
    %v3554 = vand.u32 %v2105, 4294901760
    %3555 = vmatpush1.msra.mxu0 %v3554
    %3556 = vmatprep.subr.mxu0 0.0
    %3557 = vmatpush2.msra.mxu0 0.0
    %3558 = vmatprep.subr.mxu0 0.0
    %3559 = vmatpush2.msra.mxu0 0.0
    %3560 = vmatprep.subr.mxu0 0.0
    %3561 = vmatpush2.msra.mxu0 0.0
    %3562 = vmatprep.subr.mxu0 0.0
    %3563 = vmatpush2.msra.mxu0 0.0
    %3564 = vmatprep.subr.mxu0 0.0
    %3565 = vmatpush2.msra.mxu0 0.0
    %3566 = vmatprep.subr.mxu0 0.0
    %3567 = vmatpush2.msra.mxu0 0.0
    %3568 = vmatprep.subr.mxu0 0.0
    %3569 = vmatpush2.msra.mxu0 0.0
    %3570 = vmatprep.subr.mxu0 0.0
    %3571 = vmatpush2.msra.mxu0 0.0
    %3572 = vmatprep.subr.mxu0 0.0
    %3573 = vmatpush2.msra.mxu0 0.0
    %3574 = vmatprep.subr.mxu0 0.0
    %3575 = vmatpush2.msra.mxu0 0.0
    %3576 = vmatprep.subr.mxu0 0.0
    %3577 = vmatpush2.msra.mxu0 0.0
    %3578 = vmatprep.subr.mxu0 0.0
    %3579 = vmatpush2.msra.mxu0 0.0
    %3580 = vmatprep.subr.mxu0 0.0
    %3581 = vmatpush2.msra.mxu0 0.0
    %3582 = vmatprep.subr.mxu0 0.0
    %3583 = vmatpush2.msra.mxu0 0.0
    %3584 = vmatprep.subr.mxu0 0.0
    %3585 = vmatpush2.msra.mxu0 0.0
    %3586 = vmatprep.subr.mxu0 0.0
    %3587 = vmatpush2.msra.mxu0 0.0
    %3588 = vmatprep.mubr.f32.mxu0 0.0
    %v3589 = vand.u32 %v3053, 4294901760
    %v3590 = vsub.f32 %v3053, %v3589
    %v3591 = vand.u32 %v3590, 4294901760
    %v3592 = vsub.f32 %v3590, %v3591
    %v3593 = vand.u32 %v3592, 4294901760
    %3594 = vmatmul.mubr.f32.gmra.mxu0 %v3593
    %v3595 = vpop.f32.mrf.mxu0
    %v3596 = vadd.f32 %v3520, %v3595
    %v3597 = vpop.f32.mrf.mxu0
    %3598 = vdwg.mxu0
    %3599 = vmatprep.subr.mxu0 0.0
    %3600 = vmatpush1.msra.mxu0 0.0
    %3601 = vmatprep.subr.mxu0 0.0
    %3602 = vmatpush1.msra.mxu0 0.0
    %3603 = vmatprep.subr.mxu0 0.0
    %3604 = vmatpush1.msra.mxu0 0.0
    %3605 = vmatprep.subr.mxu0 0.0
    %3606 = vmatpush1.msra.mxu0 0.0
    %3607 = vmatprep.subr.mxu0 0.0
    %3608 = vmatpush1.msra.mxu0 0.0
    %3609 = vmatprep.subr.mxu0 0.0
    %3610 = vmatpush1.msra.mxu0 0.0
    %3611 = vmatprep.subr.mxu0 0.0
    %3612 = vmatpush1.msra.mxu0 0.0
    %3613 = vmatprep.subr.mxu0 0.0
    %3614 = vmatpush1.msra.mxu0 0.0
    %3615 = vmatprep.subr.mxu0 0.0
    %3616 = vmatpush1.msra.mxu0 0.0
    %3617 = vmatprep.subr.mxu0 0.0
    %3618 = vmatpush1.msra.mxu0 0.0
    %3619 = vmatprep.subr.mxu0 0.0
    %3620 = vmatpush1.msra.mxu0 0.0
    %3621 = vmatprep.subr.mxu0 0.0
    %3622 = vmatpush1.msra.mxu0 0.0
    %3623 = vmatprep.subr.mxu0 0.0
    %3624 = vmatpush1.msra.mxu0 0.0
    %3625 = vmatprep.subr.mxu0 0.0
    %3626 = vmatpush1.msra.mxu0 0.0
    %3627 = vmatprep.subr.mxu0 0.0
    %v3628 = vand.u32 %v2106, 4294901760
    %v3629 = vsub.f32 %v2106, %v3628
    %v3630 = vand.u32 %v3629, 4294901760
    %v3631 = vsub.f32 %v3629, %v3630
    %v3632 = vand.u32 %v3631, 4294901760
    %3633 = vmatpush1.msra.mxu0 %v3632
    %3634 = vmatprep.subr.mxu0 0.0
    %v3635 = vand.u32 %v2105, 4294901760
    %v3636 = vsub.f32 %v2105, %v3635
    %v3637 = vand.u32 %v3636, 4294901760
    %v3638 = vsub.f32 %v3636, %v3637
    %v3639 = vand.u32 %v3638, 4294901760
    %3640 = vmatpush1.msra.mxu0 %v3639
    %3641 = vmatprep.subr.mxu0 0.0
    %3642 = vmatpush2.msra.mxu0 0.0
    %3643 = vmatprep.subr.mxu0 0.0
    %3644 = vmatpush2.msra.mxu0 0.0
    %3645 = vmatprep.subr.mxu0 0.0
    %3646 = vmatpush2.msra.mxu0 0.0
    %3647 = vmatprep.subr.mxu0 0.0
    %3648 = vmatpush2.msra.mxu0 0.0
    %3649 = vmatprep.subr.mxu0 0.0
    %3650 = vmatpush2.msra.mxu0 0.0
    %3651 = vmatprep.subr.mxu0 0.0
    %3652 = vmatpush2.msra.mxu0 0.0
    %3653 = vmatprep.subr.mxu0 0.0
    %3654 = vmatpush2.msra.mxu0 0.0
    %3655 = vmatprep.subr.mxu0 0.0
    %3656 = vmatpush2.msra.mxu0 0.0
    %3657 = vmatprep.subr.mxu0 0.0
    %3658 = vmatpush2.msra.mxu0 0.0
    %3659 = vmatprep.subr.mxu0 0.0
    %3660 = vmatpush2.msra.mxu0 0.0
    %3661 = vmatprep.subr.mxu0 0.0
    %3662 = vmatpush2.msra.mxu0 0.0
    %3663 = vmatprep.subr.mxu0 0.0
    %3664 = vmatpush2.msra.mxu0 0.0
    %3665 = vmatprep.subr.mxu0 0.0
    %3666 = vmatpush2.msra.mxu0 0.0
    %3667 = vmatprep.subr.mxu0 0.0
    %3668 = vmatpush2.msra.mxu0 0.0
    %3669 = vmatprep.subr.mxu0 0.0
    %3670 = vmatpush2.msra.mxu0 0.0
    %3671 = vmatprep.subr.mxu0 0.0
    %3672 = vmatpush2.msra.mxu0 0.0
    %3673 = vmatprep.mubr.f32.mxu0 0.0
    %v3674 = vand.u32 %v3053, 4294901760
    %3675 = vmatmul.mubr.f32.gmra.mxu0 %v3674
    %v3676 = vpop.f32.mrf.mxu0
    %v3677 = vadd.f32 %v3596, %v3676
    %v3678 = vpop.f32.mrf.mxu0
    %3679 = vdwg.mxu0
    %3680 = vmatprep.subr.mxu0 0.0
    %3681 = vmatpush1.msra.mxu0 0.0
    %3682 = vmatprep.subr.mxu0 0.0
    %3683 = vmatpush1.msra.mxu0 0.0
    %3684 = vmatprep.subr.mxu0 0.0
    %3685 = vmatpush1.msra.mxu0 0.0
    %3686 = vmatprep.subr.mxu0 0.0
    %3687 = vmatpush1.msra.mxu0 0.0
    %3688 = vmatprep.subr.mxu0 0.0
    %3689 = vmatpush1.msra.mxu0 0.0
    %3690 = vmatprep.subr.mxu0 0.0
    %3691 = vmatpush1.msra.mxu0 0.0
    %3692 = vmatprep.subr.mxu0 0.0
    %3693 = vmatpush1.msra.mxu0 0.0
    %3694 = vmatprep.subr.mxu0 0.0
    %3695 = vmatpush1.msra.mxu0 0.0
    %3696 = vmatprep.subr.mxu0 0.0
    %3697 = vmatpush1.msra.mxu0 0.0
    %3698 = vmatprep.subr.mxu0 0.0
    %3699 = vmatpush1.msra.mxu0 0.0
    %3700 = vmatprep.subr.mxu0 0.0
    %3701 = vmatpush1.msra.mxu0 0.0
    %3702 = vmatprep.subr.mxu0 0.0
    %3703 = vmatpush1.msra.mxu0 0.0
    %3704 = vmatprep.subr.mxu0 0.0
    %3705 = vmatpush1.msra.mxu0 0.0
    %3706 = vmatprep.subr.mxu0 0.0
    %3707 = vmatpush1.msra.mxu0 0.0
    %3708 = vmatprep.subr.mxu0 0.0
    %v3709 = vand.u32 %v2106, 4294901760
    %v3710 = vsub.f32 %v2106, %v3709
    %3711 = vmatpush1.msra.mxu0 %v3710
    %3712 = vmatprep.subr.mxu0 0.0
    %v3713 = vand.u32 %v2105, 4294901760
    %v3714 = vsub.f32 %v2105, %v3713
    %3715 = vmatpush1.msra.mxu0 %v3714
    %3716 = vmatprep.subr.mxu0 0.0
    %3717 = vmatpush2.msra.mxu0 0.0
    %3718 = vmatprep.subr.mxu0 0.0
    %3719 = vmatpush2.msra.mxu0 0.0
    %3720 = vmatprep.subr.mxu0 0.0
    %3721 = vmatpush2.msra.mxu0 0.0
    %3722 = vmatprep.subr.mxu0 0.0
    %3723 = vmatpush2.msra.mxu0 0.0
    %3724 = vmatprep.subr.mxu0 0.0
    %3725 = vmatpush2.msra.mxu0 0.0
    %3726 = vmatprep.subr.mxu0 0.0
    %3727 = vmatpush2.msra.mxu0 0.0
    %3728 = vmatprep.subr.mxu0 0.0
    %3729 = vmatpush2.msra.mxu0 0.0
    %3730 = vmatprep.subr.mxu0 0.0
    %3731 = vmatpush2.msra.mxu0 0.0
    %3732 = vmatprep.subr.mxu0 0.0
    %3733 = vmatpush2.msra.mxu0 0.0
    %3734 = vmatprep.subr.mxu0 0.0
    %3735 = vmatpush2.msra.mxu0 0.0
    %3736 = vmatprep.subr.mxu0 0.0
    %3737 = vmatpush2.msra.mxu0 0.0
    %3738 = vmatprep.subr.mxu0 0.0
    %3739 = vmatpush2.msra.mxu0 0.0
    %3740 = vmatprep.subr.mxu0 0.0
    %3741 = vmatpush2.msra.mxu0 0.0
    %3742 = vmatprep.subr.mxu0 0.0
    %3743 = vmatpush2.msra.mxu0 0.0
    %3744 = vmatprep.subr.mxu0 0.0
    %3745 = vmatpush2.msra.mxu0 0.0
    %3746 = vmatprep.subr.mxu0 0.0
    %3747 = vmatpush2.msra.mxu0 0.0
    %3748 = vmatprep.mubr.f32.mxu0 0.0
    %v3749 = vand.u32 %v3053, 4294901760
    %v3750 = vsub.f32 %v3053, %v3749
    %3751 = vmatmul.mubr.f32.gmra.mxu0 %v3750
    %v3752 = vpop.f32.mrf.mxu0
    %v3753 = vadd.f32 %v3677, %v3752
    %v3754 = vpop.f32.mrf.mxu0
    %3755 = vdwg.mxu0
    %3756 = vmatprep.subr.mxu0 0.0
    %3757 = vmatpush1.msra.mxu0 0.0
    %3758 = vmatprep.subr.mxu0 0.0
    %3759 = vmatpush1.msra.mxu0 0.0
    %3760 = vmatprep.subr.mxu0 0.0
    %3761 = vmatpush1.msra.mxu0 0.0
    %3762 = vmatprep.subr.mxu0 0.0
    %3763 = vmatpush1.msra.mxu0 0.0
    %3764 = vmatprep.subr.mxu0 0.0
    %3765 = vmatpush1.msra.mxu0 0.0
    %3766 = vmatprep.subr.mxu0 0.0
    %3767 = vmatpush1.msra.mxu0 0.0
    %3768 = vmatprep.subr.mxu0 0.0
    %3769 = vmatpush1.msra.mxu0 0.0
    %3770 = vmatprep.subr.mxu0 0.0
    %3771 = vmatpush1.msra.mxu0 0.0
    %3772 = vmatprep.subr.mxu0 0.0
    %3773 = vmatpush1.msra.mxu0 0.0
    %3774 = vmatprep.subr.mxu0 0.0
    %3775 = vmatpush1.msra.mxu0 0.0
    %3776 = vmatprep.subr.mxu0 0.0
    %3777 = vmatpush1.msra.mxu0 0.0
    %3778 = vmatprep.subr.mxu0 0.0
    %3779 = vmatpush1.msra.mxu0 0.0
    %3780 = vmatprep.subr.mxu0 0.0
    %3781 = vmatpush1.msra.mxu0 0.0
    %3782 = vmatprep.subr.mxu0 0.0
    %3783 = vmatpush1.msra.mxu0 0.0
    %3784 = vmatprep.subr.mxu0 0.0
    %v3785 = vand.u32 %v2106, 4294901760
    %3786 = vmatpush1.msra.mxu0 %v3785
    %3787 = vmatprep.subr.mxu0 0.0
    %v3788 = vand.u32 %v2105, 4294901760
    %3789 = vmatpush1.msra.mxu0 %v3788
    %3790 = vmatprep.subr.mxu0 0.0
    %3791 = vmatpush2.msra.mxu0 0.0
    %3792 = vmatprep.subr.mxu0 0.0
    %3793 = vmatpush2.msra.mxu0 0.0
    %3794 = vmatprep.subr.mxu0 0.0
    %3795 = vmatpush2.msra.mxu0 0.0
    %3796 = vmatprep.subr.mxu0 0.0
    %3797 = vmatpush2.msra.mxu0 0.0
    %3798 = vmatprep.subr.mxu0 0.0
    %3799 = vmatpush2.msra.mxu0 0.0
    %3800 = vmatprep.subr.mxu0 0.0
    %3801 = vmatpush2.msra.mxu0 0.0
    %3802 = vmatprep.subr.mxu0 0.0
    %3803 = vmatpush2.msra.mxu0 0.0
    %3804 = vmatprep.subr.mxu0 0.0
    %3805 = vmatpush2.msra.mxu0 0.0
    %3806 = vmatprep.subr.mxu0 0.0
    %3807 = vmatpush2.msra.mxu0 0.0
    %3808 = vmatprep.subr.mxu0 0.0
    %3809 = vmatpush2.msra.mxu0 0.0
    %3810 = vmatprep.subr.mxu0 0.0
    %3811 = vmatpush2.msra.mxu0 0.0
    %3812 = vmatprep.subr.mxu0 0.0
    %3813 = vmatpush2.msra.mxu0 0.0
    %3814 = vmatprep.subr.mxu0 0.0
    %3815 = vmatpush2.msra.mxu0 0.0
    %3816 = vmatprep.subr.mxu0 0.0
    %3817 = vmatpush2.msra.mxu0 0.0
    %3818 = vmatprep.subr.mxu0 0.0
    %3819 = vmatpush2.msra.mxu0 0.0
    %3820 = vmatprep.subr.mxu0 0.0
    %3821 = vmatpush2.msra.mxu0 0.0
    %3822 = vmatprep.mubr.f32.mxu0 0.0
    %v3823 = vand.u32 %v3053, 4294901760
    %v3824 = vsub.f32 %v3053, %v3823
    %v3825 = vand.u32 %v3824, 4294901760
    %3826 = vmatmul.mubr.f32.gmra.mxu0 %v3825
    %v3827 = vpop.f32.mrf.mxu0
    %v3828 = vadd.f32 %v3753, %v3827
    %v3829 = vpop.f32.mrf.mxu0
    %3830 = vdwg.mxu0
    %3831 = vmatprep.subr.mxu0 0.0
    %3832 = vmatpush1.msra.mxu0 0.0
    %3833 = vmatprep.subr.mxu0 0.0
    %3834 = vmatpush1.msra.mxu0 0.0
    %3835 = vmatprep.subr.mxu0 0.0
    %3836 = vmatpush1.msra.mxu0 0.0
    %3837 = vmatprep.subr.mxu0 0.0
    %3838 = vmatpush1.msra.mxu0 0.0
    %3839 = vmatprep.subr.mxu0 0.0
    %3840 = vmatpush1.msra.mxu0 0.0
    %3841 = vmatprep.subr.mxu0 0.0
    %3842 = vmatpush1.msra.mxu0 0.0
    %3843 = vmatprep.subr.mxu0 0.0
    %3844 = vmatpush1.msra.mxu0 0.0
    %3845 = vmatprep.subr.mxu0 0.0
    %3846 = vmatpush1.msra.mxu0 0.0
    %3847 = vmatprep.subr.mxu0 0.0
    %3848 = vmatpush1.msra.mxu0 0.0
    %3849 = vmatprep.subr.mxu0 0.0
    %3850 = vmatpush1.msra.mxu0 0.0
    %3851 = vmatprep.subr.mxu0 0.0
    %3852 = vmatpush1.msra.mxu0 0.0
    %3853 = vmatprep.subr.mxu0 0.0
    %3854 = vmatpush1.msra.mxu0 0.0
    %3855 = vmatprep.subr.mxu0 0.0
    %3856 = vmatpush1.msra.mxu0 0.0
    %3857 = vmatprep.subr.mxu0 0.0
    %3858 = vmatpush1.msra.mxu0 0.0
    %3859 = vmatprep.subr.mxu0 0.0
    %v3860 = vand.u32 %v2106, 4294901760
    %v3861 = vsub.f32 %v2106, %v3860
    %v3862 = vand.u32 %v3861, 4294901760
    %3863 = vmatpush1.msra.mxu0 %v3862
    %3864 = vmatprep.subr.mxu0 0.0
    %v3865 = vand.u32 %v2105, 4294901760
    %v3866 = vsub.f32 %v2105, %v3865
    %v3867 = vand.u32 %v3866, 4294901760
    %3868 = vmatpush1.msra.mxu0 %v3867
    %3869 = vmatprep.subr.mxu0 0.0
    %3870 = vmatpush2.msra.mxu0 0.0
    %3871 = vmatprep.subr.mxu0 0.0
    %3872 = vmatpush2.msra.mxu0 0.0
    %3873 = vmatprep.subr.mxu0 0.0
    %3874 = vmatpush2.msra.mxu0 0.0
    %3875 = vmatprep.subr.mxu0 0.0
    %3876 = vmatpush2.msra.mxu0 0.0
    %3877 = vmatprep.subr.mxu0 0.0
    %3878 = vmatpush2.msra.mxu0 0.0
    %3879 = vmatprep.subr.mxu0 0.0
    %3880 = vmatpush2.msra.mxu0 0.0
    %3881 = vmatprep.subr.mxu0 0.0
    %3882 = vmatpush2.msra.mxu0 0.0
    %3883 = vmatprep.subr.mxu0 0.0
    %3884 = vmatpush2.msra.mxu0 0.0
    %3885 = vmatprep.subr.mxu0 0.0
    %3886 = vmatpush2.msra.mxu0 0.0
    %3887 = vmatprep.subr.mxu0 0.0
    %3888 = vmatpush2.msra.mxu0 0.0
    %3889 = vmatprep.subr.mxu0 0.0
    %3890 = vmatpush2.msra.mxu0 0.0
    %3891 = vmatprep.subr.mxu0 0.0
    %3892 = vmatpush2.msra.mxu0 0.0
    %3893 = vmatprep.subr.mxu0 0.0
    %3894 = vmatpush2.msra.mxu0 0.0
    %3895 = vmatprep.subr.mxu0 0.0
    %3896 = vmatpush2.msra.mxu0 0.0
    %3897 = vmatprep.subr.mxu0 0.0
    %3898 = vmatpush2.msra.mxu0 0.0
    %3899 = vmatprep.subr.mxu0 0.0
    %3900 = vmatpush2.msra.mxu0 0.0
    %3901 = vmatprep.mubr.f32.mxu0 0.0
    %v3902 = vand.u32 %v3053, 4294901760
    %3903 = vmatmul.mubr.f32.gmra.mxu0 %v3902
    %v3904 = vpop.f32.mrf.mxu0
    %v3905 = vadd.f32 %v3828, %v3904
    %v3906 = vpop.f32.mrf.mxu0
    %3907 = vdwg.mxu0
    %3908 = vmatprep.subr.mxu0 0.0
    %3909 = vmatpush1.msra.mxu0 0.0
    %3910 = vmatprep.subr.mxu0 0.0
    %3911 = vmatpush1.msra.mxu0 0.0
    %3912 = vmatprep.subr.mxu0 0.0
    %3913 = vmatpush1.msra.mxu0 0.0
    %3914 = vmatprep.subr.mxu0 0.0
    %3915 = vmatpush1.msra.mxu0 0.0
    %3916 = vmatprep.subr.mxu0 0.0
    %3917 = vmatpush1.msra.mxu0 0.0
    %3918 = vmatprep.subr.mxu0 0.0
    %3919 = vmatpush1.msra.mxu0 0.0
    %3920 = vmatprep.subr.mxu0 0.0
    %3921 = vmatpush1.msra.mxu0 0.0
    %3922 = vmatprep.subr.mxu0 0.0
    %3923 = vmatpush1.msra.mxu0 0.0
    %3924 = vmatprep.subr.mxu0 0.0
    %3925 = vmatpush1.msra.mxu0 0.0
    %3926 = vmatprep.subr.mxu0 0.0
    %3927 = vmatpush1.msra.mxu0 0.0
    %3928 = vmatprep.subr.mxu0 0.0
    %3929 = vmatpush1.msra.mxu0 0.0
    %3930 = vmatprep.subr.mxu0 0.0
    %3931 = vmatpush1.msra.mxu0 0.0
    %3932 = vmatprep.subr.mxu0 0.0
    %3933 = vmatpush1.msra.mxu0 0.0
    %3934 = vmatprep.subr.mxu0 0.0
    %3935 = vmatpush1.msra.mxu0 0.0
    %3936 = vmatprep.subr.mxu0 0.0
    %v3937 = vand.u32 %v2106, 4294901760
    %3938 = vmatpush1.msra.mxu0 %v3937
    %3939 = vmatprep.subr.mxu0 0.0
    %v3940 = vand.u32 %v2105, 4294901760
    %3941 = vmatpush1.msra.mxu0 %v3940
    %3942 = vmatprep.subr.mxu0 0.0
    %3943 = vmatpush2.msra.mxu0 0.0
    %3944 = vmatprep.subr.mxu0 0.0
    %3945 = vmatpush2.msra.mxu0 0.0
    %3946 = vmatprep.subr.mxu0 0.0
    %3947 = vmatpush2.msra.mxu0 0.0
    %3948 = vmatprep.subr.mxu0 0.0
    %3949 = vmatpush2.msra.mxu0 0.0
    %3950 = vmatprep.subr.mxu0 0.0
    %3951 = vmatpush2.msra.mxu0 0.0
    %3952 = vmatprep.subr.mxu0 0.0
    %3953 = vmatpush2.msra.mxu0 0.0
    %3954 = vmatprep.subr.mxu0 0.0
    %3955 = vmatpush2.msra.mxu0 0.0
    %3956 = vmatprep.subr.mxu0 0.0
    %3957 = vmatpush2.msra.mxu0 0.0
    %3958 = vmatprep.subr.mxu0 0.0
    %3959 = vmatpush2.msra.mxu0 0.0
    %3960 = vmatprep.subr.mxu0 0.0
    %3961 = vmatpush2.msra.mxu0 0.0
    %3962 = vmatprep.subr.mxu0 0.0
    %3963 = vmatpush2.msra.mxu0 0.0
    %3964 = vmatprep.subr.mxu0 0.0
    %3965 = vmatpush2.msra.mxu0 0.0
    %3966 = vmatprep.subr.mxu0 0.0
    %3967 = vmatpush2.msra.mxu0 0.0
    %3968 = vmatprep.subr.mxu0 0.0
    %3969 = vmatpush2.msra.mxu0 0.0
    %3970 = vmatprep.subr.mxu0 0.0
    %3971 = vmatpush2.msra.mxu0 0.0
    %3972 = vmatprep.subr.mxu0 0.0
    %3973 = vmatpush2.msra.mxu0 0.0
    %3974 = vmatprep.mubr.f32.mxu0 0.0
    %v3975 = vand.u32 %v3053, 4294901760
    %3976 = vmatmul.mubr.f32.gmra.mxu0 %v3975
    %v3977 = vpop.f32.mrf.mxu0
    %v3978 = vadd.f32 %v3905, %v3977
    %v3979 = vpop.f32.mrf.mxu0
    %3980 = vdwg.mxu0
    %v3981 = vmul.f32 %v3515, 1.442695
    %v3982 = vpow.pop %v3981
    %v3983 = vmul.f32 %v204, %v3982
    %v3984 = vadd.f32 %v3983, %v3978
    %3985 = vst.msk [vmem:[#allocation20] sm:$0xff] %vm224, %v3984
    %3986 = vst.msk [vmem:[#allocation21] sm:$0xff] %vm224, %v2095
    // Predicated region
    $region118: #{tpu_custom_call.1} parent=1 // pred_check
      _
    $region119: #{tpu_custom_call.1} parent=1 // pred_check_branch
      %3988 = sbr.rel (0) target = $region121
    $region120: #{tpu_custom_call.1} parent=1 // pred_region
      %s3990 = ssub.s32 128, 128
      %3991 = vsyncadd [#allocation4], %s3990
      %s3993 = sshll.u32 [#allocation20], 4
      %s3994 = int_to_ptr.vmem [resolvable:$true] %s3993
      %3996 = dma.vmem_to_hbm [thread:$0]  %s3994, 128, %s18, [#allocation4]
    $region121: #{tpu_custom_call.1} parent=1 // pred_fallthru
      _
    // Predicated region
    $region122: #{tpu_custom_call.1} parent=1 // pred_check
      _
    $region123: #{tpu_custom_call.1} parent=1 // pred_check_branch
      %3998 = sbr.rel (0) target = $region125
    $region124: #{tpu_custom_call.1} parent=1 // pred_region
      %s4000 = ssub.s32 128, 128
      %4001 = vsyncadd [#allocation22], %s4000
      %s4003 = sshll.u32 [#allocation21], 4
      %s4004 = int_to_ptr.vmem [resolvable:$true] %s4003
      %4006 = dma.vmem_to_hbm [thread:$0]  %s4004, 128, %s19, [#allocation22]
    $region125: #{tpu_custom_call.1} parent=1 // pred_fallthru
      _
    // Predicated region
    $region126: #{tpu_custom_call.1} parent=1 // pred_check
      _
    $region127: #{tpu_custom_call.1} parent=1 // pred_check_branch
      %4008 = sbr.rel (0) target = $region129
    $region128: #{tpu_custom_call.1} parent=1 // pred_region
      %4009 = dma.done [#allocation4], 128
    $region129: #{tpu_custom_call.1} parent=1 // pred_fallthru
      _
    // Predicated region
    $region130: #{tpu_custom_call.1} parent=1 // pred_check
      _
    $region131: #{tpu_custom_call.1} parent=1 // pred_check_branch
      %4011 = sbr.rel (0) target = $region133
    $region132: #{tpu_custom_call.1} parent=1 // pred_region
      %4012 = dma.done [#allocation22], 128
    $region133: #{tpu_custom_call.1} parent=1 // pred_fallthru
      _
    %4013 = vsyncpa [#allocation3], 1
    %4014 = vsyncpa [#allocation6], 1
    %4015 = vsyncpa [#allocation9], 1
    %4016 = vsyncpa [#allocation12], 1
    %4017 = vsyncpa [#allocation15], 1
    %4018 = vsyncpa [#allocation18], 1
    %4019 = vsyncpa [#allocation4], 1
    %4020 = vsyncpa [#allocation22], 1

</llo_original>
